<compile_context>
chip_gen: v7x
topology: tpu7x:2x2x1
jax: 0.10.0
libtpu: 0.0.40
codegen_flags: <defaults>
</compile_context>

<pallas_src>
import functools
import math

import jax
import jax.numpy as jnp
import numpy as np
from jax import lax
from jax.experimental import pallas as pl
from jax.experimental.pallas import tpu as pltpu

EPS = float(jnp.finfo(jnp.float32).eps)


# ----------------------------------------------------------------------------
# Fused Pallas kernel: whole Perceiver stack in one invocation
# ----------------------------------------------------------------------------
def _perceiver_kernel(num_heads, B, L, S, D, H, block_is_cross,
                      lat_ref, emb_ref, hmask_ref, cbias_ref, sbias_ref,
                      wqkv_ref, woexp_ref, w1_ref, w2_ref, vecs_ref,
                      out_ref):
    nh = num_heads
    hd = D // nh
    scale = 1.0 / math.sqrt(hd)
    BL = B * L
    NR = nh * BL                                   # merged (head, batch, latent) rows

    lat = lat_ref[...]                             # (BL, D)    f32 residual stream
    emb_bf = emb_ref[...]                          # (B*S, D)   bf16 (pre-cast in wrapper)
    head_mask = hmask_ref[...]                     # (NR, D)    bf16 0/1 head selector
    cross_bias = cbias_ref[...]                    # (NR, B*S)  f32 batch-block + key mask
    self_bias = sbias_ref[...]                     # (NR, BL)   f32 batch-block mask

    def rmsnorm(x, g):
        ms = jnp.mean(x * x, axis=-1, keepdims=True)
        return x * lax.rsqrt(ms + EPS) * g

    def attend(q_bf, k_bf, v_bf, bias, wo_exp, bo):
        # q_bf: (BL, D) bf16; k_bf/v_bf: (Skv, D) bf16; bias: (NR, Skv) f32.
        # Replicate q once per head (single tile per block), mask to that head's
        # columns on the bf16 operand, then ONE MXU push for every batch & head.
        q_exp = jnp.concatenate([q_bf] * nh, axis=0) * head_mask          # (NR, D) bf16
        s = lax.dot_general(q_exp, k_bf, (((1,), (1,)), ((), ())),
                            preferred_element_type=jnp.float32) * scale + bias
        s = s - jnp.max(s, axis=-1, keepdims=True)
        p = jnp.exp(s)
        p = p * pl.reciprocal(jnp.sum(p, axis=-1, keepdims=True), approx=True)
        o_full = jnp.dot(p.astype(jnp.bfloat16), v_bf,
                         preferred_element_type=jnp.float32)              # (NR, D) f32
        o_bf = o_full.astype(jnp.bfloat16)
        # Lane-pack heads (nh, BL, D) -> (BL, nh*D) and contract over nh*D = 128
        # against the pre-expanded Wo~ (out-of-head rows already zeroed).
        o_big = jnp.concatenate([o_bf[h * BL:(h + 1) * BL, :] for h in range(nh)],
                                axis=1)                                   # (BL, nh*D)
        return jnp.dot(o_big, wo_exp, preferred_element_type=jnp.float32) + bo

    # Static loop over every (cross | self) block of every perceiver layer.
    for t in range(len(block_is_cross)):
        wqkv = wqkv_ref[t]                         # (D, 3D)   bf16 [wq | wk | wv]
        wo_exp = woexp_ref[t]                      # (nh*D, D) bf16
        w1 = w1_ref[t]                             # (D, H)    bf16
        w2 = w2_ref[t]                             # (H, D)    bf16
        vt = vecs_ref[t]                           # (8, vmax) f32 bias/gain slab
        g1 = vt[0:1, 0:D]
        bqkv = vt[1:2, 0:3 * D]
        bo = vt[2:3, 0:D]
        g2 = vt[3:4, 0:D]
        b1 = vt[4:5, 0:H]
        b2 = vt[5:6, 0:D]

        # Pre-norm; residual is added to the NORMALIZED input (module convention).
        x = rmsnorm(lat, g1)
        x_bf = x.astype(jnp.bfloat16)
        if block_is_cross[t]:
            # Q from latents, fused K|V from raw embeddings.
            q = jnp.dot(x_bf, wqkv[:, 0:D],
                        preferred_element_type=jnp.float32) + bqkv[:, 0:D]
            kv = jnp.dot(emb_bf, wqkv[:, D:3 * D],
                         preferred_element_type=jnp.float32) + bqkv[:, D:3 * D]
            kv_bf = kv.astype(jnp.bfloat16)
            attn = attend(q.astype(jnp.bfloat16), kv_bf[:, 0:D], kv_bf[:, D:2 * D],
                          cross_bias, wo_exp, bo)
        else:
            # Self-attention: Q/K/V all from the normalized latents -> one fused matmul.
            qkv = jnp.dot(x_bf, wqkv, preferred_element_type=jnp.float32) + bqkv
            qkv_bf = qkv.astype(jnp.bfloat16)
            attn = attend(qkv_bf[:, 0:D], qkv_bf[:, D:2 * D], qkv_bf[:, 2 * D:3 * D],
                          self_bias, wo_exp, bo)
        x = attn + x

        y = rmsnorm(x, g2)
        y_bf = y.astype(jnp.bfloat16)
        h1 = jnp.maximum(
            jnp.dot(y_bf, w1, preferred_element_type=jnp.float32) + b1, 0.0)  # relu
        ffn = jnp.dot(h1.astype(jnp.bfloat16), w2,
                      preferred_element_type=jnp.float32) + b2
        lat = ffn + y

    out_ref[...] = lat.astype(out_ref.dtype)


# ----------------------------------------------------------------------------
# Wrapper: pack weights / masks, launch one fused kernel
# ----------------------------------------------------------------------------
def perceiver_forward(embeddings, mask, latents_param, layer_params, num_heads):
    B, S, D = embeddings.shape
    L = latents_param.shape[1]
    H = layer_params[0]["cross"]["w1"].shape[1]
    nh = num_heads
    hd = D // nh
    BL = B * L
    NR = nh * BL
    vmax = max(3 * D, H)

    # Flatten the block list in execution order: [cross, self..., cross, self..., ...]
    blocks, is_cross = [], []
    for lp in layer_params:
        blocks.append(lp["cross"]); is_cross.append(True)
        for sp in lp["selfs"]:
            blocks.append(sp); is_cross.append(False)
    T = len(blocks)

    def pad_row(v):
        v = v.astype(jnp.float32)
        return jnp.pad(v, ((0, 0), (0, vmax - v.shape[1])))

    def expand_wo(wo):
        # Wo~ (nh*D, D): block h holds wo with rows outside head h's slice zeroed,
        # so head masking is folded into the output projection for free.
        col_head = (jnp.arange(D) // hd)[:, None]
        return jnp.concatenate(
            [wo * (col_head == h).astype(wo.dtype) for h in range(nh)], axis=0)

    # Stacked per-block weights (bf16, MXU-native, halves DMA bytes).
    wqkv = jnp.stack([jnp.concatenate([p["wq"], p["wk"], p["wv"]], axis=1)
                      for p in blocks], axis=0).astype(jnp.bfloat16)        # (T, D, 3D)
    woexp = jnp.stack([expand_wo(p["wo"]) for p in blocks],
                      axis=0).astype(jnp.bfloat16)                          # (T, nh*D, D)
    w1 = jnp.stack([p["w1"] for p in blocks], axis=0).astype(jnp.bfloat16)  # (T, D, H)
    w2 = jnp.stack([p["w2"] for p in blocks], axis=0).astype(jnp.bfloat16)  # (T, H, D)
    vecs = jnp.stack([
        jnp.concatenate([
            pad_row(p["g1"]),
            pad_row(jnp.concatenate([p["bq"], p["bk"], p["bv"]], axis=1)),
            pad_row(p["bo"]),
            pad_row(p["g2"]),
            pad_row(p["b1"]),
            pad_row(p["b2"]),
            jnp.zeros((2, vmax), jnp.float32),
        ], axis=0) for p in blocks], axis=0)                                # (T, 8, vmax)

    lat0 = jnp.broadcast_to(latents_param.astype(jnp.float32), (B, L, D)).reshape(BL, D)
    emb_bf = embeddings.astype(jnp.bfloat16).reshape(B * S, D)              # pre-cast

    # Merged-row masks, built once outside the kernel.
    row_b = (jnp.arange(NR) % BL) // L                                      # row -> batch
    row_h = jnp.arange(NR) // BL                                            # row -> head
    head_mask = (row_h[:, None] == (jnp.arange(D) // hd)[None, :]).astype(jnp.bfloat16)
    key_bias = jnp.where(mask.reshape(1, B * S) == 0, -1e30, 0.0).astype(jnp.float32)
    cross_bias = jnp.where(row_b[:, None] == (jnp.arange(B * S) // S)[None, :],
                           0.0, -1e30).astype(jnp.float32) + key_bias       # (NR, B*S)
    self_bias = jnp.where(row_b[:, None] == (jnp.arange(BL) // L)[None, :],
                          0.0, -1e30).astype(jnp.float32)                   # (NR, BL)

    kernel = functools.partial(_perceiver_kernel, nh, B, L, S, D, H, tuple(is_cross))

    out = pl.pallas_call(
        kernel,
        out_shape=jax.ShapeDtypeStruct((BL, D), jnp.float32),
        grid=(1,),
        in_specs=[
            pl.BlockSpec((BL, D), lambda i: (0, 0)),              # initial latents
            pl.BlockSpec((B * S, D), lambda i: (0, 0)),           # embeddings (bf16)
            pl.BlockSpec((NR, D), lambda i: (0, 0)),              # head selector mask
            pl.BlockSpec((NR, B * S), lambda i: (0, 0)),          # cross attn bias
            pl.BlockSpec((NR, BL), lambda i: (0, 0)),             # self attn bias
            pl.BlockSpec((T, D, 3 * D), lambda i: (0, 0, 0)),     # fused wq|wk|wv
            pl.BlockSpec((T, nh * D, D), lambda i: (0, 0, 0)),    # expanded Wo~
            pl.BlockSpec((T, D, H), lambda i: (0, 0, 0)),         # ffn w1
            pl.BlockSpec((T, H, D), lambda i: (0, 0, 0)),         # ffn w2
            pl.BlockSpec((T, 8, vmax), lambda i: (0, 0, 0)),      # gains + biases slab
        ],
        out_specs=pl.BlockSpec((BL, D), lambda i: (0, 0)),
        compiler_params=pltpu.CompilerParams(dimension_semantics=("arbitrary",)),
    )(lat0, emb_bf, head_mask, cross_bias, self_bias, wqkv, woexp, w1, w2, vecs)
    return out.reshape(B, L, D)


# ----------------------------------------------------------------------------
# Parameter construction (deterministic, synthetic)
# ----------------------------------------------------------------------------
def make_block_params(key, D, H):
    ks = jax.random.split(key, 6)

    def lin(k, din, dout):
        kw, kb = jax.random.split(k)
        w = jax.random.normal(kw, (din, dout), jnp.float32) * 0.02
        b = jax.random.normal(kb, (1, dout), jnp.float32) * 0.01
        return w, b

    wq, bq = lin(ks[0], D, D)
    wk, bk = lin(ks[1], D, D)
    wv, bv = lin(ks[2], D, D)
    wo, bo = lin(ks[3], D, D)
    w1, b1 = lin(ks[4], D, H)
    w2, b2 = lin(ks[5], H, D)
    return dict(g1=jnp.ones((1, D), jnp.float32), g2=jnp.ones((1, D), jnp.float32),
                wq=wq, bq=bq, wk=wk, bk=bk, wv=wv, bv=bv, wo=wo, bo=bo,
                w1=w1, b1=b1, w2=w2, b2=b2)


def make_perceiver_params(key, D, H, num_perceiver_layers, num_self_layers):
    layers = []
    for _ in range(num_perceiver_layers):
        key, kc = jax.random.split(key)
        cross = make_block_params(kc, D, H)
        selfs = []
        for _ in range(num_self_layers):
            key, ksf = jax.random.split(key)
            selfs.append(make_block_params(ksf, D, H))
        layers.append(dict(cross=cross, selfs=selfs))
    return layers


# ----------------------------------------------------------------------------
# Pure-JAX f32 reference, faithful to the PyTorch module
# ----------------------------------------------------------------------------
def _rms_ref(x, g):
    return x * lax.rsqrt(jnp.mean(x * x, -1, keepdims=True) + EPS) * g


def _mha_ref(q_in, kv_in, mbias, p, nh):
    B, Lq, D = q_in.shape
    Sk = kv_in.shape[1]
    hd = D // nh
    q = (q_in @ p["wq"] + p["bq"]).reshape(B, Lq, nh, hd).transpose(0, 2, 1, 3)
    k = (kv_in @ p["wk"] + p["bk"]).reshape(B, Sk, nh, hd).transpose(0, 2, 1, 3)
    v = (kv_in @ p["wv"] + p["bv"]).reshape(B, Sk, nh, hd).transpose(0, 2, 1, 3)
    s = jnp.einsum("bhld,bhsd->bhls", q, k) / math.sqrt(hd)
    if mbias is not None:
        s = s + mbias[:, None, None, :]
    a = jax.nn.softmax(s, axis=-1)
    o = jnp.einsum("bhls,bhsd->bhld", a, v).transpose(0, 2, 1, 3).reshape(B, Lq, D)
    return o @ p["wo"] + p["bo"]


def _ffn_ref(x, p):
    return jnp.maximum(x @ p["w1"] + p["b1"], 0.0) @ p["w2"] + p["b2"]


def _ref_forward(embeddings, mask, latents_param, layer_params, num_heads):
    B = embeddings.shape[0]
    L, D = latents_param.shape[1], latents_param.shape[2]
    latents = jnp.broadcast_to(latents_param, (B, L, D)).astype(jnp.float32)
    mbias = jnp.where(mask == 0, -1e30, 0.0).astype(jnp.float32)
    for lp in layer_params:
        p = lp["cross"]
        latents = _rms_ref(latents, p["g1"])
        latents = _mha_ref(latents, embeddings, mbias, p, num_heads) + latents
        latents = _rms_ref(latents, p["g2"])
        latents = _ffn_ref(latents, p) + latents
        for p in lp["selfs"]:
            latents = _rms_ref(latents, p["g1"])
            latents = _mha_ref(latents, latents, None, p, num_heads) + latents
            latents = _rms_ref(latents, p["g2"])
            latents = _ffn_ref(latents, p) + latents
    return latents


# ----------------------------------------------------------------------------
if __name__ == "__main__":
    embed_dim = 32
    num_heads = 4
    num_latents = 8
    hidden_dim = 64
    num_perceiver_layers = 2
    num_self_layers = 1
    batch = 2
    seq = 16

    key = jax.random.PRNGKey(0)
    k_emb, k_params = jax.random.split(key)

    embeddings = jax.random.normal(k_emb, (batch, seq, embed_dim), jnp.float32)
    # mask: 1 = valid, 0 = masked (LongTensor semantics); second row masks last 4 keys
    mask = jnp.ones((batch, seq), jnp.int32)
    mask = mask.at[1, -4:].set(0)

    latents_param = jnp.ones((1, num_latents, embed_dim), jnp.float32)  # torch.ones init
    layer_params = make_perceiver_params(k_params, embed_dim, hidden_dim,
                                         num_perceiver_layers, num_self_layers)

    out = perceiver_forward(embeddings, mask, latents_param, layer_params, num_heads)
    out = jax.block_until_ready(out)

    ref = jax.block_until_ready(
        _ref_forward(embeddings, mask, latents_param, layer_params, num_heads))

    # bf16 MXU matmuls inside the kernel (f32 reference) -> relaxed tolerance.
    np.testing.assert_allclose(np.asarray(out), np.asarray(ref), rtol=2e-2, atol=2e-2)
    assert out.shape == (batch, num_latents, embed_dim)
    print("KERNEL_OK")
</pallas_src>

<mosaic_0001>
module attributes {stable_mosaic.version = 11 : i64} {
  func.func @_perceiver_kernel(%arg0: i32, %arg1: memref<16x32xf32, #tpu.memory_space<vmem>>, %arg2: memref<32x32xbf16, #tpu.memory_space<vmem>>, %arg3: memref<64x32xbf16, #tpu.memory_space<vmem>>, %arg4: memref<64x32xf32, #tpu.memory_space<vmem>>, %arg5: memref<64x16xf32, #tpu.memory_space<vmem>>, %arg6: memref<4x32x96xbf16, #tpu.memory_space<vmem>>, %arg7: memref<4x128x32xbf16, #tpu.memory_space<vmem>>, %arg8: memref<4x32x64xbf16, #tpu.memory_space<vmem>>, %arg9: memref<4x64x32xbf16, #tpu.memory_space<vmem>>, %arg10: memref<4x8x96xf32, #tpu.memory_space<vmem>>, %arg11: memref<16x32xf32, #tpu.memory_space<vmem>>) attributes {dimension_semantics = [#tpu.dimension_semantics<arbitrary>], iteration_bounds = array<i64: 1>, scalar_prefetch = 0 : i64, scratch_operands = 0 : i64, tpu.core_type = #tpu.core_type<tc>, window_params = [{pipeline_mode = #tpu.pipeline_mode<synchronous>, transform_indices = @transform_0, window_bounds = array<i64: 16, 32>}, {pipeline_mode = #tpu.pipeline_mode<synchronous>, transform_indices = @transform_1, window_bounds = array<i64: 32, 32>}, {pipeline_mode = #tpu.pipeline_mode<synchronous>, transform_indices = @transform_2, window_bounds = array<i64: 64, 32>}, {pipeline_mode = #tpu.pipeline_mode<synchronous>, transform_indices = @transform_3, window_bounds = array<i64: 64, 32>}, {pipeline_mode = #tpu.pipeline_mode<synchronous>, transform_indices = @transform_4, window_bounds = array<i64: 64, 16>}, {pipeline_mode = #tpu.pipeline_mode<synchronous>, transform_indices = @transform_5, window_bounds = array<i64: 4, 32, 96>}, {pipeline_mode = #tpu.pipeline_mode<synchronous>, transform_indices = @transform_6, window_bounds = array<i64: 4, 128, 32>}, {pipeline_mode = #tpu.pipeline_mode<synchronous>, transform_indices = @transform_7, window_bounds = array<i64: 4, 32, 64>}, {pipeline_mode = #tpu.pipeline_mode<synchronous>, transform_indices = @transform_8, window_bounds = array<i64: 4, 64, 32>}, {pipeline_mode = #tpu.pipeline_mode<synchronous>, transform_indices = @transform_9, window_bounds = array<i64: 4, 8, 96>}, {pipeline_mode = #tpu.pipeline_mode<synchronous>, transform_indices = @transform_10, window_bounds = array<i64: 16, 32>}]} {
    %c0 = arith.constant 0 : index
    %c0_0 = arith.constant 0 : index
    %0 = vector.load %arg1[%c0, %c0_0] : memref<16x32xf32, #tpu.memory_space<vmem>>, vector<16x32xf32>
    %c0_1 = arith.constant 0 : index
    %c0_2 = arith.constant 0 : index
    %1 = vector.load %arg2[%c0_1, %c0_2] : memref<32x32xbf16, #tpu.memory_space<vmem>>, vector<32x32xbf16>
    %c0_3 = arith.constant 0 : index
    %c0_4 = arith.constant 0 : index
    %2 = vector.load %arg3[%c0_3, %c0_4] : memref<64x32xbf16, #tpu.memory_space<vmem>>, vector<64x32xbf16>
    %c0_5 = arith.constant 0 : index
    %c0_6 = arith.constant 0 : index
    %3 = vector.load %arg4[%c0_5, %c0_6] : memref<64x32xf32, #tpu.memory_space<vmem>>, vector<64x32xf32>
    %c0_7 = arith.constant 0 : index
    %c0_8 = arith.constant 0 : index
    %4 = vector.load %arg5[%c0_7, %c0_8] : memref<64x16xf32, #tpu.memory_space<vmem>>, vector<64x16xf32>
    %c0_9 = arith.constant 0 : index
    %c0_10 = arith.constant 0 : index
    %c0_11 = arith.constant 0 : index
    %5 = vector.load %arg6[%c0_9, %c0_10, %c0_11] : memref<4x32x96xbf16, #tpu.memory_space<vmem>>, vector<1x32x96xbf16>
    %6 = vector.shape_cast %5 : vector<1x32x96xbf16> to vector<32x96xbf16>
    %c0_12 = arith.constant 0 : index
    %c0_13 = arith.constant 0 : index
    %c0_14 = arith.constant 0 : index
    %7 = vector.load %arg7[%c0_12, %c0_13, %c0_14] : memref<4x128x32xbf16, #tpu.memory_space<vmem>>, vector<1x128x32xbf16>
    %8 = vector.shape_cast %7 : vector<1x128x32xbf16> to vector<128x32xbf16>
    %c0_15 = arith.constant 0 : index
    %c0_16 = arith.constant 0 : index
    %c0_17 = arith.constant 0 : index
    %9 = vector.load %arg8[%c0_15, %c0_16, %c0_17] : memref<4x32x64xbf16, #tpu.memory_space<vmem>>, vector<1x32x64xbf16>
    %10 = vector.shape_cast %9 : vector<1x32x64xbf16> to vector<32x64xbf16>
    %c0_18 = arith.constant 0 : index
    %c0_19 = arith.constant 0 : index
    %c0_20 = arith.constant 0 : index
    %11 = vector.load %arg9[%c0_18, %c0_19, %c0_20] : memref<4x64x32xbf16, #tpu.memory_space<vmem>>, vector<1x64x32xbf16>
    %12 = vector.shape_cast %11 : vector<1x64x32xbf16> to vector<64x32xbf16>
    %c0_21 = arith.constant 0 : index
    %c0_22 = arith.constant 0 : index
    %c0_23 = arith.constant 0 : index
    %13 = vector.load %arg10[%c0_21, %c0_22, %c0_23] : memref<4x8x96xf32, #tpu.memory_space<vmem>>, vector<1x8x96xf32>
    %14 = vector.shape_cast %13 : vector<1x8x96xf32> to vector<8x96xf32>
    %15 = vector.extract_strided_slice %14 {offsets = [0, 0], sizes = [1, 32], strides = [1, 1]} : vector<8x96xf32> to vector<1x32xf32>
    %16 = vector.extract_strided_slice %14 {offsets = [1, 0], sizes = [1, 96], strides = [1, 1]} : vector<8x96xf32> to vector<1x96xf32>
    %17 = vector.extract_strided_slice %14 {offsets = [2, 0], sizes = [1, 32], strides = [1, 1]} : vector<8x96xf32> to vector<1x32xf32>
    %18 = vector.extract_strided_slice %14 {offsets = [3, 0], sizes = [1, 32], strides = [1, 1]} : vector<8x96xf32> to vector<1x32xf32>
    %19 = vector.extract_strided_slice %14 {offsets = [4, 0], sizes = [1, 64], strides = [1, 1]} : vector<8x96xf32> to vector<1x64xf32>
    %20 = vector.extract_strided_slice %14 {offsets = [5, 0], sizes = [1, 32], strides = [1, 1]} : vector<8x96xf32> to vector<1x32xf32>
    %21 = arith.mulf %0, %0 : vector<16x32xf32>
    %cst = arith.constant dense<0.000000e+00> : vector<16xf32>
    %22 = vector.multi_reduction <add>, %21, %cst [1] : vector<16x32xf32> to vector<16xf32>
    %23 = vector.shape_cast %22 : vector<16xf32> to vector<16x1xf32>
    %cst_24 = arith.constant 3.200000e+01 : f32
    %24 = vector.broadcast %cst_24 : f32 to vector<16x1xf32>
    %25 = arith.divf %23, %24 : vector<16x1xf32>
    %cst_25 = arith.constant 1.1920929E-7 : f32
    %26 = vector.broadcast %cst_25 : f32 to vector<16x1xf32>
    %27 = arith.addf %25, %26 : vector<16x1xf32>
    %28 = math.rsqrt %27 : vector<16x1xf32>
    %29 = vector.broadcast %28 : vector<16x1xf32> to vector<16x32xf32>
    %30 = arith.mulf %0, %29 : vector<16x32xf32>
    %31 = vector.broadcast %15 : vector<1x32xf32> to vector<16x32xf32>
    %32 = arith.mulf %30, %31 : vector<16x32xf32>
    %33 = arith.truncf %32 : vector<16x32xf32> to vector<16x32xbf16>
    %34 = vector.extract_strided_slice %6 {offsets = [0, 0], sizes = [32, 32], strides = [1, 1]} : vector<32x96xbf16> to vector<32x32xbf16>
    %cst_26 = arith.constant dense<0.000000e+00> : vector<16x32xf32>
    %35 = tpu.matmul %33, %34, %cst_26 {dimension_numbers = #tpu.dot_dimension_numbers<[1], [0], [0], [1], [0, 0, 1, 1], [], []>} : vector<16x32xbf16>, vector<32x32xbf16>, vector<16x32xf32> -> vector<16x32xf32>
    %36 = vector.extract_strided_slice %16 {offsets = [0, 0], sizes = [1, 32], strides = [1, 1]} : vector<1x96xf32> to vector<1x32xf32>
    %37 = vector.broadcast %36 : vector<1x32xf32> to vector<16x32xf32>
    %38 = arith.addf %35, %37 : vector<16x32xf32>
    %39 = vector.extract_strided_slice %6 {offsets = [0, 32], sizes = [32, 64], strides = [1, 1]} : vector<32x96xbf16> to vector<32x64xbf16>
    %cst_27 = arith.constant dense<0.000000e+00> : vector<32x64xf32>
    %40 = tpu.matmul %1, %39, %cst_27 {dimension_numbers = #tpu.dot_dimension_numbers<[1], [0], [0], [1], [0, 0, 1, 1], [], []>} : vector<32x32xbf16>, vector<32x64xbf16>, vector<32x64xf32> -> vector<32x64xf32>
    %41 = vector.extract_strided_slice %16 {offsets = [0, 32], sizes = [1, 64], strides = [1, 1]} : vector<1x96xf32> to vector<1x64xf32>
    %42 = vector.broadcast %41 : vector<1x64xf32> to vector<32x64xf32>
    %43 = arith.addf %40, %42 : vector<32x64xf32>
    %44 = arith.truncf %43 : vector<32x64xf32> to vector<32x64xbf16>
    %45 = arith.truncf %38 : vector<16x32xf32> to vector<16x32xbf16>
    %46 = vector.extract_strided_slice %44 {offsets = [0, 0], sizes = [32, 32], strides = [1, 1]} : vector<32x64xbf16> to vector<32x32xbf16>
    %47 = vector.extract_strided_slice %44 {offsets = [0, 32], sizes = [32, 32], strides = [1, 1]} : vector<32x64xbf16> to vector<32x32xbf16>
    %48 = tpu.concatenate %45, %45, %45, %45 in 0 : vector<16x32xbf16>, vector<16x32xbf16>, vector<16x32xbf16>, vector<16x32xbf16> -> vector<64x32xbf16>
    %49 = arith.mulf %48, %2 : vector<64x32xbf16>
    %cst_28 = arith.constant dense<0.000000e+00> : vector<64x32xf32>
    %50 = tpu.matmul %49, %46, %cst_28 {dimension_numbers = #tpu.dot_dimension_numbers<[1], [1], [0], [0], [0, 0, 1, 0], [], []>} : vector<64x32xbf16>, vector<32x32xbf16>, vector<64x32xf32> -> vector<64x32xf32>
    %cst_29 = arith.constant 0.353553385 : f32
    %51 = vector.broadcast %cst_29 : f32 to vector<64x32xf32>
    %52 = arith.mulf %50, %51 : vector<64x32xf32>
    %53 = arith.addf %52, %3 : vector<64x32xf32>
    %cst_30 = arith.constant dense<0xFF800000> : vector<64xf32>
    %54 = vector.multi_reduction <maximumf>, %53, %cst_30 [1] : vector<64x32xf32> to vector<64xf32>
    %55 = vector.shape_cast %54 : vector<64xf32> to vector<64x1xf32>
    %56 = vector.broadcast %55 : vector<64x1xf32> to vector<64x32xf32>
    %57 = arith.subf %53, %56 : vector<64x32xf32>
    %58 = math.exp %57 : vector<64x32xf32>
    %cst_31 = arith.constant dense<0.000000e+00> : vector<64xf32>
    %59 = vector.multi_reduction <add>, %58, %cst_31 [1] : vector<64x32xf32> to vector<64xf32>
    %60 = vector.shape_cast %59 : vector<64xf32> to vector<64x1xf32>
    %61 = tpu.reciprocal %60 {approx = true} : vector<64x1xf32> -> vector<64x1xf32>
    %62 = vector.broadcast %61 : vector<64x1xf32> to vector<64x32xf32>
    %63 = arith.mulf %58, %62 : vector<64x32xf32>
    %64 = arith.truncf %63 : vector<64x32xf32> to vector<64x32xbf16>
    %cst_32 = arith.constant dense<0.000000e+00> : vector<64x32xf32>
    %65 = tpu.matmul %64, %47, %cst_32 {dimension_numbers = #tpu.dot_dimension_numbers<[1], [0], [0], [1], [0, 0, 1, 1], [], []>} : vector<64x32xbf16>, vector<32x32xbf16>, vector<64x32xf32> -> vector<64x32xf32>
    %66 = arith.truncf %65 : vector<64x32xf32> to vector<64x32xbf16>
    %67 = vector.extract_strided_slice %66 {offsets = [0, 0], sizes = [16, 32], strides = [1, 1]} : vector<64x32xbf16> to vector<16x32xbf16>
    %68 = vector.extract_strided_slice %66 {offsets = [16, 0], sizes = [16, 32], strides = [1, 1]} : vector<64x32xbf16> to vector<16x32xbf16>
    %69 = vector.extract_strided_slice %66 {offsets = [32, 0], sizes = [16, 32], strides = [1, 1]} : vector<64x32xbf16> to vector<16x32xbf16>
    %70 = vector.extract_strided_slice %66 {offsets = [48, 0], sizes = [16, 32], strides = [1, 1]} : vector<64x32xbf16> to vector<16x32xbf16>
    %71 = tpu.concatenate %67, %68, %69, %70 in 1 : vector<16x32xbf16>, vector<16x32xbf16>, vector<16x32xbf16>, vector<16x32xbf16> -> vector<16x128xbf16>
    %cst_33 = arith.constant dense<0.000000e+00> : vector<16x32xf32>
    %72 = tpu.matmul %71, %8, %cst_33 {dimension_numbers = #tpu.dot_dimension_numbers<[1], [0], [0], [1], [0, 0, 1, 1], [], []>} : vector<16x128xbf16>, vector<128x32xbf16>, vector<16x32xf32> -> vector<16x32xf32>
    %73 = vector.broadcast %17 : vector<1x32xf32> to vector<16x32xf32>
    %74 = arith.addf %72, %73 : vector<16x32xf32>
    %75 = arith.addf %74, %32 : vector<16x32xf32>
    %76 = arith.mulf %75, %75 : vector<16x32xf32>
    %cst_34 = arith.constant dense<0.000000e+00> : vector<16xf32>
    %77 = vector.multi_reduction <add>, %76, %cst_34 [1] : vector<16x32xf32> to vector<16xf32>
    %78 = vector.shape_cast %77 : vector<16xf32> to vector<16x1xf32>
    %cst_35 = arith.constant 3.200000e+01 : f32
    %79 = vector.broadcast %cst_35 : f32 to vector<16x1xf32>
    %80 = arith.divf %78, %79 : vector<16x1xf32>
    %cst_36 = arith.constant 1.1920929E-7 : f32
    %81 = vector.broadcast %cst_36 : f32 to vector<16x1xf32>
    %82 = arith.addf %80, %81 : vector<16x1xf32>
    %83 = math.rsqrt %82 : vector<16x1xf32>
    %84 = vector.broadcast %83 : vector<16x1xf32> to vector<16x32xf32>
    %85 = arith.mulf %75, %84 : vector<16x32xf32>
    %86 = vector.broadcast %18 : vector<1x32xf32> to vector<16x32xf32>
    %87 = arith.mulf %85, %86 : vector<16x32xf32>
    %88 = arith.truncf %87 : vector<16x32xf32> to vector<16x32xbf16>
    %cst_37 = arith.constant dense<0.000000e+00> : vector<16x64xf32>
    %89 = tpu.matmul %88, %10, %cst_37 {dimension_numbers = #tpu.dot_dimension_numbers<[1], [0], [0], [1], [0, 0, 1, 1], [], []>} : vector<16x32xbf16>, vector<32x64xbf16>, vector<16x64xf32> -> vector<16x64xf32>
    %90 = vector.broadcast %19 : vector<1x64xf32> to vector<16x64xf32>
    %91 = arith.addf %89, %90 : vector<16x64xf32>
    %cst_38 = arith.constant 0.000000e+00 : f32
    %92 = vector.broadcast %cst_38 : f32 to vector<16x64xf32>
    %93 = arith.maximumf %91, %92 : vector<16x64xf32>
    %94 = arith.truncf %93 : vector<16x64xf32> to vector<16x64xbf16>
    %cst_39 = arith.constant dense<0.000000e+00> : vector<16x32xf32>
    %95 = tpu.matmul %94, %12, %cst_39 {dimension_numbers = #tpu.dot_dimension_numbers<[1], [0], [0], [1], [0, 0, 1, 1], [], []>} : vector<16x64xbf16>, vector<64x32xbf16>, vector<16x32xf32> -> vector<16x32xf32>
    %96 = vector.broadcast %20 : vector<1x32xf32> to vector<16x32xf32>
    %97 = arith.addf %95, %96 : vector<16x32xf32>
    %98 = arith.addf %97, %87 : vector<16x32xf32>
    %c1 = arith.constant 1 : index
    %c0_40 = arith.constant 0 : index
    %c0_41 = arith.constant 0 : index
    %99 = vector.load %arg6[%c1, %c0_40, %c0_41] : memref<4x32x96xbf16, #tpu.memory_space<vmem>>, vector<1x32x96xbf16>
    %100 = vector.shape_cast %99 : vector<1x32x96xbf16> to vector<32x96xbf16>
    %c1_42 = arith.constant 1 : index
    %c0_43 = arith.constant 0 : index
    %c0_44 = arith.constant 0 : index
    %101 = vector.load %arg7[%c1_42, %c0_43, %c0_44] : memref<4x128x32xbf16, #tpu.memory_space<vmem>>, vector<1x128x32xbf16>
    %102 = vector.shape_cast %101 : vector<1x128x32xbf16> to vector<128x32xbf16>
    %c1_45 = arith.constant 1 : index
    %c0_46 = arith.constant 0 : index
    %c0_47 = arith.constant 0 : index
    %103 = vector.load %arg8[%c1_45, %c0_46, %c0_47] : memref<4x32x64xbf16, #tpu.memory_space<vmem>>, vector<1x32x64xbf16>
    %104 = vector.shape_cast %103 : vector<1x32x64xbf16> to vector<32x64xbf16>
    %c1_48 = arith.constant 1 : index
    %c0_49 = arith.constant 0 : index
    %c0_50 = arith.constant 0 : index
    %105 = vector.load %arg9[%c1_48, %c0_49, %c0_50] : memref<4x64x32xbf16, #tpu.memory_space<vmem>>, vector<1x64x32xbf16>
    %106 = vector.shape_cast %105 : vector<1x64x32xbf16> to vector<64x32xbf16>
    %c1_51 = arith.constant 1 : index
    %c0_52 = arith.constant 0 : index
    %c0_53 = arith.constant 0 : index
    %107 = vector.load %arg10[%c1_51, %c0_52, %c0_53] : memref<4x8x96xf32, #tpu.memory_space<vmem>>, vector<1x8x96xf32>
    %108 = vector.shape_cast %107 : vector<1x8x96xf32> to vector<8x96xf32>
    %109 = vector.extract_strided_slice %108 {offsets = [0, 0], sizes = [1, 32], strides = [1, 1]} : vector<8x96xf32> to vector<1x32xf32>
    %110 = vector.extract_strided_slice %108 {offsets = [1, 0], sizes = [1, 96], strides = [1, 1]} : vector<8x96xf32> to vector<1x96xf32>
    %111 = vector.extract_strided_slice %108 {offsets = [2, 0], sizes = [1, 32], strides = [1, 1]} : vector<8x96xf32> to vector<1x32xf32>
    %112 = vector.extract_strided_slice %108 {offsets = [3, 0], sizes = [1, 32], strides = [1, 1]} : vector<8x96xf32> to vector<1x32xf32>
    %113 = vector.extract_strided_slice %108 {offsets = [4, 0], sizes = [1, 64], strides = [1, 1]} : vector<8x96xf32> to vector<1x64xf32>
    %114 = vector.extract_strided_slice %108 {offsets = [5, 0], sizes = [1, 32], strides = [1, 1]} : vector<8x96xf32> to vector<1x32xf32>
    %115 = arith.mulf %98, %98 : vector<16x32xf32>
    %cst_54 = arith.constant dense<0.000000e+00> : vector<16xf32>
    %116 = vector.multi_reduction <add>, %115, %cst_54 [1] : vector<16x32xf32> to vector<16xf32>
    %117 = vector.shape_cast %116 : vector<16xf32> to vector<16x1xf32>
    %cst_55 = arith.constant 3.200000e+01 : f32
    %118 = vector.broadcast %cst_55 : f32 to vector<16x1xf32>
    %119 = arith.divf %117, %118 : vector<16x1xf32>
    %cst_56 = arith.constant 1.1920929E-7 : f32
    %120 = vector.broadcast %cst_56 : f32 to vector<16x1xf32>
    %121 = arith.addf %119, %120 : vector<16x1xf32>
    %122 = math.rsqrt %121 : vector<16x1xf32>
    %123 = vector.broadcast %122 : vector<16x1xf32> to vector<16x32xf32>
    %124 = arith.mulf %98, %123 : vector<16x32xf32>
    %125 = vector.broadcast %109 : vector<1x32xf32> to vector<16x32xf32>
    %126 = arith.mulf %124, %125 : vector<16x32xf32>
    %127 = arith.truncf %126 : vector<16x32xf32> to vector<16x32xbf16>
    %cst_57 = arith.constant dense<0.000000e+00> : vector<16x96xf32>
    %128 = tpu.matmul %127, %100, %cst_57 {dimension_numbers = #tpu.dot_dimension_numbers<[1], [0], [0], [1], [0, 0, 1, 1], [], []>} : vector<16x32xbf16>, vector<32x96xbf16>, vector<16x96xf32> -> vector<16x96xf32>
    %129 = vector.broadcast %110 : vector<1x96xf32> to vector<16x96xf32>
    %130 = arith.addf %128, %129 : vector<16x96xf32>
    %131 = arith.truncf %130 : vector<16x96xf32> to vector<16x96xbf16>
    %132 = vector.extract_strided_slice %131 {offsets = [0, 0], sizes = [16, 32], strides = [1, 1]} : vector<16x96xbf16> to vector<16x32xbf16>
    %133 = vector.extract_strided_slice %131 {offsets = [0, 32], sizes = [16, 32], strides = [1, 1]} : vector<16x96xbf16> to vector<16x32xbf16>
    %134 = vector.extract_strided_slice %131 {offsets = [0, 64], sizes = [16, 32], strides = [1, 1]} : vector<16x96xbf16> to vector<16x32xbf16>
    %135 = tpu.concatenate %132, %132, %132, %132 in 0 : vector<16x32xbf16>, vector<16x32xbf16>, vector<16x32xbf16>, vector<16x32xbf16> -> vector<64x32xbf16>
    %136 = arith.mulf %135, %2 : vector<64x32xbf16>
    %cst_58 = arith.constant dense<0.000000e+00> : vector<64x16xf32>
    %137 = tpu.matmul %136, %133, %cst_58 {dimension_numbers = #tpu.dot_dimension_numbers<[1], [1], [0], [0], [0, 0, 1, 0], [], []>} : vector<64x32xbf16>, vector<16x32xbf16>, vector<64x16xf32> -> vector<64x16xf32>
    %cst_59 = arith.constant 0.353553385 : f32
    %138 = vector.broadcast %cst_59 : f32 to vector<64x16xf32>
    %139 = arith.mulf %137, %138 : vector<64x16xf32>
    %140 = arith.addf %139, %4 : vector<64x16xf32>
    %cst_60 = arith.constant dense<0xFF800000> : vector<64xf32>
    %141 = vector.multi_reduction <maximumf>, %140, %cst_60 [1] : vector<64x16xf32> to vector<64xf32>
    %142 = vector.shape_cast %141 : vector<64xf32> to vector<64x1xf32>
    %143 = vector.broadcast %142 : vector<64x1xf32> to vector<64x16xf32>
    %144 = arith.subf %140, %143 : vector<64x16xf32>
    %145 = math.exp %144 : vector<64x16xf32>
    %cst_61 = arith.constant dense<0.000000e+00> : vector<64xf32>
    %146 = vector.multi_reduction <add>, %145, %cst_61 [1] : vector<64x16xf32> to vector<64xf32>
    %147 = vector.shape_cast %146 : vector<64xf32> to vector<64x1xf32>
    %148 = tpu.reciprocal %147 {approx = true} : vector<64x1xf32> -> vector<64x1xf32>
    %149 = vector.broadcast %148 : vector<64x1xf32> to vector<64x16xf32>
    %150 = arith.mulf %145, %149 : vector<64x16xf32>
    %151 = arith.truncf %150 : vector<64x16xf32> to vector<64x16xbf16>
    %cst_62 = arith.constant dense<0.000000e+00> : vector<64x32xf32>
    %152 = tpu.matmul %151, %134, %cst_62 {dimension_numbers = #tpu.dot_dimension_numbers<[1], [0], [0], [1], [0, 0, 1, 1], [], []>} : vector<64x16xbf16>, vector<16x32xbf16>, vector<64x32xf32> -> vector<64x32xf32>
    %153 = arith.truncf %152 : vector<64x32xf32> to vector<64x32xbf16>
    %154 = vector.extract_strided_slice %153 {offsets = [0, 0], sizes = [16, 32], strides = [1, 1]} : vector<64x32xbf16> to vector<16x32xbf16>
    %155 = vector.extract_strided_slice %153 {offsets = [16, 0], sizes = [16, 32], strides = [1, 1]} : vector<64x32xbf16> to vector<16x32xbf16>
    %156 = vector.extract_strided_slice %153 {offsets = [32, 0], sizes = [16, 32], strides = [1, 1]} : vector<64x32xbf16> to vector<16x32xbf16>
    %157 = vector.extract_strided_slice %153 {offsets = [48, 0], sizes = [16, 32], strides = [1, 1]} : vector<64x32xbf16> to vector<16x32xbf16>
    %158 = tpu.concatenate %154, %155, %156, %157 in 1 : vector<16x32xbf16>, vector<16x32xbf16>, vector<16x32xbf16>, vector<16x32xbf16> -> vector<16x128xbf16>
    %cst_63 = arith.constant dense<0.000000e+00> : vector<16x32xf32>
    %159 = tpu.matmul %158, %102, %cst_63 {dimension_numbers = #tpu.dot_dimension_numbers<[1], [0], [0], [1], [0, 0, 1, 1], [], []>} : vector<16x128xbf16>, vector<128x32xbf16>, vector<16x32xf32> -> vector<16x32xf32>
    %160 = vector.broadcast %111 : vector<1x32xf32> to vector<16x32xf32>
    %161 = arith.addf %159, %160 : vector<16x32xf32>
    %162 = arith.addf %161, %126 : vector<16x32xf32>
    %163 = arith.mulf %162, %162 : vector<16x32xf32>
    %cst_64 = arith.constant dense<0.000000e+00> : vector<16xf32>
    %164 = vector.multi_reduction <add>, %163, %cst_64 [1] : vector<16x32xf32> to vector<16xf32>
    %165 = vector.shape_cast %164 : vector<16xf32> to vector<16x1xf32>
    %cst_65 = arith.constant 3.200000e+01 : f32
    %166 = vector.broadcast %cst_65 : f32 to vector<16x1xf32>
    %167 = arith.divf %165, %166 : vector<16x1xf32>
    %cst_66 = arith.constant 1.1920929E-7 : f32
    %168 = vector.broadcast %cst_66 : f32 to vector<16x1xf32>
    %169 = arith.addf %167, %168 : vector<16x1xf32>
    %170 = math.rsqrt %169 : vector<16x1xf32>
    %171 = vector.broadcast %170 : vector<16x1xf32> to vector<16x32xf32>
    %172 = arith.mulf %162, %171 : vector<16x32xf32>
    %173 = vector.broadcast %112 : vector<1x32xf32> to vector<16x32xf32>
    %174 = arith.mulf %172, %173 : vector<16x32xf32>
    %175 = arith.truncf %174 : vector<16x32xf32> to vector<16x32xbf16>
    %cst_67 = arith.constant dense<0.000000e+00> : vector<16x64xf32>
    %176 = tpu.matmul %175, %104, %cst_67 {dimension_numbers = #tpu.dot_dimension_numbers<[1], [0], [0], [1], [0, 0, 1, 1], [], []>} : vector<16x32xbf16>, vector<32x64xbf16>, vector<16x64xf32> -> vector<16x64xf32>
    %177 = vector.broadcast %113 : vector<1x64xf32> to vector<16x64xf32>
    %178 = arith.addf %176, %177 : vector<16x64xf32>
    %cst_68 = arith.constant 0.000000e+00 : f32
    %179 = vector.broadcast %cst_68 : f32 to vector<16x64xf32>
    %180 = arith.maximumf %178, %179 : vector<16x64xf32>
    %181 = arith.truncf %180 : vector<16x64xf32> to vector<16x64xbf16>
    %cst_69 = arith.constant dense<0.000000e+00> : vector<16x32xf32>
    %182 = tpu.matmul %181, %106, %cst_69 {dimension_numbers = #tpu.dot_dimension_numbers<[1], [0], [0], [1], [0, 0, 1, 1], [], []>} : vector<16x64xbf16>, vector<64x32xbf16>, vector<16x32xf32> -> vector<16x32xf32>
    %183 = vector.broadcast %114 : vector<1x32xf32> to vector<16x32xf32>
    %184 = arith.addf %182, %183 : vector<16x32xf32>
    %185 = arith.addf %184, %174 : vector<16x32xf32>
    %c2 = arith.constant 2 : index
    %c0_70 = arith.constant 0 : index
    %c0_71 = arith.constant 0 : index
    %186 = vector.load %arg6[%c2, %c0_70, %c0_71] : memref<4x32x96xbf16, #tpu.memory_space<vmem>>, vector<1x32x96xbf16>
    %187 = vector.shape_cast %186 : vector<1x32x96xbf16> to vector<32x96xbf16>
    %c2_72 = arith.constant 2 : index
    %c0_73 = arith.constant 0 : index
    %c0_74 = arith.constant 0 : index
    %188 = vector.load %arg7[%c2_72, %c0_73, %c0_74] : memref<4x128x32xbf16, #tpu.memory_space<vmem>>, vector<1x128x32xbf16>
    %189 = vector.shape_cast %188 : vector<1x128x32xbf16> to vector<128x32xbf16>
    %c2_75 = arith.constant 2 : index
    %c0_76 = arith.constant 0 : index
    %c0_77 = arith.constant 0 : index
    %190 = vector.load %arg8[%c2_75, %c0_76, %c0_77] : memref<4x32x64xbf16, #tpu.memory_space<vmem>>, vector<1x32x64xbf16>
    %191 = vector.shape_cast %190 : vector<1x32x64xbf16> to vector<32x64xbf16>
    %c2_78 = arith.constant 2 : index
    %c0_79 = arith.constant 0 : index
    %c0_80 = arith.constant 0 : index
    %192 = vector.load %arg9[%c2_78, %c0_79, %c0_80] : memref<4x64x32xbf16, #tpu.memory_space<vmem>>, vector<1x64x32xbf16>
    %193 = vector.shape_cast %192 : vector<1x64x32xbf16> to vector<64x32xbf16>
    %c2_81 = arith.constant 2 : index
    %c0_82 = arith.constant 0 : index
    %c0_83 = arith.constant 0 : index
    %194 = vector.load %arg10[%c2_81, %c0_82, %c0_83] : memref<4x8x96xf32, #tpu.memory_space<vmem>>, vector<1x8x96xf32>
    %195 = vector.shape_cast %194 : vector<1x8x96xf32> to vector<8x96xf32>
    %196 = vector.extract_strided_slice %195 {offsets = [0, 0], sizes = [1, 32], strides = [1, 1]} : vector<8x96xf32> to vector<1x32xf32>
    %197 = vector.extract_strided_slice %195 {offsets = [1, 0], sizes = [1, 96], strides = [1, 1]} : vector<8x96xf32> to vector<1x96xf32>
    %198 = vector.extract_strided_slice %195 {offsets = [2, 0], sizes = [1, 32], strides = [1, 1]} : vector<8x96xf32> to vector<1x32xf32>
    %199 = vector.extract_strided_slice %195 {offsets = [3, 0], sizes = [1, 32], strides = [1, 1]} : vector<8x96xf32> to vector<1x32xf32>
    %200 = vector.extract_strided_slice %195 {offsets = [4, 0], sizes = [1, 64], strides = [1, 1]} : vector<8x96xf32> to vector<1x64xf32>
    %201 = vector.extract_strided_slice %195 {offsets = [5, 0], sizes = [1, 32], strides = [1, 1]} : vector<8x96xf32> to vector<1x32xf32>
    %202 = arith.mulf %185, %185 : vector<16x32xf32>
    %cst_84 = arith.constant dense<0.000000e+00> : vector<16xf32>
    %203 = vector.multi_reduction <add>, %202, %cst_84 [1] : vector<16x32xf32> to vector<16xf32>
    %204 = vector.shape_cast %203 : vector<16xf32> to vector<16x1xf32>
    %cst_85 = arith.constant 3.200000e+01 : f32
    %205 = vector.broadcast %cst_85 : f32 to vector<16x1xf32>
    %206 = arith.divf %204, %205 : vector<16x1xf32>
    %cst_86 = arith.constant 1.1920929E-7 : f32
    %207 = vector.broadcast %cst_86 : f32 to vector<16x1xf32>
    %208 = arith.addf %206, %207 : vector<16x1xf32>
    %209 = math.rsqrt %208 : vector<16x1xf32>
    %210 = vector.broadcast %209 : vector<16x1xf32> to vector<16x32xf32>
    %211 = arith.mulf %185, %210 : vector<16x32xf32>
    %212 = vector.broadcast %196 : vector<1x32xf32> to vector<16x32xf32>
    %213 = arith.mulf %211, %212 : vector<16x32xf32>
    %214 = arith.truncf %213 : vector<16x32xf32> to vector<16x32xbf16>
    %215 = vector.extract_strided_slice %187 {offsets = [0, 0], sizes = [32, 32], strides = [1, 1]} : vector<32x96xbf16> to vector<32x32xbf16>
    %cst_87 = arith.constant dense<0.000000e+00> : vector<16x32xf32>
    %216 = tpu.matmul %214, %215, %cst_87 {dimension_numbers = #tpu.dot_dimension_numbers<[1], [0], [0], [1], [0, 0, 1, 1], [], []>} : vector<16x32xbf16>, vector<32x32xbf16>, vector<16x32xf32> -> vector<16x32xf32>
    %217 = vector.extract_strided_slice %197 {offsets = [0, 0], sizes = [1, 32], strides = [1, 1]} : vector<1x96xf32> to vector<1x32xf32>
    %218 = vector.broadcast %217 : vector<1x32xf32> to vector<16x32xf32>
    %219 = arith.addf %216, %218 : vector<16x32xf32>
    %220 = vector.extract_strided_slice %187 {offsets = [0, 32], sizes = [32, 64], strides = [1, 1]} : vector<32x96xbf16> to vector<32x64xbf16>
    %cst_88 = arith.constant dense<0.000000e+00> : vector<32x64xf32>
    %221 = tpu.matmul %1, %220, %cst_88 {dimension_numbers = #tpu.dot_dimension_numbers<[1], [0], [0], [1], [0, 0, 1, 1], [], []>} : vector<32x32xbf16>, vector<32x64xbf16>, vector<32x64xf32> -> vector<32x64xf32>
    %222 = vector.extract_strided_slice %197 {offsets = [0, 32], sizes = [1, 64], strides = [1, 1]} : vector<1x96xf32> to vector<1x64xf32>
    %223 = vector.broadcast %222 : vector<1x64xf32> to vector<32x64xf32>
    %224 = arith.addf %221, %223 : vector<32x64xf32>
    %225 = arith.truncf %224 : vector<32x64xf32> to vector<32x64xbf16>
    %226 = arith.truncf %219 : vector<16x32xf32> to vector<16x32xbf16>
    %227 = vector.extract_strided_slice %225 {offsets = [0, 0], sizes = [32, 32], strides = [1, 1]} : vector<32x64xbf16> to vector<32x32xbf16>
    %228 = vector.extract_strided_slice %225 {offsets = [0, 32], sizes = [32, 32], strides = [1, 1]} : vector<32x64xbf16> to vector<32x32xbf16>
    %229 = tpu.concatenate %226, %226, %226, %226 in 0 : vector<16x32xbf16>, vector<16x32xbf16>, vector<16x32xbf16>, vector<16x32xbf16> -> vector<64x32xbf16>
    %230 = arith.mulf %229, %2 : vector<64x32xbf16>
    %cst_89 = arith.constant dense<0.000000e+00> : vector<64x32xf32>
    %231 = tpu.matmul %230, %227, %cst_89 {dimension_numbers = #tpu.dot_dimension_numbers<[1], [1], [0], [0], [0, 0, 1, 0], [], []>} : vector<64x32xbf16>, vector<32x32xbf16>, vector<64x32xf32> -> vector<64x32xf32>
    %cst_90 = arith.constant 0.353553385 : f32
    %232 = vector.broadcast %cst_90 : f32 to vector<64x32xf32>
    %233 = arith.mulf %231, %232 : vector<64x32xf32>
    %234 = arith.addf %233, %3 : vector<64x32xf32>
    %cst_91 = arith.constant dense<0xFF800000> : vector<64xf32>
    %235 = vector.multi_reduction <maximumf>, %234, %cst_91 [1] : vector<64x32xf32> to vector<64xf32>
    %236 = vector.shape_cast %235 : vector<64xf32> to vector<64x1xf32>
    %237 = vector.broadcast %236 : vector<64x1xf32> to vector<64x32xf32>
    %238 = arith.subf %234, %237 : vector<64x32xf32>
    %239 = math.exp %238 : vector<64x32xf32>
    %cst_92 = arith.constant dense<0.000000e+00> : vector<64xf32>
    %240 = vector.multi_reduction <add>, %239, %cst_92 [1] : vector<64x32xf32> to vector<64xf32>
    %241 = vector.shape_cast %240 : vector<64xf32> to vector<64x1xf32>
    %242 = tpu.reciprocal %241 {approx = true} : vector<64x1xf32> -> vector<64x1xf32>
    %243 = vector.broadcast %242 : vector<64x1xf32> to vector<64x32xf32>
    %244 = arith.mulf %239, %243 : vector<64x32xf32>
    %245 = arith.truncf %244 : vector<64x32xf32> to vector<64x32xbf16>
    %cst_93 = arith.constant dense<0.000000e+00> : vector<64x32xf32>
    %246 = tpu.matmul %245, %228, %cst_93 {dimension_numbers = #tpu.dot_dimension_numbers<[1], [0], [0], [1], [0, 0, 1, 1], [], []>} : vector<64x32xbf16>, vector<32x32xbf16>, vector<64x32xf32> -> vector<64x32xf32>
    %247 = arith.truncf %246 : vector<64x32xf32> to vector<64x32xbf16>
    %248 = vector.extract_strided_slice %247 {offsets = [0, 0], sizes = [16, 32], strides = [1, 1]} : vector<64x32xbf16> to vector<16x32xbf16>
    %249 = vector.extract_strided_slice %247 {offsets = [16, 0], sizes = [16, 32], strides = [1, 1]} : vector<64x32xbf16> to vector<16x32xbf16>
    %250 = vector.extract_strided_slice %247 {offsets = [32, 0], sizes = [16, 32], strides = [1, 1]} : vector<64x32xbf16> to vector<16x32xbf16>
    %251 = vector.extract_strided_slice %247 {offsets = [48, 0], sizes = [16, 32], strides = [1, 1]} : vector<64x32xbf16> to vector<16x32xbf16>
    %252 = tpu.concatenate %248, %249, %250, %251 in 1 : vector<16x32xbf16>, vector<16x32xbf16>, vector<16x32xbf16>, vector<16x32xbf16> -> vector<16x128xbf16>
    %cst_94 = arith.constant dense<0.000000e+00> : vector<16x32xf32>
    %253 = tpu.matmul %252, %189, %cst_94 {dimension_numbers = #tpu.dot_dimension_numbers<[1], [0], [0], [1], [0, 0, 1, 1], [], []>} : vector<16x128xbf16>, vector<128x32xbf16>, vector<16x32xf32> -> vector<16x32xf32>
    %254 = vector.broadcast %198 : vector<1x32xf32> to vector<16x32xf32>
    %255 = arith.addf %253, %254 : vector<16x32xf32>
    %256 = arith.addf %255, %213 : vector<16x32xf32>
    %257 = arith.mulf %256, %256 : vector<16x32xf32>
    %cst_95 = arith.constant dense<0.000000e+00> : vector<16xf32>
    %258 = vector.multi_reduction <add>, %257, %cst_95 [1] : vector<16x32xf32> to vector<16xf32>
    %259 = vector.shape_cast %258 : vector<16xf32> to vector<16x1xf32>
    %cst_96 = arith.constant 3.200000e+01 : f32
    %260 = vector.broadcast %cst_96 : f32 to vector<16x1xf32>
    %261 = arith.divf %259, %260 : vector<16x1xf32>
    %cst_97 = arith.constant 1.1920929E-7 : f32
    %262 = vector.broadcast %cst_97 : f32 to vector<16x1xf32>
    %263 = arith.addf %261, %262 : vector<16x1xf32>
    %264 = math.rsqrt %263 : vector<16x1xf32>
    %265 = vector.broadcast %264 : vector<16x1xf32> to vector<16x32xf32>
    %266 = arith.mulf %256, %265 : vector<16x32xf32>
    %267 = vector.broadcast %199 : vector<1x32xf32> to vector<16x32xf32>
    %268 = arith.mulf %266, %267 : vector<16x32xf32>
    %269 = arith.truncf %268 : vector<16x32xf32> to vector<16x32xbf16>
    %cst_98 = arith.constant dense<0.000000e+00> : vector<16x64xf32>
    %270 = tpu.matmul %269, %191, %cst_98 {dimension_numbers = #tpu.dot_dimension_numbers<[1], [0], [0], [1], [0, 0, 1, 1], [], []>} : vector<16x32xbf16>, vector<32x64xbf16>, vector<16x64xf32> -> vector<16x64xf32>
    %271 = vector.broadcast %200 : vector<1x64xf32> to vector<16x64xf32>
    %272 = arith.addf %270, %271 : vector<16x64xf32>
    %cst_99 = arith.constant 0.000000e+00 : f32
    %273 = vector.broadcast %cst_99 : f32 to vector<16x64xf32>
    %274 = arith.maximumf %272, %273 : vector<16x64xf32>
    %275 = arith.truncf %274 : vector<16x64xf32> to vector<16x64xbf16>
    %cst_100 = arith.constant dense<0.000000e+00> : vector<16x32xf32>
    %276 = tpu.matmul %275, %193, %cst_100 {dimension_numbers = #tpu.dot_dimension_numbers<[1], [0], [0], [1], [0, 0, 1, 1], [], []>} : vector<16x64xbf16>, vector<64x32xbf16>, vector<16x32xf32> -> vector<16x32xf32>
    %277 = vector.broadcast %201 : vector<1x32xf32> to vector<16x32xf32>
    %278 = arith.addf %276, %277 : vector<16x32xf32>
    %279 = arith.addf %278, %268 : vector<16x32xf32>
    %c3 = arith.constant 3 : index
    %c0_101 = arith.constant 0 : index
    %c0_102 = arith.constant 0 : index
    %280 = vector.load %arg6[%c3, %c0_101, %c0_102] : memref<4x32x96xbf16, #tpu.memory_space<vmem>>, vector<1x32x96xbf16>
    %281 = vector.shape_cast %280 : vector<1x32x96xbf16> to vector<32x96xbf16>
    %c3_103 = arith.constant 3 : index
    %c0_104 = arith.constant 0 : index
    %c0_105 = arith.constant 0 : index
    %282 = vector.load %arg7[%c3_103, %c0_104, %c0_105] : memref<4x128x32xbf16, #tpu.memory_space<vmem>>, vector<1x128x32xbf16>
    %283 = vector.shape_cast %282 : vector<1x128x32xbf16> to vector<128x32xbf16>
    %c3_106 = arith.constant 3 : index
    %c0_107 = arith.constant 0 : index
    %c0_108 = arith.constant 0 : index
    %284 = vector.load %arg8[%c3_106, %c0_107, %c0_108] : memref<4x32x64xbf16, #tpu.memory_space<vmem>>, vector<1x32x64xbf16>
    %285 = vector.shape_cast %284 : vector<1x32x64xbf16> to vector<32x64xbf16>
    %c3_109 = arith.constant 3 : index
    %c0_110 = arith.constant 0 : index
    %c0_111 = arith.constant 0 : index
    %286 = vector.load %arg9[%c3_109, %c0_110, %c0_111] : memref<4x64x32xbf16, #tpu.memory_space<vmem>>, vector<1x64x32xbf16>
    %287 = vector.shape_cast %286 : vector<1x64x32xbf16> to vector<64x32xbf16>
    %c3_112 = arith.constant 3 : index
    %c0_113 = arith.constant 0 : index
    %c0_114 = arith.constant 0 : index
    %288 = vector.load %arg10[%c3_112, %c0_113, %c0_114] : memref<4x8x96xf32, #tpu.memory_space<vmem>>, vector<1x8x96xf32>
    %289 = vector.shape_cast %288 : vector<1x8x96xf32> to vector<8x96xf32>
    %290 = vector.extract_strided_slice %289 {offsets = [0, 0], sizes = [1, 32], strides = [1, 1]} : vector<8x96xf32> to vector<1x32xf32>
    %291 = vector.extract_strided_slice %289 {offsets = [1, 0], sizes = [1, 96], strides = [1, 1]} : vector<8x96xf32> to vector<1x96xf32>
    %292 = vector.extract_strided_slice %289 {offsets = [2, 0], sizes = [1, 32], strides = [1, 1]} : vector<8x96xf32> to vector<1x32xf32>
    %293 = vector.extract_strided_slice %289 {offsets = [3, 0], sizes = [1, 32], strides = [1, 1]} : vector<8x96xf32> to vector<1x32xf32>
    %294 = vector.extract_strided_slice %289 {offsets = [4, 0], sizes = [1, 64], strides = [1, 1]} : vector<8x96xf32> to vector<1x64xf32>
    %295 = vector.extract_strided_slice %289 {offsets = [5, 0], sizes = [1, 32], strides = [1, 1]} : vector<8x96xf32> to vector<1x32xf32>
    %296 = arith.mulf %279, %279 : vector<16x32xf32>
    %cst_115 = arith.constant dense<0.000000e+00> : vector<16xf32>
    %297 = vector.multi_reduction <add>, %296, %cst_115 [1] : vector<16x32xf32> to vector<16xf32>
    %298 = vector.shape_cast %297 : vector<16xf32> to vector<16x1xf32>
    %cst_116 = arith.constant 3.200000e+01 : f32
    %299 = vector.broadcast %cst_116 : f32 to vector<16x1xf32>
    %300 = arith.divf %298, %299 : vector<16x1xf32>
    %cst_117 = arith.constant 1.1920929E-7 : f32
    %301 = vector.broadcast %cst_117 : f32 to vector<16x1xf32>
    %302 = arith.addf %300, %301 : vector<16x1xf32>
    %303 = math.rsqrt %302 : vector<16x1xf32>
    %304 = vector.broadcast %303 : vector<16x1xf32> to vector<16x32xf32>
    %305 = arith.mulf %279, %304 : vector<16x32xf32>
    %306 = vector.broadcast %290 : vector<1x32xf32> to vector<16x32xf32>
    %307 = arith.mulf %305, %306 : vector<16x32xf32>
    %308 = arith.truncf %307 : vector<16x32xf32> to vector<16x32xbf16>
    %cst_118 = arith.constant dense<0.000000e+00> : vector<16x96xf32>
    %309 = tpu.matmul %308, %281, %cst_118 {dimension_numbers = #tpu.dot_dimension_numbers<[1], [0], [0], [1], [0, 0, 1, 1], [], []>} : vector<16x32xbf16>, vector<32x96xbf16>, vector<16x96xf32> -> vector<16x96xf32>
    %310 = vector.broadcast %291 : vector<1x96xf32> to vector<16x96xf32>
    %311 = arith.addf %309, %310 : vector<16x96xf32>
    %312 = arith.truncf %311 : vector<16x96xf32> to vector<16x96xbf16>
    %313 = vector.extract_strided_slice %312 {offsets = [0, 0], sizes = [16, 32], strides = [1, 1]} : vector<16x96xbf16> to vector<16x32xbf16>
    %314 = vector.extract_strided_slice %312 {offsets = [0, 32], sizes = [16, 32], strides = [1, 1]} : vector<16x96xbf16> to vector<16x32xbf16>
    %315 = vector.extract_strided_slice %312 {offsets = [0, 64], sizes = [16, 32], strides = [1, 1]} : vector<16x96xbf16> to vector<16x32xbf16>
    %316 = tpu.concatenate %313, %313, %313, %313 in 0 : vector<16x32xbf16>, vector<16x32xbf16>, vector<16x32xbf16>, vector<16x32xbf16> -> vector<64x32xbf16>
    %317 = arith.mulf %316, %2 : vector<64x32xbf16>
    %cst_119 = arith.constant dense<0.000000e+00> : vector<64x16xf32>
    %318 = tpu.matmul %317, %314, %cst_119 {dimension_numbers = #tpu.dot_dimension_numbers<[1], [1], [0], [0], [0, 0, 1, 0], [], []>} : vector<64x32xbf16>, vector<16x32xbf16>, vector<64x16xf32> -> vector<64x16xf32>
    %cst_120 = arith.constant 0.353553385 : f32
    %319 = vector.broadcast %cst_120 : f32 to vector<64x16xf32>
    %320 = arith.mulf %318, %319 : vector<64x16xf32>
    %321 = arith.addf %320, %4 : vector<64x16xf32>
    %cst_121 = arith.constant dense<0xFF800000> : vector<64xf32>
    %322 = vector.multi_reduction <maximumf>, %321, %cst_121 [1] : vector<64x16xf32> to vector<64xf32>
    %323 = vector.shape_cast %322 : vector<64xf32> to vector<64x1xf32>
    %324 = vector.broadcast %323 : vector<64x1xf32> to vector<64x16xf32>
    %325 = arith.subf %321, %324 : vector<64x16xf32>
    %326 = math.exp %325 : vector<64x16xf32>
    %cst_122 = arith.constant dense<0.000000e+00> : vector<64xf32>
    %327 = vector.multi_reduction <add>, %326, %cst_122 [1] : vector<64x16xf32> to vector<64xf32>
    %328 = vector.shape_cast %327 : vector<64xf32> to vector<64x1xf32>
    %329 = tpu.reciprocal %328 {approx = true} : vector<64x1xf32> -> vector<64x1xf32>
    %330 = vector.broadcast %329 : vector<64x1xf32> to vector<64x16xf32>
    %331 = arith.mulf %326, %330 : vector<64x16xf32>
    %332 = arith.truncf %331 : vector<64x16xf32> to vector<64x16xbf16>
    %cst_123 = arith.constant dense<0.000000e+00> : vector<64x32xf32>
    %333 = tpu.matmul %332, %315, %cst_123 {dimension_numbers = #tpu.dot_dimension_numbers<[1], [0], [0], [1], [0, 0, 1, 1], [], []>} : vector<64x16xbf16>, vector<16x32xbf16>, vector<64x32xf32> -> vector<64x32xf32>
    %334 = arith.truncf %333 : vector<64x32xf32> to vector<64x32xbf16>
    %335 = vector.extract_strided_slice %334 {offsets = [0, 0], sizes = [16, 32], strides = [1, 1]} : vector<64x32xbf16> to vector<16x32xbf16>
    %336 = vector.extract_strided_slice %334 {offsets = [16, 0], sizes = [16, 32], strides = [1, 1]} : vector<64x32xbf16> to vector<16x32xbf16>
    %337 = vector.extract_strided_slice %334 {offsets = [32, 0], sizes = [16, 32], strides = [1, 1]} : vector<64x32xbf16> to vector<16x32xbf16>
    %338 = vector.extract_strided_slice %334 {offsets = [48, 0], sizes = [16, 32], strides = [1, 1]} : vector<64x32xbf16> to vector<16x32xbf16>
    %339 = tpu.concatenate %335, %336, %337, %338 in 1 : vector<16x32xbf16>, vector<16x32xbf16>, vector<16x32xbf16>, vector<16x32xbf16> -> vector<16x128xbf16>
    %cst_124 = arith.constant dense<0.000000e+00> : vector<16x32xf32>
    %340 = tpu.matmul %339, %283, %cst_124 {dimension_numbers = #tpu.dot_dimension_numbers<[1], [0], [0], [1], [0, 0, 1, 1], [], []>} : vector<16x128xbf16>, vector<128x32xbf16>, vector<16x32xf32> -> vector<16x32xf32>
    %341 = vector.broadcast %292 : vector<1x32xf32> to vector<16x32xf32>
    %342 = arith.addf %340, %341 : vector<16x32xf32>
    %343 = arith.addf %342, %307 : vector<16x32xf32>
    %344 = arith.mulf %343, %343 : vector<16x32xf32>
    %cst_125 = arith.constant dense<0.000000e+00> : vector<16xf32>
    %345 = vector.multi_reduction <add>, %344, %cst_125 [1] : vector<16x32xf32> to vector<16xf32>
    %346 = vector.shape_cast %345 : vector<16xf32> to vector<16x1xf32>
    %cst_126 = arith.constant 3.200000e+01 : f32
    %347 = vector.broadcast %cst_126 : f32 to vector<16x1xf32>
    %348 = arith.divf %346, %347 : vector<16x1xf32>
    %cst_127 = arith.constant 1.1920929E-7 : f32
    %349 = vector.broadcast %cst_127 : f32 to vector<16x1xf32>
    %350 = arith.addf %348, %349 : vector<16x1xf32>
    %351 = math.rsqrt %350 : vector<16x1xf32>
    %352 = vector.broadcast %351 : vector<16x1xf32> to vector<16x32xf32>
    %353 = arith.mulf %343, %352 : vector<16x32xf32>
    %354 = vector.broadcast %293 : vector<1x32xf32> to vector<16x32xf32>
    %355 = arith.mulf %353, %354 : vector<16x32xf32>
    %356 = arith.truncf %355 : vector<16x32xf32> to vector<16x32xbf16>
    %cst_128 = arith.constant dense<0.000000e+00> : vector<16x64xf32>
    %357 = tpu.matmul %356, %285, %cst_128 {dimension_numbers = #tpu.dot_dimension_numbers<[1], [0], [0], [1], [0, 0, 1, 1], [], []>} : vector<16x32xbf16>, vector<32x64xbf16>, vector<16x64xf32> -> vector<16x64xf32>
    %358 = vector.broadcast %294 : vector<1x64xf32> to vector<16x64xf32>
    %359 = arith.addf %357, %358 : vector<16x64xf32>
    %cst_129 = arith.constant 0.000000e+00 : f32
    %360 = vector.broadcast %cst_129 : f32 to vector<16x64xf32>
    %361 = arith.maximumf %359, %360 : vector<16x64xf32>
    %362 = arith.truncf %361 : vector<16x64xf32> to vector<16x64xbf16>
    %cst_130 = arith.constant dense<0.000000e+00> : vector<16x32xf32>
    %363 = tpu.matmul %362, %287, %cst_130 {dimension_numbers = #tpu.dot_dimension_numbers<[1], [0], [0], [1], [0, 0, 1, 1], [], []>} : vector<16x64xbf16>, vector<64x32xbf16>, vector<16x32xf32> -> vector<16x32xf32>
    %364 = vector.broadcast %295 : vector<1x32xf32> to vector<16x32xf32>
    %365 = arith.addf %363, %364 : vector<16x32xf32>
    %366 = arith.addf %365, %355 : vector<16x32xf32>
    %c0_131 = arith.constant 0 : index
    %c0_132 = arith.constant 0 : index
    %367 = vector.load %arg11[%c0_131, %c0_132] : memref<16x32xf32, #tpu.memory_space<vmem>>, vector<16x32xf32>
    tpu.vector_store %arg11[%c0_131, %c0_132], %366 {strides = array<i32>} : memref<16x32xf32, #tpu.memory_space<vmem>>, vector<16x32xf32>,
    return
  }
  func.func @transform_0(%arg0: i32) -> (i32, i32) {
    %c0_i32 = arith.constant 0 : i32
    %c0_i32_0 = arith.constant 0 : i32
    %c0_i32_1 = arith.constant 0 : i32
    return %c0_i32, %c0_i32_0 : i32, i32
  }
  func.func @transform_1(%arg0: i32) -> (i32, i32) {
    %c0_i32 = arith.constant 0 : i32
    %c0_i32_0 = arith.constant 0 : i32
    %c0_i32_1 = arith.constant 0 : i32
    return %c0_i32, %c0_i32_0 : i32, i32
  }
  func.func @transform_2(%arg0: i32) -> (i32, i32) {
    %c0_i32 = arith.constant 0 : i32
    %c0_i32_0 = arith.constant 0 : i32
    %c0_i32_1 = arith.constant 0 : i32
    return %c0_i32, %c0_i32_0 : i32, i32
  }
  func.func @transform_3(%arg0: i32) -> (i32, i32) {
    %c0_i32 = arith.constant 0 : i32
    %c0_i32_0 = arith.constant 0 : i32
    %c0_i32_1 = arith.constant 0 : i32
    return %c0_i32, %c0_i32_0 : i32, i32
  }
  func.func @transform_4(%arg0: i32) -> (i32, i32) {
    %c0_i32 = arith.constant 0 : i32
    %c0_i32_0 = arith.constant 0 : i32
    %c0_i32_1 = arith.constant 0 : i32
    return %c0_i32, %c0_i32_0 : i32, i32
  }
  func.func @transform_5(%arg0: i32) -> (i32, i32, i32) {
    %c0_i32 = arith.constant 0 : i32
    %c0_i32_0 = arith.constant 0 : i32
    %c0_i32_1 = arith.constant 0 : i32
    %c0_i32_2 = arith.constant 0 : i32
    return %c0_i32, %c0_i32_0, %c0_i32_1 : i32, i32, i32
  }
  func.func @transform_6(%arg0: i32) -> (i32, i32, i32) {
    %c0_i32 = arith.constant 0 : i32
    %c0_i32_0 = arith.constant 0 : i32
    %c0_i32_1 = arith.constant 0 : i32
    %c0_i32_2 = arith.constant 0 : i32
    return %c0_i32, %c0_i32_0, %c0_i32_1 : i32, i32, i32
  }
  func.func @transform_7(%arg0: i32) -> (i32, i32, i32) {
    %c0_i32 = arith.constant 0 : i32
    %c0_i32_0 = arith.constant 0 : i32
    %c0_i32_1 = arith.constant 0 : i32
    %c0_i32_2 = arith.constant 0 : i32
    return %c0_i32, %c0_i32_0, %c0_i32_1 : i32, i32, i32
  }
  func.func @transform_8(%arg0: i32) -> (i32, i32, i32) {
    %c0_i32 = arith.constant 0 : i32
    %c0_i32_0 = arith.constant 0 : i32
    %c0_i32_1 = arith.constant 0 : i32
    %c0_i32_2 = arith.constant 0 : i32
    return %c0_i32, %c0_i32_0, %c0_i32_1 : i32, i32, i32
  }
  func.func @transform_9(%arg0: i32) -> (i32, i32, i32) {
    %c0_i32 = arith.constant 0 : i32
    %c0_i32_0 = arith.constant 0 : i32
    %c0_i32_1 = arith.constant 0 : i32
    %c0_i32_2 = arith.constant 0 : i32
    return %c0_i32, %c0_i32_0, %c0_i32_1 : i32, i32, i32
  }
  func.func @transform_10(%arg0: i32) -> (i32, i32) {
    %c0_i32 = arith.constant 0 : i32
    %c0_i32_0 = arith.constant 0 : i32
    %c0_i32_1 = arith.constant 0 : i32
    return %c0_i32, %c0_i32_0 : i32, i32
  }
}

</mosaic_0001>

<llo_original>
// kernel: tpu_custom_call.1
$region0: #{tpu_custom_call.1}
  #allocation0 [shape = 'u32[]', space=smem, size = 0x4, offset = 0x4, fixed_abs, tag = 'smem constant byte address 0x4 - core index']
  #allocation1 [shape = 'u32[144,128]{1,0:T(1,128)}', space=vmem, size = 0x12000, scoped, tag = 'internal scratch']
  %s0 = inlined_call_operand.vmem [shape: f32[16,32], index: 0, kind: input, shape index: {}]
  %s1 = inlined_call_operand.vmem [shape: bf16[32,32], index: 1, kind: input, shape index: {}]
  %s2 = inlined_call_operand.vmem [shape: bf16[64,32], index: 2, kind: input, shape index: {}]
  %s3 = inlined_call_operand.vmem [shape: f32[64,32], index: 3, kind: input, shape index: {}]
  %s4 = inlined_call_operand.vmem [shape: f32[64,16], index: 4, kind: input, shape index: {}]
  %s5 = inlined_call_operand.vmem [shape: bf16[4,32,96], index: 5, kind: input, shape index: {}]
  %s6 = inlined_call_operand.vmem [shape: bf16[4,128,32], index: 6, kind: input, shape index: {}]
  %s7 = inlined_call_operand.vmem [shape: bf16[4,32,64], index: 7, kind: input, shape index: {}]
  %s8 = inlined_call_operand.vmem [shape: bf16[4,64,32], index: 8, kind: input, shape index: {}]
  %s9 = inlined_call_operand.vmem [shape: f32[4,8,96], index: 9, kind: input, shape index: {}]
  %s10 = inlined_call_operand.hbm [shape: f32[16,32], index: 10, kind: output, shape index: {}]
  %s11 = sld [smem:[#allocation0]]
  $region50: #{tpu_custom_call.1} parent=0
    _
  %s13 = ssub.s32 1, %s11
  %s14 = scalar_select 0, %s13, %s11
  $region1: #{tpu_custom_call.1} parent=0
    #allocation2 [shape = 'u8[8192]{0}', space=vmem, size = 0x2000, scoped, tag = 'output window, operand 0, single buffered']
    #allocation3 [shape = 's32[1]{0}', space=sflag, size = 0x4, scoped, tag = 'scoped memory for tpu_custom_call.1']
    %15 = vsyncpa [#allocation3], 0
    // Predicated region
    $region2: #{tpu_custom_call.1} parent=1 // pred_check
      _
    $region3: #{tpu_custom_call.1} parent=1 // pred_check_branch
      %17 = sbr.rel (0) target = $region5
    $region4: #{tpu_custom_call.1} parent=1 // pred_region
      _
    $region5: #{tpu_custom_call.1} parent=1 // pred_fallthru
      _
    // Predicated region
    $region6: #{tpu_custom_call.1} parent=1 // pred_check
      _
    $region7: #{tpu_custom_call.1} parent=1 // pred_check_branch
      %19 = sbr.rel (0) target = $region9
    $region8: #{tpu_custom_call.1} parent=1 // pred_region
      _
    $region9: #{tpu_custom_call.1} parent=1 // pred_fallthru
      _
    // Predicated region
    $region10: #{tpu_custom_call.1} parent=1 // pred_check
      _
    $region11: #{tpu_custom_call.1} parent=1 // pred_check_branch
      %21 = sbr.rel (0) target = $region13
    $region12: #{tpu_custom_call.1} parent=1 // pred_region
      _
    $region13: #{tpu_custom_call.1} parent=1 // pred_fallthru
      _
    // Predicated region
    $region14: #{tpu_custom_call.1} parent=1 // pred_check
      _
    $region15: #{tpu_custom_call.1} parent=1 // pred_check_branch
      %23 = sbr.rel (0) target = $region17
    $region16: #{tpu_custom_call.1} parent=1 // pred_region
      _
    $region17: #{tpu_custom_call.1} parent=1 // pred_fallthru
      _
    // Predicated region
    $region18: #{tpu_custom_call.1} parent=1 // pred_check
      _
    $region19: #{tpu_custom_call.1} parent=1 // pred_check_branch
      %25 = sbr.rel (0) target = $region21
    $region20: #{tpu_custom_call.1} parent=1 // pred_region
      _
    $region21: #{tpu_custom_call.1} parent=1 // pred_fallthru
      _
    // Predicated region
    $region22: #{tpu_custom_call.1} parent=1 // pred_check
      _
    $region23: #{tpu_custom_call.1} parent=1 // pred_check_branch
      %27 = sbr.rel (0) target = $region25
    $region24: #{tpu_custom_call.1} parent=1 // pred_region
      _
    $region25: #{tpu_custom_call.1} parent=1 // pred_fallthru
      _
    // Predicated region
    $region26: #{tpu_custom_call.1} parent=1 // pred_check
      _
    $region27: #{tpu_custom_call.1} parent=1 // pred_check_branch
      %29 = sbr.rel (0) target = $region29
    $region28: #{tpu_custom_call.1} parent=1 // pred_region
      _
    $region29: #{tpu_custom_call.1} parent=1 // pred_fallthru
      _
    // Predicated region
    $region30: #{tpu_custom_call.1} parent=1 // pred_check
      _
    $region31: #{tpu_custom_call.1} parent=1 // pred_check_branch
      %31 = sbr.rel (0) target = $region33
    $region32: #{tpu_custom_call.1} parent=1 // pred_region
      _
    $region33: #{tpu_custom_call.1} parent=1 // pred_fallthru
      _
    // Predicated region
    $region34: #{tpu_custom_call.1} parent=1 // pred_check
      _
    $region35: #{tpu_custom_call.1} parent=1 // pred_check_branch
      %33 = sbr.rel (0) target = $region37
    $region36: #{tpu_custom_call.1} parent=1 // pred_region
      _
    $region37: #{tpu_custom_call.1} parent=1 // pred_fallthru
      _
    // Predicated region
    $region38: #{tpu_custom_call.1} parent=1 // pred_check
      _
    $region39: #{tpu_custom_call.1} parent=1 // pred_check_branch
      %35 = sbr.rel (0) target = $region41
    $region40: #{tpu_custom_call.1} parent=1 // pred_region
      _
    $region41: #{tpu_custom_call.1} parent=1 // pred_fallthru
      _
    %v37 = vld [vmem:[%s0] sm:$0xff]
    %v38 = vld [vmem:[%s0 + $0x8] sm:$0xff]
    %v39 = vld [vmem:[%s1] sm:$0xf]
    %v40 = vld [vmem:[%s1 + $0x4] sm:$0xf]
    %v41 = vld [vmem:[%s1 + $0x8] sm:$0xf]
    %v42 = vld [vmem:[%s1 + $0xc] sm:$0xf]
    %v43 = vld [vmem:[%s2] sm:$0xf]
    %v44 = vld [vmem:[%s2 + $0x4] sm:$0xf]
    %v45 = vld [vmem:[%s2 + $0x8] sm:$0xf]
    %v46 = vld [vmem:[%s2 + $0xc] sm:$0xf]
    %v47 = vld [vmem:[%s2 + $0x10] sm:$0xf]
    %v48 = vld [vmem:[%s2 + $0x14] sm:$0xf]
    %v49 = vld [vmem:[%s2 + $0x18] sm:$0xf]
    %v50 = vld [vmem:[%s2 + $0x1c] sm:$0xf]
    %v51 = vld [vmem:[%s3] sm:$0xff]
    %v52 = vld [vmem:[%s3 + $0x8] sm:$0xff]
    %v53 = vld [vmem:[%s3 + $0x10] sm:$0xff]
    %v54 = vld [vmem:[%s3 + $0x18] sm:$0xff]
    %v55 = vld [vmem:[%s3 + $0x20] sm:$0xff]
    %v56 = vld [vmem:[%s3 + $0x28] sm:$0xff]
    %v57 = vld [vmem:[%s3 + $0x30] sm:$0xff]
    %v58 = vld [vmem:[%s3 + $0x38] sm:$0xff]
    %v59 = vld [vmem:[%s4] sm:$0xff]
    %v60 = vld [vmem:[%s4 + $0x8] sm:$0xff]
    %v61 = vld [vmem:[%s4 + $0x10] sm:$0xff]
    %v62 = vld [vmem:[%s4 + $0x18] sm:$0xff]
    %v63 = vld [vmem:[%s4 + $0x20] sm:$0xff]
    %v64 = vld [vmem:[%s4 + $0x28] sm:$0xff]
    %v65 = vld [vmem:[%s4 + $0x30] sm:$0xff]
    %v66 = vld [vmem:[%s4 + $0x38] sm:$0xff]
    %v67 = vld [vmem:[%s5] sm:$0xf]
    %v68 = vld [vmem:[%s5 + $0x4] sm:$0xf]
    %v69 = vld [vmem:[%s5 + $0x8] sm:$0xf]
    %v70 = vld [vmem:[%s5 + $0xc] sm:$0xf]
    %v71 = vld [vmem:[%s6] sm:$0xf]
    %v72 = vld [vmem:[%s6 + $0x4] sm:$0xf]
    %v73 = vld [vmem:[%s6 + $0x8] sm:$0xf]
    %v74 = vld [vmem:[%s6 + $0xc] sm:$0xf]
    %v75 = vld [vmem:[%s6 + $0x10] sm:$0xf]
    %v76 = vld [vmem:[%s6 + $0x14] sm:$0xf]
    %v77 = vld [vmem:[%s6 + $0x18] sm:$0xf]
    %v78 = vld [vmem:[%s6 + $0x1c] sm:$0xf]
    %v79 = vld [vmem:[%s6 + $0x20] sm:$0xf]
    %v80 = vld [vmem:[%s6 + $0x24] sm:$0xf]
    %v81 = vld [vmem:[%s6 + $0x28] sm:$0xf]
    %v82 = vld [vmem:[%s6 + $0x2c] sm:$0xf]
    %v83 = vld [vmem:[%s6 + $0x30] sm:$0xf]
    %v84 = vld [vmem:[%s6 + $0x34] sm:$0xf]
    %v85 = vld [vmem:[%s6 + $0x38] sm:$0xf]
    %v86 = vld [vmem:[%s6 + $0x3c] sm:$0xf]
    %v87 = vld [vmem:[%s7] sm:$0xf]
    %v88 = vld [vmem:[%s7 + $0x4] sm:$0xf]
    %v89 = vld [vmem:[%s7 + $0x8] sm:$0xf]
    %v90 = vld [vmem:[%s7 + $0xc] sm:$0xf]
    %v91 = vld [vmem:[%s8] sm:$0xf]
    %v92 = vld [vmem:[%s8 + $0x4] sm:$0xf]
    %v93 = vld [vmem:[%s8 + $0x8] sm:$0xf]
    %v94 = vld [vmem:[%s8 + $0xc] sm:$0xf]
    %v95 = vld [vmem:[%s8 + $0x10] sm:$0xf]
    %v96 = vld [vmem:[%s8 + $0x14] sm:$0xf]
    %v97 = vld [vmem:[%s8 + $0x18] sm:$0xf]
    %v98 = vld [vmem:[%s8 + $0x1c] sm:$0xf]
    %v99 = vld [vmem:[%s9] sm:$0xff]
    %v100 = vmul.f32 %v37, %v37
    %v101 = vmul.f32 %v38, %v38
    %vm102 = vcmask 261120
    %v103 = vsel %vm102, %v100, 0.0
    %104 = vadd.xlane.f32.xlu0 %v103
    %v105 = vpop.xlane.xlu0 %104
    %v106 = vsel %vm102, %v101, 0.0
    %107 = vadd.xlane.f32.xlu0 %v106
    %v108 = vpop.xlane.xlu0 %107
    %v109 = vrcp.pop 32.0
    %v110 = vmul.f32 %v105, %v109
    %v111 = vmul.f32 %v108, %v109
    %v112 = vadd.f32 %v110, 1.1920929e-07
    %v113 = vadd.f32 %v111, 1.1920929e-07
    %v114 = vrsqrt.pop %v112
    %v115 = vrsqrt.pop %v113
    %v116 = vmul.f32 %v37, %v114
    %v117 = vmul.f32 %v38, %v115
    %v118 = vlaneseq
    %v119 = vshrl.u32 %v118, 7
    %v120 = vsub.s32 0, %v119
    %v121 = vrot.slane %v99, %v120
    %v122 = vmul.f32 %v116, %v121
    %v123 = vmul.f32 %v117, %v121
    %v124 = vpack.c.bf16 %v123, %v122
    %v125 = vlaneseq
    %v126 = vshrl.u32 %v125, 7
    %v127 = vsub.s32 1, %v126
    %v128 = vrot.slane %v99, %v127
    %v133 = vunpack.c.l.b16 %v67
    %v134 = vunpack.c.l.b16 %v68
    %v135 = vunpack.c.l.b16 %v69
    %v136 = vunpack.c.l.b16 %v70
    %v137 = vpack.c.b16 %v134, %v133
    %v138 = vpack.c.b16 %v136, %v135
    %v142 = vsel %vm102, %v124, 0
    %144 = vmatprep.subr.bf16.mxu0 0
    %145 = vmatpush1.bf16.msra.mxu0 %v137
    %146 = vmatprep.subr.bf16.mxu0 0
    %147 = vmatpush1.bf16.msra.mxu0 %v138
    %148 = vmatprep.subr.bf16.mxu0 0
    %149 = vmatpush1.bf16.msra.mxu0 0
    %150 = vmatprep.subr.bf16.mxu0 0
    %151 = vmatpush1.bf16.msra.mxu0 0
    %152 = vmatprep.subr.bf16.mxu0 0
    %153 = vmatpush1.bf16.msra.mxu0 0
    %154 = vmatprep.subr.bf16.mxu0 0
    %155 = vmatpush1.bf16.msra.mxu0 0
    %156 = vmatprep.subr.bf16.mxu0 0
    %157 = vmatpush1.bf16.msra.mxu0 0
    %158 = vmatprep.subr.bf16.mxu0 0
    %159 = vmatpush1.bf16.msra.mxu0 0
    %160 = vmatprep.subr.bf16.mxu0 0
    %161 = vmatpush1.bf16.msra.mxu0 0
    %162 = vmatprep.subr.bf16.mxu0 0
    %163 = vmatpush1.bf16.msra.mxu0 0
    %164 = vmatprep.subr.bf16.mxu0 0
    %165 = vmatpush1.bf16.msra.mxu0 0
    %166 = vmatprep.subr.bf16.mxu0 0
    %167 = vmatpush1.bf16.msra.mxu0 0
    %168 = vmatprep.subr.bf16.mxu0 0
    %169 = vmatpush1.bf16.msra.mxu0 0
    %170 = vmatprep.subr.bf16.mxu0 0
    %171 = vmatpush1.bf16.msra.mxu0 0
    %172 = vmatprep.subr.bf16.mxu0 0
    %173 = vmatpush1.bf16.msra.mxu0 0
    %174 = vmatprep.subr.bf16.mxu0 0
    %175 = vmatpush1.bf16.msra.mxu0 0
    %176 = vmatprep.mubr.bf16.mxu0 0
    %177 = vmatmul.mubr.bf16.gmra.mrb[0].mxu0 %v142
    %v178 = vpop.f32.mrb[0].mxu0
    %v179 = vadd.f32 %v128, %v178
    %v180 = vpop.f32.mrb[0].mxu0
    %v181 = vpop.f32.mrb[0].mxu0
    %v182 = vadd.f32 %v128, %v181
    %v183 = vpop.f32.mrb[0].mxu0
    %184 = vdwg.mxu0
    %v189 = vunpack.c.l.b16 %v39
    %v190 = vunpack.c.l.b16 %v40
    %v191 = vunpack.c.l.b16 %v41
    %v192 = vunpack.c.l.b16 %v42
    %v193 = vpack.c.b16 %v190, %v189
    %v194 = vpack.c.b16 %v192, %v191
    %195 = vrot.lane.b32.xlu0 %v137, 96
    %v196 = vpop.permute.xlu0 %195
    %197 = vrot.lane.b32.xlu0 %v138, 96
    %v198 = vpop.permute.xlu0 %197
    %202 = vrot.lane.b32.xlu0 %v128, 96
    %v203 = vpop.permute.xlu0 %202
    %v206 = vsel %vm102, %v193, 0
    %v209 = vsel %vm102, %v194, 0
    %211 = vmatprep.subr.bf16.mxu0 0
    %212 = vmatpush1.bf16.msra.mxu0 %v196
    %213 = vmatprep.subr.bf16.mxu0 0
    %214 = vmatpush1.bf16.msra.mxu0 %v198
    %215 = vmatprep.subr.bf16.mxu0 0
    %216 = vmatpush1.bf16.msra.mxu0 0
    %217 = vmatprep.subr.bf16.mxu0 0
    %218 = vmatpush1.bf16.msra.mxu0 0
    %219 = vmatprep.subr.bf16.mxu0 0
    %220 = vmatpush1.bf16.msra.mxu0 0
    %221 = vmatprep.subr.bf16.mxu0 0
    %222 = vmatpush1.bf16.msra.mxu0 0
    %223 = vmatprep.subr.bf16.mxu0 0
    %224 = vmatpush1.bf16.msra.mxu0 0
    %225 = vmatprep.subr.bf16.mxu0 0
    %226 = vmatpush1.bf16.msra.mxu0 0
    %227 = vmatprep.subr.bf16.mxu0 0
    %228 = vmatpush1.bf16.msra.mxu0 0
    %229 = vmatprep.subr.bf16.mxu0 0
    %230 = vmatpush1.bf16.msra.mxu0 0
    %231 = vmatprep.subr.bf16.mxu0 0
    %232 = vmatpush1.bf16.msra.mxu0 0
    %233 = vmatprep.subr.bf16.mxu0 0
    %234 = vmatpush1.bf16.msra.mxu0 0
    %235 = vmatprep.subr.bf16.mxu0 0
    %236 = vmatpush1.bf16.msra.mxu0 0
    %237 = vmatprep.subr.bf16.mxu0 0
    %238 = vmatpush1.bf16.msra.mxu0 0
    %239 = vmatprep.subr.bf16.mxu0 0
    %240 = vmatpush1.bf16.msra.mxu0 0
    %241 = vmatprep.subr.bf16.mxu0 0
    %242 = vmatpush1.bf16.msra.mxu0 0
    %243 = vmatprep.mubr.bf16.mxu0 0
    %244 = vmatmul.mubr.bf16.gmra.mrb[0].mxu0 %v206
    %v245 = vpop.f32.mrb[0].mxu0
    %v246 = vadd.f32 %v203, %v245
    %v247 = vpop.f32.mrb[0].mxu0
    %v248 = vpop.f32.mrb[0].mxu0
    %v249 = vadd.f32 %v203, %v248
    %v250 = vpop.f32.mrb[0].mxu0
    %251 = vmatprep.mubr.bf16.mxu0 0
    %252 = vmatmul.mubr.bf16.gmra.mrb[0].mxu0 %v209
    %v253 = vpop.f32.mrb[0].mxu0
    %v254 = vadd.f32 %v203, %v253
    %v255 = vpop.f32.mrb[0].mxu0
    %v256 = vpop.f32.mrb[0].mxu0
    %v257 = vadd.f32 %v203, %v256
    %v258 = vpop.f32.mrb[0].mxu0
    %259 = vdwg.mxu0
    %v260 = vpack.c.bf16 %v249, %v246
    %v261 = vpack.c.bf16 %v257, %v254
    %v262 = vpack.c.bf16 %v182, %v179
    %v271 = vunpack.c.l.b16 %v43
    %v272 = vunpack.c.l.b16 %v44
    %v273 = vunpack.c.l.b16 %v45
    %v274 = vunpack.c.l.b16 %v46
    %v275 = vunpack.c.l.b16 %v47
    %v276 = vunpack.c.l.b16 %v48
    %v277 = vunpack.c.l.b16 %v49
    %v278 = vunpack.c.l.b16 %v50
    %v279 = vpack.c.b16 %v272, %v271
    %v280 = vpack.c.b16 %v274, %v273
    %v281 = vpack.c.b16 %v276, %v275
    %v282 = vpack.c.b16 %v278, %v277
    %v287 = vmul.bf16 %v262, %v279
    %v288 = vmul.bf16 %v262, %v280
    %v289 = vmul.bf16 %v262, %v281
    %v290 = vmul.bf16 %v262, %v282
    %v292 = vsel %vm102, %v287, 0
    %v295 = vsel %vm102, %v288, 0
    %v298 = vsel %vm102, %v289, 0
    %v301 = vsel %vm102, %v290, 0
    %v304 = vsel %vm102, %v260, 0
    %v307 = vsel %vm102, %v261, 0
    %309 = vmatprep.subr.bf16.mxu0 0
    %310 = vmatpush1.bf16.xpose.msra.mxu0 %v304
    %311 = vmatprep.subr.bf16.mxu0 0
    %312 = vmatpush1.bf16.xpose.msra.mxu0 %v307
    %313 = vmatprep.subr.bf16.mxu0 0
    %314 = vmatpush1.bf16.xpose.msra.mxu0 0
    %315 = vmatprep.subr.bf16.mxu0 0
    %316 = vmatpush1.bf16.xpose.msra.mxu0 0
    %317 = vmatprep.subr.bf16.mxu0 0
    %318 = vmatpush1.bf16.xpose.msra.mxu0 0
    %319 = vmatprep.subr.bf16.mxu0 0
    %320 = vmatpush1.bf16.xpose.msra.mxu0 0
    %321 = vmatprep.subr.bf16.mxu0 0
    %322 = vmatpush1.bf16.xpose.msra.mxu0 0
    %323 = vmatprep.subr.bf16.mxu0 0
    %324 = vmatpush1.bf16.xpose.msra.mxu0 0
    %325 = vmatprep.subr.bf16.mxu0 0
    %326 = vmatpush1.bf16.xpose.msra.mxu0 0
    %327 = vmatprep.subr.bf16.mxu0 0
    %328 = vmatpush1.bf16.xpose.msra.mxu0 0
    %329 = vmatprep.subr.bf16.mxu0 0
    %330 = vmatpush1.bf16.xpose.msra.mxu0 0
    %331 = vmatprep.subr.bf16.mxu0 0
    %332 = vmatpush1.bf16.xpose.msra.mxu0 0
    %333 = vmatprep.subr.bf16.mxu0 0
    %334 = vmatpush1.bf16.xpose.msra.mxu0 0
    %335 = vmatprep.subr.bf16.mxu0 0
    %336 = vmatpush1.bf16.xpose.msra.mxu0 0
    %337 = vmatprep.subr.bf16.mxu0 0
    %338 = vmatpush1.bf16.xpose.msra.mxu0 0
    %339 = vmatprep.subr.bf16.mxu0 0
    %340 = vmatpush1.bf16.xpose.msra.mxu0 0
    %341 = vmatprep.mubr.bf16.mxu0 0
    %342 = vmatmul.mubr.bf16.gmra.mrb[0].mxu0 %v292
    %v343 = vpop.f32.mrb[0].mxu0
    %v344 = vadd.f32 0.0, %v343
    %v345 = vpop.f32.mrb[0].mxu0
    %v346 = vpop.f32.mrb[0].mxu0
    %v347 = vadd.f32 0.0, %v346
    %v348 = vpop.f32.mrb[0].mxu0
    %349 = vmatprep.mubr.bf16.mxu0 0
    %350 = vmatmul.mubr.bf16.gmra.mrb[0].mxu0 %v295
    %v351 = vpop.f32.mrb[0].mxu0
    %v352 = vadd.f32 0.0, %v351
    %v353 = vpop.f32.mrb[0].mxu0
    %v354 = vpop.f32.mrb[0].mxu0
    %v355 = vadd.f32 0.0, %v354
    %v356 = vpop.f32.mrb[0].mxu0
    %357 = vmatprep.mubr.bf16.mxu0 0
    %358 = vmatmul.mubr.bf16.gmra.mrb[0].mxu0 %v298
    %v359 = vpop.f32.mrb[0].mxu0
    %v360 = vadd.f32 0.0, %v359
    %v361 = vpop.f32.mrb[0].mxu0
    %v362 = vpop.f32.mrb[0].mxu0
    %v363 = vadd.f32 0.0, %v362
    %v364 = vpop.f32.mrb[0].mxu0
    %365 = vmatprep.mubr.bf16.mxu0 0
    %366 = vmatmul.mubr.bf16.gmra.mrb[0].mxu0 %v301
    %v367 = vpop.f32.mrb[0].mxu0
    %v368 = vadd.f32 0.0, %v367
    %v369 = vpop.f32.mrb[0].mxu0
    %v370 = vpop.f32.mrb[0].mxu0
    %v371 = vadd.f32 0.0, %v370
    %v372 = vpop.f32.mrb[0].mxu0
    %373 = vdwg.mxu0
    %v374 = vmul.f32 %v344, 0.35355338
    %v375 = vmul.f32 %v347, 0.35355338
    %v376 = vmul.f32 %v352, 0.35355338
    %v377 = vmul.f32 %v355, 0.35355338
    %v378 = vmul.f32 %v360, 0.35355338
    %v379 = vmul.f32 %v363, 0.35355338
    %v380 = vmul.f32 %v368, 0.35355338
    %v381 = vmul.f32 %v371, 0.35355338
    %v382 = vadd.f32 %v374, %v51
    %v383 = vadd.f32 %v375, %v52
    %v384 = vadd.f32 %v376, %v53
    %v385 = vadd.f32 %v377, %v54
    %v386 = vadd.f32 %v378, %v55
    %v387 = vadd.f32 %v379, %v56
    %v388 = vadd.f32 %v380, %v57
    %v389 = vadd.f32 %v381, %v58
    %v390 = vsel %vm102, %v382, -inf
    %391 = vmax.xlane.f32.xlu0 %v390
    %v392 = vpop.xlane.xlu0 %391
    %v393 = vsel %vm102, %v383, -inf
    %394 = vmax.xlane.f32.xlu0 %v393
    %v395 = vpop.xlane.xlu0 %394
    %v396 = vsel %vm102, %v384, -inf
    %397 = vmax.xlane.f32.xlu0 %v396
    %v398 = vpop.xlane.xlu0 %397
    %v399 = vsel %vm102, %v385, -inf
    %400 = vmax.xlane.f32.xlu0 %v399
    %v401 = vpop.xlane.xlu0 %400
    %v402 = vsel %vm102, %v386, -inf
    %403 = vmax.xlane.f32.xlu0 %v402
    %v404 = vpop.xlane.xlu0 %403
    %v405 = vsel %vm102, %v387, -inf
    %406 = vmax.xlane.f32.xlu0 %v405
    %v407 = vpop.xlane.xlu0 %406
    %v408 = vsel %vm102, %v388, -inf
    %409 = vmax.xlane.f32.xlu0 %v408
    %v410 = vpop.xlane.xlu0 %409
    %v411 = vsel %vm102, %v389, -inf
    %412 = vmax.xlane.f32.xlu0 %v411
    %v413 = vpop.xlane.xlu0 %412
    %v414 = vsub.f32 %v382, %v392
    %v415 = vsub.f32 %v383, %v395
    %v416 = vsub.f32 %v384, %v398
    %v417 = vsub.f32 %v385, %v401
    %v418 = vsub.f32 %v386, %v404
    %v419 = vsub.f32 %v387, %v407
    %v420 = vsub.f32 %v388, %v410
    %v421 = vsub.f32 %v389, %v413
    %v422 = vmul.f32 %v414, 1.442695
    %v423 = vpow.pop %v422
    %v424 = vmul.f32 %v415, 1.442695
    %v425 = vpow.pop %v424
    %v426 = vmul.f32 %v416, 1.442695
    %v427 = vpow.pop %v426
    %v428 = vmul.f32 %v417, 1.442695
    %v429 = vpow.pop %v428
    %v430 = vmul.f32 %v418, 1.442695
    %v431 = vpow.pop %v430
    %v432 = vmul.f32 %v419, 1.442695
    %v433 = vpow.pop %v432
    %v434 = vmul.f32 %v420, 1.442695
    %v435 = vpow.pop %v434
    %v436 = vmul.f32 %v421, 1.442695
    %v437 = vpow.pop %v436
    %v438 = vsel %vm102, %v423, 0.0
    %439 = vadd.xlane.f32.xlu0 %v438
    %v440 = vpop.xlane.xlu0 %439
    %v441 = vsel %vm102, %v425, 0.0
    %442 = vadd.xlane.f32.xlu0 %v441
    %v443 = vpop.xlane.xlu0 %442
    %v444 = vsel %vm102, %v427, 0.0
    %445 = vadd.xlane.f32.xlu0 %v444
    %v446 = vpop.xlane.xlu0 %445
    %v447 = vsel %vm102, %v429, 0.0
    %448 = vadd.xlane.f32.xlu0 %v447
    %v449 = vpop.xlane.xlu0 %448
    %v450 = vsel %vm102, %v431, 0.0
    %451 = vadd.xlane.f32.xlu0 %v450
    %v452 = vpop.xlane.xlu0 %451
    %v453 = vsel %vm102, %v433, 0.0
    %454 = vadd.xlane.f32.xlu0 %v453
    %v455 = vpop.xlane.xlu0 %454
    %v456 = vsel %vm102, %v435, 0.0
    %457 = vadd.xlane.f32.xlu0 %v456
    %v458 = vpop.xlane.xlu0 %457
    %v459 = vsel %vm102, %v437, 0.0
    %460 = vadd.xlane.f32.xlu0 %v459
    %v461 = vpop.xlane.xlu0 %460
    %v462 = vrcp.pop %v440
    %v463 = vrcp.pop %v443
    %v464 = vrcp.pop %v446
    %v465 = vrcp.pop %v449
    %v466 = vrcp.pop %v452
    %v467 = vrcp.pop %v455
    %v468 = vrcp.pop %v458
    %v469 = vrcp.pop %v461
    %v470 = vmul.f32 %v423, %v462
    %v471 = vmul.f32 %v425, %v463
    %v472 = vmul.f32 %v427, %v464
    %v473 = vmul.f32 %v429, %v465
    %v474 = vmul.f32 %v431, %v466
    %v475 = vmul.f32 %v433, %v467
    %v476 = vmul.f32 %v435, %v468
    %v477 = vmul.f32 %v437, %v469
    %v478 = vpack.c.bf16 %v471, %v470
    %v479 = vpack.c.bf16 %v473, %v472
    %v480 = vpack.c.bf16 %v475, %v474
    %v481 = vpack.c.bf16 %v477, %v476
    %484 = vrot.lane.b32.xlu0 %v260, 96
    %v485 = vpop.permute.xlu0 %484
    %486 = vrot.lane.b32.xlu0 %v261, 96
    %v487 = vpop.permute.xlu0 %486
    %v491 = vsel %vm102, %v478, 0
    %v494 = vsel %vm102, %v479, 0
    %v497 = vsel %vm102, %v480, 0
    %v500 = vsel %vm102, %v481, 0
    %502 = vmatprep.subr.bf16.mxu0 0
    %503 = vmatpush1.bf16.msra.mxu0 %v485
    %504 = vmatprep.subr.bf16.mxu0 0
    %505 = vmatpush1.bf16.msra.mxu0 %v487
    %506 = vmatprep.subr.bf16.mxu0 0
    %507 = vmatpush1.bf16.msra.mxu0 0
    %508 = vmatprep.subr.bf16.mxu0 0
    %509 = vmatpush1.bf16.msra.mxu0 0
    %510 = vmatprep.subr.bf16.mxu0 0
    %511 = vmatpush1.bf16.msra.mxu0 0
    %512 = vmatprep.subr.bf16.mxu0 0
    %513 = vmatpush1.bf16.msra.mxu0 0
    %514 = vmatprep.subr.bf16.mxu0 0
    %515 = vmatpush1.bf16.msra.mxu0 0
    %516 = vmatprep.subr.bf16.mxu0 0
    %517 = vmatpush1.bf16.msra.mxu0 0
    %518 = vmatprep.subr.bf16.mxu0 0
    %519 = vmatpush1.bf16.msra.mxu0 0
    %520 = vmatprep.subr.bf16.mxu0 0
    %521 = vmatpush1.bf16.msra.mxu0 0
    %522 = vmatprep.subr.bf16.mxu0 0
    %523 = vmatpush1.bf16.msra.mxu0 0
    %524 = vmatprep.subr.bf16.mxu0 0
    %525 = vmatpush1.bf16.msra.mxu0 0
    %526 = vmatprep.subr.bf16.mxu0 0
    %527 = vmatpush1.bf16.msra.mxu0 0
    %528 = vmatprep.subr.bf16.mxu0 0
    %529 = vmatpush1.bf16.msra.mxu0 0
    %530 = vmatprep.subr.bf16.mxu0 0
    %531 = vmatpush1.bf16.msra.mxu0 0
    %532 = vmatprep.subr.bf16.mxu0 0
    %533 = vmatpush1.bf16.msra.mxu0 0
    %534 = vmatprep.mubr.bf16.mxu0 0
    %535 = vmatmul.mubr.bf16.gmra.mrb[0].mxu0 %v491
    %v536 = vpop.f32.mrb[0].mxu0
    %v537 = vadd.f32 0.0, %v536
    %v538 = vpop.f32.mrb[0].mxu0
    %v539 = vpop.f32.mrb[0].mxu0
    %v540 = vadd.f32 0.0, %v539
    %v541 = vpop.f32.mrb[0].mxu0
    %542 = vmatprep.mubr.bf16.mxu0 0
    %543 = vmatmul.mubr.bf16.gmra.mrb[0].mxu0 %v494
    %v544 = vpop.f32.mrb[0].mxu0
    %v545 = vadd.f32 0.0, %v544
    %v546 = vpop.f32.mrb[0].mxu0
    %v547 = vpop.f32.mrb[0].mxu0
    %v548 = vadd.f32 0.0, %v547
    %v549 = vpop.f32.mrb[0].mxu0
    %550 = vmatprep.mubr.bf16.mxu0 0
    %551 = vmatmul.mubr.bf16.gmra.mrb[0].mxu0 %v497
    %v552 = vpop.f32.mrb[0].mxu0
    %v553 = vadd.f32 0.0, %v552
    %v554 = vpop.f32.mrb[0].mxu0
    %v555 = vpop.f32.mrb[0].mxu0
    %v556 = vadd.f32 0.0, %v555
    %v557 = vpop.f32.mrb[0].mxu0
    %558 = vmatprep.mubr.bf16.mxu0 0
    %559 = vmatmul.mubr.bf16.gmra.mrb[0].mxu0 %v500
    %v560 = vpop.f32.mrb[0].mxu0
    %v561 = vadd.f32 0.0, %v560
    %v562 = vpop.f32.mrb[0].mxu0
    %v563 = vpop.f32.mrb[0].mxu0
    %v564 = vadd.f32 0.0, %v563
    %v565 = vpop.f32.mrb[0].mxu0
    %566 = vdwg.mxu0
    %v567 = vpack.c.bf16 %v540, %v537
    %v568 = vpack.c.bf16 %v548, %v545
    %v569 = vpack.c.bf16 %v556, %v553
    %v570 = vpack.c.bf16 %v564, %v561
    %572 = vrot.lane.b32.xlu0 %v568, 32
    %v573 = vpop.permute.xlu0 %572
    %575 = vrot.lane.b32.xlu0 %v569, 64
    %v576 = vpop.permute.xlu0 %575
    %578 = vrot.lane.b32.xlu0 %v570, 96
    %v579 = vpop.permute.xlu0 %578
    %v582 = vsel %vm102, %v567, %v573
    %vm583 = vcmask 523264
    %v585 = vsel %vm583, %v582, %v576
    %vm586 = vcmask 785408
    %v588 = vsel %vm586, %v585, %v579
    %v590 = vlaneseq
    %v591 = vshrl.u32 %v590, 7
    %v592 = vsub.s32 2, %v591
    %v593 = vrot.slane %v99, %v592
    %v610 = vunpack.c.l.b16 %v71
    %v611 = vunpack.c.l.b16 %v72
    %v612 = vunpack.c.l.b16 %v73
    %v613 = vunpack.c.l.b16 %v74
    %v614 = vunpack.c.l.b16 %v75
    %v615 = vunpack.c.l.b16 %v76
    %v616 = vunpack.c.l.b16 %v77
    %v617 = vunpack.c.l.b16 %v78
    %v618 = vunpack.c.l.b16 %v79
    %v619 = vunpack.c.l.b16 %v80
    %v620 = vunpack.c.l.b16 %v81
    %v621 = vunpack.c.l.b16 %v82
    %v622 = vunpack.c.l.b16 %v83
    %v623 = vunpack.c.l.b16 %v84
    %v624 = vunpack.c.l.b16 %v85
    %v625 = vunpack.c.l.b16 %v86
    %v626 = vpack.c.b16 %v611, %v610
    %v627 = vpack.c.b16 %v613, %v612
    %v628 = vpack.c.b16 %v615, %v614
    %v629 = vpack.c.b16 %v617, %v616
    %v630 = vpack.c.b16 %v619, %v618
    %v631 = vpack.c.b16 %v621, %v620
    %v632 = vpack.c.b16 %v623, %v622
    %v633 = vpack.c.b16 %v625, %v624
    %642 = vmatprep.subr.bf16.mxu0 0
    %643 = vmatpush1.bf16.msra.mxu0 %v626
    %644 = vmatprep.subr.bf16.mxu0 0
    %645 = vmatpush1.bf16.msra.mxu0 %v627
    %646 = vmatprep.subr.bf16.mxu0 0
    %647 = vmatpush1.bf16.msra.mxu0 %v628
    %648 = vmatprep.subr.bf16.mxu0 0
    %649 = vmatpush1.bf16.msra.mxu0 %v629
    %650 = vmatprep.subr.bf16.mxu0 0
    %651 = vmatpush1.bf16.msra.mxu0 %v630
    %652 = vmatprep.subr.bf16.mxu0 0
    %653 = vmatpush1.bf16.msra.mxu0 %v631
    %654 = vmatprep.subr.bf16.mxu0 0
    %655 = vmatpush1.bf16.msra.mxu0 %v632
    %656 = vmatprep.subr.bf16.mxu0 0
    %657 = vmatpush1.bf16.msra.mxu0 %v633
    %658 = vmatprep.subr.bf16.mxu0 0
    %659 = vmatpush1.bf16.msra.mxu0 0
    %660 = vmatprep.subr.bf16.mxu0 0
    %661 = vmatpush1.bf16.msra.mxu0 0
    %662 = vmatprep.subr.bf16.mxu0 0
    %663 = vmatpush1.bf16.msra.mxu0 0
    %664 = vmatprep.subr.bf16.mxu0 0
    %665 = vmatpush1.bf16.msra.mxu0 0
    %666 = vmatprep.subr.bf16.mxu0 0
    %667 = vmatpush1.bf16.msra.mxu0 0
    %668 = vmatprep.subr.bf16.mxu0 0
    %669 = vmatpush1.bf16.msra.mxu0 0
    %670 = vmatprep.subr.bf16.mxu0 0
    %671 = vmatpush1.bf16.msra.mxu0 0
    %672 = vmatprep.subr.bf16.mxu0 0
    %673 = vmatpush1.bf16.msra.mxu0 0
    %674 = vmatprep.mubr.bf16.mxu0 0
    %675 = vmatmul.mubr.bf16.gmra.mrb[0].mxu0 %v588
    %v676 = vpop.f32.mrb[0].mxu0
    %v677 = vadd.f32 %v593, %v676
    %v678 = vpop.f32.mrb[0].mxu0
    %v679 = vpop.f32.mrb[0].mxu0
    %v680 = vadd.f32 %v593, %v679
    %v681 = vpop.f32.mrb[0].mxu0
    %682 = vdwg.mxu0
    %v683 = vadd.f32 %v677, %v122
    %v684 = vadd.f32 %v680, %v123
    %v685 = vmul.f32 %v683, %v683
    %v686 = vmul.f32 %v684, %v684
    %v687 = vsel %vm102, %v685, 0.0
    %688 = vadd.xlane.f32.xlu0 %v687
    %v689 = vpop.xlane.xlu0 %688
    %v690 = vsel %vm102, %v686, 0.0
    %691 = vadd.xlane.f32.xlu0 %v690
    %v692 = vpop.xlane.xlu0 %691
    %v693 = vmul.f32 %v689, %v109
    %v694 = vmul.f32 %v692, %v109
    %v695 = vadd.f32 %v693, 1.1920929e-07
    %v696 = vadd.f32 %v694, 1.1920929e-07
    %v697 = vrsqrt.pop %v695
    %v698 = vrsqrt.pop %v696
    %v699 = vmul.f32 %v683, %v697
    %v700 = vmul.f32 %v684, %v698
    %v701 = vlaneseq
    %v702 = vshrl.u32 %v701, 7
    %v703 = vsub.s32 3, %v702
    %v704 = vrot.slane %v99, %v703
    %v705 = vmul.f32 %v699, %v704
    %v706 = vmul.f32 %v700, %v704
    %v707 = vpack.c.bf16 %v706, %v705
    %v708 = vlaneseq
    %v709 = vshrl.u32 %v708, 7
    %v710 = vsub.s32 4, %v709
    %v711 = vrot.slane %v99, %v710
    %v716 = vunpack.c.l.b16 %v87
    %v717 = vunpack.c.l.b16 %v88
    %v718 = vunpack.c.l.b16 %v89
    %v719 = vunpack.c.l.b16 %v90
    %v720 = vpack.c.b16 %v717, %v716
    %v721 = vpack.c.b16 %v719, %v718
    %v725 = vsel %vm102, %v707, 0
    %727 = vmatprep.subr.bf16.mxu0 0
    %728 = vmatpush1.bf16.msra.mxu0 %v720
    %729 = vmatprep.subr.bf16.mxu0 0
    %730 = vmatpush1.bf16.msra.mxu0 %v721
    %731 = vmatprep.subr.bf16.mxu0 0
    %732 = vmatpush1.bf16.msra.mxu0 0
    %733 = vmatprep.subr.bf16.mxu0 0
    %734 = vmatpush1.bf16.msra.mxu0 0
    %735 = vmatprep.subr.bf16.mxu0 0
    %736 = vmatpush1.bf16.msra.mxu0 0
    %737 = vmatprep.subr.bf16.mxu0 0
    %738 = vmatpush1.bf16.msra.mxu0 0
    %739 = vmatprep.subr.bf16.mxu0 0
    %740 = vmatpush1.bf16.msra.mxu0 0
    %741 = vmatprep.subr.bf16.mxu0 0
    %742 = vmatpush1.bf16.msra.mxu0 0
    %743 = vmatprep.subr.bf16.mxu0 0
    %744 = vmatpush1.bf16.msra.mxu0 0
    %745 = vmatprep.subr.bf16.mxu0 0
    %746 = vmatpush1.bf16.msra.mxu0 0
    %747 = vmatprep.subr.bf16.mxu0 0
    %748 = vmatpush1.bf16.msra.mxu0 0
    %749 = vmatprep.subr.bf16.mxu0 0
    %750 = vmatpush1.bf16.msra.mxu0 0
    %751 = vmatprep.subr.bf16.mxu0 0
    %752 = vmatpush1.bf16.msra.mxu0 0
    %753 = vmatprep.subr.bf16.mxu0 0
    %754 = vmatpush1.bf16.msra.mxu0 0
    %755 = vmatprep.subr.bf16.mxu0 0
    %756 = vmatpush1.bf16.msra.mxu0 0
    %757 = vmatprep.subr.bf16.mxu0 0
    %758 = vmatpush1.bf16.msra.mxu0 0
    %759 = vmatprep.mubr.bf16.mxu0 0
    %760 = vmatmul.mubr.bf16.gmra.mrb[0].mxu0 %v725
    %v761 = vpop.f32.mrb[0].mxu0
    %v762 = vadd.f32 %v711, %v761
    %v763 = vpop.f32.mrb[0].mxu0
    %v764 = vpop.f32.mrb[0].mxu0
    %v765 = vadd.f32 %v711, %v764
    %v766 = vpop.f32.mrb[0].mxu0
    %767 = vdwg.mxu0
    %v768 = vmax.f32 %v762, 0.0
    %v769 = vmax.f32 %v765, 0.0
    %v770 = vpack.c.bf16 %v769, %v768
    %v771 = vlaneseq
    %v772 = vshrl.u32 %v771, 7
    %v773 = vsub.s32 5, %v772
    %v774 = vrot.slane %v99, %v773
    %v783 = vunpack.c.l.b16 %v91
    %v784 = vunpack.c.l.b16 %v92
    %v785 = vunpack.c.l.b16 %v93
    %v786 = vunpack.c.l.b16 %v94
    %v787 = vunpack.c.l.b16 %v95
    %v788 = vunpack.c.l.b16 %v96
    %v789 = vunpack.c.l.b16 %v97
    %v790 = vunpack.c.l.b16 %v98
    %v791 = vpack.c.b16 %v784, %v783
    %v792 = vpack.c.b16 %v786, %v785
    %v793 = vpack.c.b16 %v788, %v787
    %v794 = vpack.c.b16 %v790, %v789
    %v800 = vsel %vm583, %v770, 0
    %802 = vmatprep.subr.bf16.mxu0 0
    %803 = vmatpush1.bf16.msra.mxu0 %v791
    %804 = vmatprep.subr.bf16.mxu0 0
    %805 = vmatpush1.bf16.msra.mxu0 %v792
    %806 = vmatprep.subr.bf16.mxu0 0
    %807 = vmatpush1.bf16.msra.mxu0 %v793
    %808 = vmatprep.subr.bf16.mxu0 0
    %809 = vmatpush1.bf16.msra.mxu0 %v794
    %810 = vmatprep.subr.bf16.mxu0 0
    %811 = vmatpush1.bf16.msra.mxu0 0
    %812 = vmatprep.subr.bf16.mxu0 0
    %813 = vmatpush1.bf16.msra.mxu0 0
    %814 = vmatprep.subr.bf16.mxu0 0
    %815 = vmatpush1.bf16.msra.mxu0 0
    %816 = vmatprep.subr.bf16.mxu0 0
    %817 = vmatpush1.bf16.msra.mxu0 0
    %818 = vmatprep.subr.bf16.mxu0 0
    %819 = vmatpush1.bf16.msra.mxu0 0
    %820 = vmatprep.subr.bf16.mxu0 0
    %821 = vmatpush1.bf16.msra.mxu0 0
    %822 = vmatprep.subr.bf16.mxu0 0
    %823 = vmatpush1.bf16.msra.mxu0 0
    %824 = vmatprep.subr.bf16.mxu0 0
    %825 = vmatpush1.bf16.msra.mxu0 0
    %826 = vmatprep.subr.bf16.mxu0 0
    %827 = vmatpush1.bf16.msra.mxu0 0
    %828 = vmatprep.subr.bf16.mxu0 0
    %829 = vmatpush1.bf16.msra.mxu0 0
    %830 = vmatprep.subr.bf16.mxu0 0
    %831 = vmatpush1.bf16.msra.mxu0 0
    %832 = vmatprep.subr.bf16.mxu0 0
    %833 = vmatpush1.bf16.msra.mxu0 0
    %834 = vmatprep.mubr.bf16.mxu0 0
    %835 = vmatmul.mubr.bf16.gmra.mrb[0].mxu0 %v800
    %v836 = vpop.f32.mrb[0].mxu0
    %v837 = vadd.f32 %v774, %v836
    %v838 = vpop.f32.mrb[0].mxu0
    %v839 = vpop.f32.mrb[0].mxu0
    %v840 = vadd.f32 %v774, %v839
    %v841 = vpop.f32.mrb[0].mxu0
    %842 = vdwg.mxu0
    %v843 = vadd.f32 %v837, %v705
    %v844 = vadd.f32 %v840, %v706
    %s845 = scalar_lea.vmem %s5, 16
    %v846 = vld [vmem:[%s845] sm:$0xf]
    %v847 = vld [vmem:[%s845 + $0x4] sm:$0xf]
    %v848 = vld [vmem:[%s845 + $0x8] sm:$0xf]
    %v849 = vld [vmem:[%s845 + $0xc] sm:$0xf]
    %s850 = scalar_lea.vmem %s6, 64
    %v851 = vld [vmem:[%s850] sm:$0xf]
    %v852 = vld [vmem:[%s850 + $0x4] sm:$0xf]
    %v853 = vld [vmem:[%s850 + $0x8] sm:$0xf]
    %v854 = vld [vmem:[%s850 + $0xc] sm:$0xf]
    %v855 = vld [vmem:[%s850 + $0x10] sm:$0xf]
    %v856 = vld [vmem:[%s850 + $0x14] sm:$0xf]
    %v857 = vld [vmem:[%s850 + $0x18] sm:$0xf]
    %v858 = vld [vmem:[%s850 + $0x1c] sm:$0xf]
    %v859 = vld [vmem:[%s850 + $0x20] sm:$0xf]
    %v860 = vld [vmem:[%s850 + $0x24] sm:$0xf]
    %v861 = vld [vmem:[%s850 + $0x28] sm:$0xf]
    %v862 = vld [vmem:[%s850 + $0x2c] sm:$0xf]
    %v863 = vld [vmem:[%s850 + $0x30] sm:$0xf]
    %v864 = vld [vmem:[%s850 + $0x34] sm:$0xf]
    %v865 = vld [vmem:[%s850 + $0x38] sm:$0xf]
    %v866 = vld [vmem:[%s850 + $0x3c] sm:$0xf]
    %s867 = scalar_lea.vmem %s7, 16
    %v868 = vld [vmem:[%s867] sm:$0xf]
    %v869 = vld [vmem:[%s867 + $0x4] sm:$0xf]
    %v870 = vld [vmem:[%s867 + $0x8] sm:$0xf]
    %v871 = vld [vmem:[%s867 + $0xc] sm:$0xf]
    %s872 = scalar_lea.vmem %s8, 32
    %v873 = vld [vmem:[%s872] sm:$0xf]
    %v874 = vld [vmem:[%s872 + $0x4] sm:$0xf]
    %v875 = vld [vmem:[%s872 + $0x8] sm:$0xf]
    %v876 = vld [vmem:[%s872 + $0xc] sm:$0xf]
    %v877 = vld [vmem:[%s872 + $0x10] sm:$0xf]
    %v878 = vld [vmem:[%s872 + $0x14] sm:$0xf]
    %v879 = vld [vmem:[%s872 + $0x18] sm:$0xf]
    %v880 = vld [vmem:[%s872 + $0x1c] sm:$0xf]
    %s881 = scalar_lea.vmem %s9, 8
    %v882 = vld [vmem:[%s881] sm:$0xff]
    %v883 = vmul.f32 %v843, %v843
    %v884 = vmul.f32 %v844, %v844
    %v885 = vsel %vm102, %v883, 0.0
    %886 = vadd.xlane.f32.xlu0 %v885
    %v887 = vpop.xlane.xlu0 %886
    %v888 = vsel %vm102, %v884, 0.0
    %889 = vadd.xlane.f32.xlu0 %v888
    %v890 = vpop.xlane.xlu0 %889
    %v891 = vmul.f32 %v887, %v109
    %v892 = vmul.f32 %v890, %v109
    %v893 = vadd.f32 %v891, 1.1920929e-07
    %v894 = vadd.f32 %v892, 1.1920929e-07
    %v895 = vrsqrt.pop %v893
    %v896 = vrsqrt.pop %v894
    %v897 = vmul.f32 %v843, %v895
    %v898 = vmul.f32 %v844, %v896
    %v899 = vlaneseq
    %v900 = vshrl.u32 %v899, 7
    %v901 = vsub.s32 0, %v900
    %v902 = vrot.slane %v882, %v901
    %v903 = vmul.f32 %v897, %v902
    %v904 = vmul.f32 %v898, %v902
    %v905 = vpack.c.bf16 %v904, %v903
    %v906 = vlaneseq
    %v907 = vshrl.u32 %v906, 7
    %v908 = vsub.s32 1, %v907
    %v909 = vrot.slane %v882, %v908
    %v914 = vunpack.c.l.b16 %v846
    %v915 = vunpack.c.l.b16 %v847
    %v916 = vunpack.c.l.b16 %v848
    %v917 = vunpack.c.l.b16 %v849
    %v918 = vpack.c.b16 %v915, %v914
    %v919 = vpack.c.b16 %v917, %v916
    %v923 = vsel %vm102, %v905, 0
    %925 = vmatprep.subr.bf16.mxu0 0
    %926 = vmatpush1.bf16.msra.mxu0 %v918
    %927 = vmatprep.subr.bf16.mxu0 0
    %928 = vmatpush1.bf16.msra.mxu0 %v919
    %929 = vmatprep.subr.bf16.mxu0 0
    %930 = vmatpush1.bf16.msra.mxu0 0
    %931 = vmatprep.subr.bf16.mxu0 0
    %932 = vmatpush1.bf16.msra.mxu0 0
    %933 = vmatprep.subr.bf16.mxu0 0
    %934 = vmatpush1.bf16.msra.mxu0 0
    %935 = vmatprep.subr.bf16.mxu0 0
    %936 = vmatpush1.bf16.msra.mxu0 0
    %937 = vmatprep.subr.bf16.mxu0 0
    %938 = vmatpush1.bf16.msra.mxu0 0
    %939 = vmatprep.subr.bf16.mxu0 0
    %940 = vmatpush1.bf16.msra.mxu0 0
    %941 = vmatprep.subr.bf16.mxu0 0
    %942 = vmatpush1.bf16.msra.mxu0 0
    %943 = vmatprep.subr.bf16.mxu0 0
    %944 = vmatpush1.bf16.msra.mxu0 0
    %945 = vmatprep.subr.bf16.mxu0 0
    %946 = vmatpush1.bf16.msra.mxu0 0
    %947 = vmatprep.subr.bf16.mxu0 0
    %948 = vmatpush1.bf16.msra.mxu0 0
    %949 = vmatprep.subr.bf16.mxu0 0
    %950 = vmatpush1.bf16.msra.mxu0 0
    %951 = vmatprep.subr.bf16.mxu0 0
    %952 = vmatpush1.bf16.msra.mxu0 0
    %953 = vmatprep.subr.bf16.mxu0 0
    %954 = vmatpush1.bf16.msra.mxu0 0
    %955 = vmatprep.subr.bf16.mxu0 0
    %956 = vmatpush1.bf16.msra.mxu0 0
    %957 = vmatprep.mubr.bf16.mxu0 0
    %958 = vmatmul.mubr.bf16.gmra.mrb[0].mxu0 %v923
    %v959 = vpop.f32.mrb[0].mxu0
    %v960 = vadd.f32 %v909, %v959
    %v961 = vpop.f32.mrb[0].mxu0
    %v962 = vpop.f32.mrb[0].mxu0
    %v963 = vadd.f32 %v909, %v962
    %v964 = vpop.f32.mrb[0].mxu0
    %965 = vdwg.mxu0
    %v966 = vpack.c.bf16 %v963, %v960
    %v967 = vmul.bf16 %v966, %v279
    %v968 = vmul.bf16 %v966, %v280
    %v969 = vmul.bf16 %v966, %v281
    %v970 = vmul.bf16 %v966, %v282
    %972 = vrot.lane.b32.xlu0 %v966, 96
    %v973 = vpop.permute.xlu0 %972
    %v975 = vsel %vm102, %v967, 0
    %v978 = vsel %vm102, %v968, 0
    %v981 = vsel %vm102, %v969, 0
    %v984 = vsel %vm102, %v970, 0
    %v987 = vsel %vm102, %v973, 0
    %989 = vmatprep.subr.bf16.mxu0 0
    %990 = vmatpush1.bf16.xpose.msra.mxu0 %v987
    %991 = vmatprep.subr.bf16.mxu0 0
    %992 = vmatpush1.bf16.xpose.msra.mxu0 0
    %993 = vmatprep.subr.bf16.mxu0 0
    %994 = vmatpush1.bf16.xpose.msra.mxu0 0
    %995 = vmatprep.subr.bf16.mxu0 0
    %996 = vmatpush1.bf16.xpose.msra.mxu0 0
    %997 = vmatprep.subr.bf16.mxu0 0
    %998 = vmatpush1.bf16.xpose.msra.mxu0 0
    %999 = vmatprep.subr.bf16.mxu0 0
    %1000 = vmatpush1.bf16.xpose.msra.mxu0 0
    %1001 = vmatprep.subr.bf16.mxu0 0
    %1002 = vmatpush1.bf16.xpose.msra.mxu0 0
    %1003 = vmatprep.subr.bf16.mxu0 0
    %1004 = vmatpush1.bf16.xpose.msra.mxu0 0
    %1005 = vmatprep.subr.bf16.mxu0 0
    %1006 = vmatpush1.bf16.xpose.msra.mxu0 0
    %1007 = vmatprep.subr.bf16.mxu0 0
    %1008 = vmatpush1.bf16.xpose.msra.mxu0 0
    %1009 = vmatprep.subr.bf16.mxu0 0
    %1010 = vmatpush1.bf16.xpose.msra.mxu0 0
    %1011 = vmatprep.subr.bf16.mxu0 0
    %1012 = vmatpush1.bf16.xpose.msra.mxu0 0
    %1013 = vmatprep.subr.bf16.mxu0 0
    %1014 = vmatpush1.bf16.xpose.msra.mxu0 0
    %1015 = vmatprep.subr.bf16.mxu0 0
    %1016 = vmatpush1.bf16.xpose.msra.mxu0 0
    %1017 = vmatprep.subr.bf16.mxu0 0
    %1018 = vmatpush1.bf16.xpose.msra.mxu0 0
    %1019 = vmatprep.subr.bf16.mxu0 0
    %1020 = vmatpush1.bf16.xpose.msra.mxu0 0
    %1021 = vmatprep.mubr.bf16.mxu0 0
    %1022 = vmatmul.mubr.bf16.gmra.mrb[0].mxu0 %v975
    %v1023 = vpop.f32.mrb[0].mxu0
    %v1024 = vadd.f32 0.0, %v1023
    %v1025 = vpop.f32.mrb[0].mxu0
    %v1026 = vpop.f32.mrb[0].mxu0
    %v1027 = vadd.f32 0.0, %v1026
    %v1028 = vpop.f32.mrb[0].mxu0
    %1029 = vmatprep.mubr.bf16.mxu0 0
    %1030 = vmatmul.mubr.bf16.gmra.mrb[0].mxu0 %v978
    %v1031 = vpop.f32.mrb[0].mxu0
    %v1032 = vadd.f32 0.0, %v1031
    %v1033 = vpop.f32.mrb[0].mxu0
    %v1034 = vpop.f32.mrb[0].mxu0
    %v1035 = vadd.f32 0.0, %v1034
    %v1036 = vpop.f32.mrb[0].mxu0
    %1037 = vmatprep.mubr.bf16.mxu0 0
    %1038 = vmatmul.mubr.bf16.gmra.mrb[0].mxu0 %v981
    %v1039 = vpop.f32.mrb[0].mxu0
    %v1040 = vadd.f32 0.0, %v1039
    %v1041 = vpop.f32.mrb[0].mxu0
    %v1042 = vpop.f32.mrb[0].mxu0
    %v1043 = vadd.f32 0.0, %v1042
    %v1044 = vpop.f32.mrb[0].mxu0
    %1045 = vmatprep.mubr.bf16.mxu0 0
    %1046 = vmatmul.mubr.bf16.gmra.mrb[0].mxu0 %v984
    %v1047 = vpop.f32.mrb[0].mxu0
    %v1048 = vadd.f32 0.0, %v1047
    %v1049 = vpop.f32.mrb[0].mxu0
    %v1050 = vpop.f32.mrb[0].mxu0
    %v1051 = vadd.f32 0.0, %v1050
    %v1052 = vpop.f32.mrb[0].mxu0
    %1053 = vdwg.mxu0
    %v1054 = vmul.f32 %v1024, 0.35355338
    %v1055 = vmul.f32 %v1027, 0.35355338
    %v1056 = vmul.f32 %v1032, 0.35355338
    %v1057 = vmul.f32 %v1035, 0.35355338
    %v1058 = vmul.f32 %v1040, 0.35355338
    %v1059 = vmul.f32 %v1043, 0.35355338
    %v1060 = vmul.f32 %v1048, 0.35355338
    %v1061 = vmul.f32 %v1051, 0.35355338
    %v1062 = vadd.f32 %v1054, %v59
    %v1063 = vadd.f32 %v1055, %v60
    %v1064 = vadd.f32 %v1056, %v61
    %v1065 = vadd.f32 %v1057, %v62
    %v1066 = vadd.f32 %v1058, %v63
    %v1067 = vadd.f32 %v1059, %v64
    %v1068 = vadd.f32 %v1060, %v65
    %v1069 = vadd.f32 %v1061, %v66
    %vm1070 = vcmask 130048
    %v1071 = vsel %vm1070, %v1062, -inf
    %1072 = vmax.xlane.f32.xlu0 %v1071
    %v1073 = vpop.xlane.xlu0 %1072
    %v1074 = vsel %vm1070, %v1063, -inf
    %1075 = vmax.xlane.f32.xlu0 %v1074
    %v1076 = vpop.xlane.xlu0 %1075
    %v1077 = vsel %vm1070, %v1064, -inf
    %1078 = vmax.xlane.f32.xlu0 %v1077
    %v1079 = vpop.xlane.xlu0 %1078
    %v1080 = vsel %vm1070, %v1065, -inf
    %1081 = vmax.xlane.f32.xlu0 %v1080
    %v1082 = vpop.xlane.xlu0 %1081
    %v1083 = vsel %vm1070, %v1066, -inf
    %1084 = vmax.xlane.f32.xlu0 %v1083
    %v1085 = vpop.xlane.xlu0 %1084
    %v1086 = vsel %vm1070, %v1067, -inf
    %1087 = vmax.xlane.f32.xlu0 %v1086
    %v1088 = vpop.xlane.xlu0 %1087
    %v1089 = vsel %vm1070, %v1068, -inf
    %1090 = vmax.xlane.f32.xlu0 %v1089
    %v1091 = vpop.xlane.xlu0 %1090
    %v1092 = vsel %vm1070, %v1069, -inf
    %1093 = vmax.xlane.f32.xlu0 %v1092
    %v1094 = vpop.xlane.xlu0 %1093
    %v1095 = vsub.f32 %v1062, %v1073
    %v1096 = vsub.f32 %v1063, %v1076
    %v1097 = vsub.f32 %v1064, %v1079
    %v1098 = vsub.f32 %v1065, %v1082
    %v1099 = vsub.f32 %v1066, %v1085
    %v1100 = vsub.f32 %v1067, %v1088
    %v1101 = vsub.f32 %v1068, %v1091
    %v1102 = vsub.f32 %v1069, %v1094
    %v1103 = vmul.f32 %v1095, 1.442695
    %v1104 = vpow.pop %v1103
    %v1105 = vmul.f32 %v1096, 1.442695
    %v1106 = vpow.pop %v1105
    %v1107 = vmul.f32 %v1097, 1.442695
    %v1108 = vpow.pop %v1107
    %v1109 = vmul.f32 %v1098, 1.442695
    %v1110 = vpow.pop %v1109
    %v1111 = vmul.f32 %v1099, 1.442695
    %v1112 = vpow.pop %v1111
    %v1113 = vmul.f32 %v1100, 1.442695
    %v1114 = vpow.pop %v1113
    %v1115 = vmul.f32 %v1101, 1.442695
    %v1116 = vpow.pop %v1115
    %v1117 = vmul.f32 %v1102, 1.442695
    %v1118 = vpow.pop %v1117
    %v1119 = vsel %vm1070, %v1104, 0.0
    %1120 = vadd.xlane.f32.xlu0 %v1119
    %v1121 = vpop.xlane.xlu0 %1120
    %v1122 = vsel %vm1070, %v1106, 0.0
    %1123 = vadd.xlane.f32.xlu0 %v1122
    %v1124 = vpop.xlane.xlu0 %1123
    %v1125 = vsel %vm1070, %v1108, 0.0
    %1126 = vadd.xlane.f32.xlu0 %v1125
    %v1127 = vpop.xlane.xlu0 %1126
    %v1128 = vsel %vm1070, %v1110, 0.0
    %1129 = vadd.xlane.f32.xlu0 %v1128
    %v1130 = vpop.xlane.xlu0 %1129
    %v1131 = vsel %vm1070, %v1112, 0.0
    %1132 = vadd.xlane.f32.xlu0 %v1131
    %v1133 = vpop.xlane.xlu0 %1132
    %v1134 = vsel %vm1070, %v1114, 0.0
    %1135 = vadd.xlane.f32.xlu0 %v1134
    %v1136 = vpop.xlane.xlu0 %1135
    %v1137 = vsel %vm1070, %v1116, 0.0
    %1138 = vadd.xlane.f32.xlu0 %v1137
    %v1139 = vpop.xlane.xlu0 %1138
    %v1140 = vsel %vm1070, %v1118, 0.0
    %1141 = vadd.xlane.f32.xlu0 %v1140
    %v1142 = vpop.xlane.xlu0 %1141
    %v1143 = vrcp.pop %v1121
    %v1144 = vrcp.pop %v1124
    %v1145 = vrcp.pop %v1127
    %v1146 = vrcp.pop %v1130
    %v1147 = vrcp.pop %v1133
    %v1148 = vrcp.pop %v1136
    %v1149 = vrcp.pop %v1139
    %v1150 = vrcp.pop %v1142
    %v1151 = vmul.f32 %v1104, %v1143
    %v1152 = vmul.f32 %v1106, %v1144
    %v1153 = vmul.f32 %v1108, %v1145
    %v1154 = vmul.f32 %v1110, %v1146
    %v1155 = vmul.f32 %v1112, %v1147
    %v1156 = vmul.f32 %v1114, %v1148
    %v1157 = vmul.f32 %v1116, %v1149
    %v1158 = vmul.f32 %v1118, %v1150
    %v1159 = vpack.c.bf16 %v1152, %v1151
    %v1160 = vpack.c.bf16 %v1154, %v1153
    %v1161 = vpack.c.bf16 %v1156, %v1155
    %v1162 = vpack.c.bf16 %v1158, %v1157
    %1163 = vrot.lane.b32.xlu0 %v966, 64
    %v1164 = vpop.permute.xlu0 %1163
    %v1167 = vsel %vm1070, %v1159, 0
    %v1170 = vsel %vm1070, %v1160, 0
    %v1173 = vsel %vm1070, %v1161, 0
    %v1176 = vsel %vm1070, %v1162, 0
    %1178 = vmatprep.subr.bf16.mxu0 0
    %1179 = vmatpush1.bf16.msra.mxu0 %v1164
    %1180 = vmatprep.subr.bf16.mxu0 0
    %1181 = vmatpush1.bf16.msra.mxu0 0
    %1182 = vmatprep.subr.bf16.mxu0 0
    %1183 = vmatpush1.bf16.msra.mxu0 0
    %1184 = vmatprep.subr.bf16.mxu0 0
    %1185 = vmatpush1.bf16.msra.mxu0 0
    %1186 = vmatprep.subr.bf16.mxu0 0
    %1187 = vmatpush1.bf16.msra.mxu0 0
    %1188 = vmatprep.subr.bf16.mxu0 0
    %1189 = vmatpush1.bf16.msra.mxu0 0
    %1190 = vmatprep.subr.bf16.mxu0 0
    %1191 = vmatpush1.bf16.msra.mxu0 0
    %1192 = vmatprep.subr.bf16.mxu0 0
    %1193 = vmatpush1.bf16.msra.mxu0 0
    %1194 = vmatprep.subr.bf16.mxu0 0
    %1195 = vmatpush1.bf16.msra.mxu0 0
    %1196 = vmatprep.subr.bf16.mxu0 0
    %1197 = vmatpush1.bf16.msra.mxu0 0
    %1198 = vmatprep.subr.bf16.mxu0 0
    %1199 = vmatpush1.bf16.msra.mxu0 0
    %1200 = vmatprep.subr.bf16.mxu0 0
    %1201 = vmatpush1.bf16.msra.mxu0 0
    %1202 = vmatprep.subr.bf16.mxu0 0
    %1203 = vmatpush1.bf16.msra.mxu0 0
    %1204 = vmatprep.subr.bf16.mxu0 0
    %1205 = vmatpush1.bf16.msra.mxu0 0
    %1206 = vmatprep.subr.bf16.mxu0 0
    %1207 = vmatpush1.bf16.msra.mxu0 0
    %1208 = vmatprep.subr.bf16.mxu0 0
    %1209 = vmatpush1.bf16.msra.mxu0 0
    %1210 = vmatprep.mubr.bf16.mxu0 0
    %1211 = vmatmul.mubr.bf16.gmra.mrb[0].mxu0 %v1167
    %v1212 = vpop.f32.mrb[0].mxu0
    %v1213 = vadd.f32 0.0, %v1212
    %v1214 = vpop.f32.mrb[0].mxu0
    %v1215 = vpop.f32.mrb[0].mxu0
    %v1216 = vadd.f32 0.0, %v1215
    %v1217 = vpop.f32.mrb[0].mxu0
    %1218 = vmatprep.mubr.bf16.mxu0 0
    %1219 = vmatmul.mubr.bf16.gmra.mrb[0].mxu0 %v1170
    %v1220 = vpop.f32.mrb[0].mxu0
    %v1221 = vadd.f32 0.0, %v1220
    %v1222 = vpop.f32.mrb[0].mxu0
    %v1223 = vpop.f32.mrb[0].mxu0
    %v1224 = vadd.f32 0.0, %v1223
    %v1225 = vpop.f32.mrb[0].mxu0
    %1226 = vmatprep.mubr.bf16.mxu0 0
    %1227 = vmatmul.mubr.bf16.gmra.mrb[0].mxu0 %v1173
    %v1228 = vpop.f32.mrb[0].mxu0
    %v1229 = vadd.f32 0.0, %v1228
    %v1230 = vpop.f32.mrb[0].mxu0
    %v1231 = vpop.f32.mrb[0].mxu0
    %v1232 = vadd.f32 0.0, %v1231
    %v1233 = vpop.f32.mrb[0].mxu0
    %1234 = vmatprep.mubr.bf16.mxu0 0
    %1235 = vmatmul.mubr.bf16.gmra.mrb[0].mxu0 %v1176
    %v1236 = vpop.f32.mrb[0].mxu0
    %v1237 = vadd.f32 0.0, %v1236
    %v1238 = vpop.f32.mrb[0].mxu0
    %v1239 = vpop.f32.mrb[0].mxu0
    %v1240 = vadd.f32 0.0, %v1239
    %v1241 = vpop.f32.mrb[0].mxu0
    %1242 = vdwg.mxu0
    %v1243 = vpack.c.bf16 %v1216, %v1213
    %v1244 = vpack.c.bf16 %v1224, %v1221
    %v1245 = vpack.c.bf16 %v1232, %v1229
    %v1246 = vpack.c.bf16 %v1240, %v1237
    %1248 = vrot.lane.b32.xlu0 %v1244, 32
    %v1249 = vpop.permute.xlu0 %1248
    %1251 = vrot.lane.b32.xlu0 %v1245, 64
    %v1252 = vpop.permute.xlu0 %1251
    %1254 = vrot.lane.b32.xlu0 %v1246, 96
    %v1255 = vpop.permute.xlu0 %1254
    %v1258 = vsel %vm102, %v1243, %v1249
    %v1260 = vsel %vm583, %v1258, %v1252
    %v1262 = vsel %vm586, %v1260, %v1255
    %v1264 = vlaneseq
    %v1265 = vshrl.u32 %v1264, 7
    %v1266 = vsub.s32 2, %v1265
    %v1267 = vrot.slane %v882, %v1266
    %v1284 = vunpack.c.l.b16 %v851
    %v1285 = vunpack.c.l.b16 %v852
    %v1286 = vunpack.c.l.b16 %v853
    %v1287 = vunpack.c.l.b16 %v854
    %v1288 = vunpack.c.l.b16 %v855
    %v1289 = vunpack.c.l.b16 %v856
    %v1290 = vunpack.c.l.b16 %v857
    %v1291 = vunpack.c.l.b16 %v858
    %v1292 = vunpack.c.l.b16 %v859
    %v1293 = vunpack.c.l.b16 %v860
    %v1294 = vunpack.c.l.b16 %v861
    %v1295 = vunpack.c.l.b16 %v862
    %v1296 = vunpack.c.l.b16 %v863
    %v1297 = vunpack.c.l.b16 %v864
    %v1298 = vunpack.c.l.b16 %v865
    %v1299 = vunpack.c.l.b16 %v866
    %v1300 = vpack.c.b16 %v1285, %v1284
    %v1301 = vpack.c.b16 %v1287, %v1286
    %v1302 = vpack.c.b16 %v1289, %v1288
    %v1303 = vpack.c.b16 %v1291, %v1290
    %v1304 = vpack.c.b16 %v1293, %v1292
    %v1305 = vpack.c.b16 %v1295, %v1294
    %v1306 = vpack.c.b16 %v1297, %v1296
    %v1307 = vpack.c.b16 %v1299, %v1298
    %1316 = vmatprep.subr.bf16.mxu0 0
    %1317 = vmatpush1.bf16.msra.mxu0 %v1300
    %1318 = vmatprep.subr.bf16.mxu0 0
    %1319 = vmatpush1.bf16.msra.mxu0 %v1301
    %1320 = vmatprep.subr.bf16.mxu0 0
    %1321 = vmatpush1.bf16.msra.mxu0 %v1302
    %1322 = vmatprep.subr.bf16.mxu0 0
    %1323 = vmatpush1.bf16.msra.mxu0 %v1303
    %1324 = vmatprep.subr.bf16.mxu0 0
    %1325 = vmatpush1.bf16.msra.mxu0 %v1304
    %1326 = vmatprep.subr.bf16.mxu0 0
    %1327 = vmatpush1.bf16.msra.mxu0 %v1305
    %1328 = vmatprep.subr.bf16.mxu0 0
    %1329 = vmatpush1.bf16.msra.mxu0 %v1306
    %1330 = vmatprep.subr.bf16.mxu0 0
    %1331 = vmatpush1.bf16.msra.mxu0 %v1307
    %1332 = vmatprep.subr.bf16.mxu0 0
    %1333 = vmatpush1.bf16.msra.mxu0 0
    %1334 = vmatprep.subr.bf16.mxu0 0
    %1335 = vmatpush1.bf16.msra.mxu0 0
    %1336 = vmatprep.subr.bf16.mxu0 0
    %1337 = vmatpush1.bf16.msra.mxu0 0
    %1338 = vmatprep.subr.bf16.mxu0 0
    %1339 = vmatpush1.bf16.msra.mxu0 0
    %1340 = vmatprep.subr.bf16.mxu0 0
    %1341 = vmatpush1.bf16.msra.mxu0 0
    %1342 = vmatprep.subr.bf16.mxu0 0
    %1343 = vmatpush1.bf16.msra.mxu0 0
    %1344 = vmatprep.subr.bf16.mxu0 0
    %1345 = vmatpush1.bf16.msra.mxu0 0
    %1346 = vmatprep.subr.bf16.mxu0 0
    %1347 = vmatpush1.bf16.msra.mxu0 0
    %1348 = vmatprep.mubr.bf16.mxu0 0
    %1349 = vmatmul.mubr.bf16.gmra.mrb[0].mxu0 %v1262
    %v1350 = vpop.f32.mrb[0].mxu0
    %v1351 = vadd.f32 %v1267, %v1350
    %v1352 = vpop.f32.mrb[0].mxu0
    %v1353 = vpop.f32.mrb[0].mxu0
    %v1354 = vadd.f32 %v1267, %v1353
    %v1355 = vpop.f32.mrb[0].mxu0
    %1356 = vdwg.mxu0
    %v1357 = vadd.f32 %v1351, %v903
    %v1358 = vadd.f32 %v1354, %v904
    %v1359 = vmul.f32 %v1357, %v1357
    %v1360 = vmul.f32 %v1358, %v1358
    %v1361 = vsel %vm102, %v1359, 0.0
    %1362 = vadd.xlane.f32.xlu0 %v1361
    %v1363 = vpop.xlane.xlu0 %1362
    %v1364 = vsel %vm102, %v1360, 0.0
    %1365 = vadd.xlane.f32.xlu0 %v1364
    %v1366 = vpop.xlane.xlu0 %1365
    %v1367 = vmul.f32 %v1363, %v109
    %v1368 = vmul.f32 %v1366, %v109
    %v1369 = vadd.f32 %v1367, 1.1920929e-07
    %v1370 = vadd.f32 %v1368, 1.1920929e-07
    %v1371 = vrsqrt.pop %v1369
    %v1372 = vrsqrt.pop %v1370
    %v1373 = vmul.f32 %v1357, %v1371
    %v1374 = vmul.f32 %v1358, %v1372
    %v1375 = vlaneseq
    %v1376 = vshrl.u32 %v1375, 7
    %v1377 = vsub.s32 3, %v1376
    %v1378 = vrot.slane %v882, %v1377
    %v1379 = vmul.f32 %v1373, %v1378
    %v1380 = vmul.f32 %v1374, %v1378
    %v1381 = vpack.c.bf16 %v1380, %v1379
    %v1382 = vlaneseq
    %v1383 = vshrl.u32 %v1382, 7
    %v1384 = vsub.s32 4, %v1383
    %v1385 = vrot.slane %v882, %v1384
    %v1390 = vunpack.c.l.b16 %v868
    %v1391 = vunpack.c.l.b16 %v869
    %v1392 = vunpack.c.l.b16 %v870
    %v1393 = vunpack.c.l.b16 %v871
    %v1394 = vpack.c.b16 %v1391, %v1390
    %v1395 = vpack.c.b16 %v1393, %v1392
    %v1399 = vsel %vm102, %v1381, 0
    %1401 = vmatprep.subr.bf16.mxu0 0
    %1402 = vmatpush1.bf16.msra.mxu0 %v1394
    %1403 = vmatprep.subr.bf16.mxu0 0
    %1404 = vmatpush1.bf16.msra.mxu0 %v1395
    %1405 = vmatprep.subr.bf16.mxu0 0
    %1406 = vmatpush1.bf16.msra.mxu0 0
    %1407 = vmatprep.subr.bf16.mxu0 0
    %1408 = vmatpush1.bf16.msra.mxu0 0
    %1409 = vmatprep.subr.bf16.mxu0 0
    %1410 = vmatpush1.bf16.msra.mxu0 0
    %1411 = vmatprep.subr.bf16.mxu0 0
    %1412 = vmatpush1.bf16.msra.mxu0 0
    %1413 = vmatprep.subr.bf16.mxu0 0
    %1414 = vmatpush1.bf16.msra.mxu0 0
    %1415 = vmatprep.subr.bf16.mxu0 0
    %1416 = vmatpush1.bf16.msra.mxu0 0
    %1417 = vmatprep.subr.bf16.mxu0 0
    %1418 = vmatpush1.bf16.msra.mxu0 0
    %1419 = vmatprep.subr.bf16.mxu0 0
    %1420 = vmatpush1.bf16.msra.mxu0 0
    %1421 = vmatprep.subr.bf16.mxu0 0
    %1422 = vmatpush1.bf16.msra.mxu0 0
    %1423 = vmatprep.subr.bf16.mxu0 0
    %1424 = vmatpush1.bf16.msra.mxu0 0
    %1425 = vmatprep.subr.bf16.mxu0 0
    %1426 = vmatpush1.bf16.msra.mxu0 0
    %1427 = vmatprep.subr.bf16.mxu0 0
    %1428 = vmatpush1.bf16.msra.mxu0 0
    %1429 = vmatprep.subr.bf16.mxu0 0
    %1430 = vmatpush1.bf16.msra.mxu0 0
    %1431 = vmatprep.subr.bf16.mxu0 0
    %1432 = vmatpush1.bf16.msra.mxu0 0
    %1433 = vmatprep.mubr.bf16.mxu0 0
    %1434 = vmatmul.mubr.bf16.gmra.mrb[0].mxu0 %v1399
    %v1435 = vpop.f32.mrb[0].mxu0
    %v1436 = vadd.f32 %v1385, %v1435
    %v1437 = vpop.f32.mrb[0].mxu0
    %v1438 = vpop.f32.mrb[0].mxu0
    %v1439 = vadd.f32 %v1385, %v1438
    %v1440 = vpop.f32.mrb[0].mxu0
    %1441 = vdwg.mxu0
    %v1442 = vmax.f32 %v1436, 0.0
    %v1443 = vmax.f32 %v1439, 0.0
    %v1444 = vpack.c.bf16 %v1443, %v1442
    %v1445 = vlaneseq
    %v1446 = vshrl.u32 %v1445, 7
    %v1447 = vsub.s32 5, %v1446
    %v1448 = vrot.slane %v882, %v1447
    %v1457 = vunpack.c.l.b16 %v873
    %v1458 = vunpack.c.l.b16 %v874
    %v1459 = vunpack.c.l.b16 %v875
    %v1460 = vunpack.c.l.b16 %v876
    %v1461 = vunpack.c.l.b16 %v877
    %v1462 = vunpack.c.l.b16 %v878
    %v1463 = vunpack.c.l.b16 %v879
    %v1464 = vunpack.c.l.b16 %v880
    %v1465 = vpack.c.b16 %v1458, %v1457
    %v1466 = vpack.c.b16 %v1460, %v1459
    %v1467 = vpack.c.b16 %v1462, %v1461
    %v1468 = vpack.c.b16 %v1464, %v1463
    %v1474 = vsel %vm583, %v1444, 0
    %1476 = vmatprep.subr.bf16.mxu0 0
    %1477 = vmatpush1.bf16.msra.mxu0 %v1465
    %1478 = vmatprep.subr.bf16.mxu0 0
    %1479 = vmatpush1.bf16.msra.mxu0 %v1466
    %1480 = vmatprep.subr.bf16.mxu0 0
    %1481 = vmatpush1.bf16.msra.mxu0 %v1467
    %1482 = vmatprep.subr.bf16.mxu0 0
    %1483 = vmatpush1.bf16.msra.mxu0 %v1468
    %1484 = vmatprep.subr.bf16.mxu0 0
    %1485 = vmatpush1.bf16.msra.mxu0 0
    %1486 = vmatprep.subr.bf16.mxu0 0
    %1487 = vmatpush1.bf16.msra.mxu0 0
    %1488 = vmatprep.subr.bf16.mxu0 0
    %1489 = vmatpush1.bf16.msra.mxu0 0
    %1490 = vmatprep.subr.bf16.mxu0 0
    %1491 = vmatpush1.bf16.msra.mxu0 0
    %1492 = vmatprep.subr.bf16.mxu0 0
    %1493 = vmatpush1.bf16.msra.mxu0 0
    %1494 = vmatprep.subr.bf16.mxu0 0
    %1495 = vmatpush1.bf16.msra.mxu0 0
    %1496 = vmatprep.subr.bf16.mxu0 0
    %1497 = vmatpush1.bf16.msra.mxu0 0
    %1498 = vmatprep.subr.bf16.mxu0 0
    %1499 = vmatpush1.bf16.msra.mxu0 0
    %1500 = vmatprep.subr.bf16.mxu0 0
    %1501 = vmatpush1.bf16.msra.mxu0 0
    %1502 = vmatprep.subr.bf16.mxu0 0
    %1503 = vmatpush1.bf16.msra.mxu0 0
    %1504 = vmatprep.subr.bf16.mxu0 0
    %1505 = vmatpush1.bf16.msra.mxu0 0
    %1506 = vmatprep.subr.bf16.mxu0 0
    %1507 = vmatpush1.bf16.msra.mxu0 0
    %1508 = vmatprep.mubr.bf16.mxu0 0
    %1509 = vmatmul.mubr.bf16.gmra.mrb[0].mxu0 %v1474
    %v1510 = vpop.f32.mrb[0].mxu0
    %v1511 = vadd.f32 %v1448, %v1510
    %v1512 = vpop.f32.mrb[0].mxu0
    %v1513 = vpop.f32.mrb[0].mxu0
    %v1514 = vadd.f32 %v1448, %v1513
    %v1515 = vpop.f32.mrb[0].mxu0
    %1516 = vdwg.mxu0
    %v1517 = vadd.f32 %v1511, %v1379
    %v1518 = vadd.f32 %v1514, %v1380
    %s1519 = scalar_lea.vmem %s5, 32
    %v1520 = vld [vmem:[%s1519] sm:$0xf]
    %v1521 = vld [vmem:[%s1519 + $0x4] sm:$0xf]
    %v1522 = vld [vmem:[%s1519 + $0x8] sm:$0xf]
    %v1523 = vld [vmem:[%s1519 + $0xc] sm:$0xf]
    %s1524 = scalar_lea.vmem %s6, 128
    %v1525 = vld [vmem:[%s1524] sm:$0xf]
    %v1526 = vld [vmem:[%s1524 + $0x4] sm:$0xf]
    %v1527 = vld [vmem:[%s1524 + $0x8] sm:$0xf]
    %v1528 = vld [vmem:[%s1524 + $0xc] sm:$0xf]
    %v1529 = vld [vmem:[%s1524 + $0x10] sm:$0xf]
    %v1530 = vld [vmem:[%s1524 + $0x14] sm:$0xf]
    %v1531 = vld [vmem:[%s1524 + $0x18] sm:$0xf]
    %v1532 = vld [vmem:[%s1524 + $0x1c] sm:$0xf]
    %v1533 = vld [vmem:[%s1524 + $0x20] sm:$0xf]
    %v1534 = vld [vmem:[%s1524 + $0x24] sm:$0xf]
    %v1535 = vld [vmem:[%s1524 + $0x28] sm:$0xf]
    %v1536 = vld [vmem:[%s1524 + $0x2c] sm:$0xf]
    %v1537 = vld [vmem:[%s1524 + $0x30] sm:$0xf]
    %v1538 = vld [vmem:[%s1524 + $0x34] sm:$0xf]
    %v1539 = vld [vmem:[%s1524 + $0x38] sm:$0xf]
    %v1540 = vld [vmem:[%s1524 + $0x3c] sm:$0xf]
    %s1541 = scalar_lea.vmem %s7, 32
    %v1542 = vld [vmem:[%s1541] sm:$0xf]
    %v1543 = vld [vmem:[%s1541 + $0x4] sm:$0xf]
    %v1544 = vld [vmem:[%s1541 + $0x8] sm:$0xf]
    %v1545 = vld [vmem:[%s1541 + $0xc] sm:$0xf]
    %s1546 = scalar_lea.vmem %s8, 64
    %v1547 = vld [vmem:[%s1546] sm:$0xf]
    %v1548 = vld [vmem:[%s1546 + $0x4] sm:$0xf]
    %v1549 = vld [vmem:[%s1546 + $0x8] sm:$0xf]
    %v1550 = vld [vmem:[%s1546 + $0xc] sm:$0xf]
    %v1551 = vld [vmem:[%s1546 + $0x10] sm:$0xf]
    %v1552 = vld [vmem:[%s1546 + $0x14] sm:$0xf]
    %v1553 = vld [vmem:[%s1546 + $0x18] sm:$0xf]
    %v1554 = vld [vmem:[%s1546 + $0x1c] sm:$0xf]
    %s1555 = scalar_lea.vmem %s9, 16
    %v1556 = vld [vmem:[%s1555] sm:$0xff]
    %v1557 = vmul.f32 %v1517, %v1517
    %v1558 = vmul.f32 %v1518, %v1518
    %v1559 = vsel %vm102, %v1557, 0.0
    %1560 = vadd.xlane.f32.xlu0 %v1559
    %v1561 = vpop.xlane.xlu0 %1560
    %v1562 = vsel %vm102, %v1558, 0.0
    %1563 = vadd.xlane.f32.xlu0 %v1562
    %v1564 = vpop.xlane.xlu0 %1563
    %v1565 = vmul.f32 %v1561, %v109
    %v1566 = vmul.f32 %v1564, %v109
    %v1567 = vadd.f32 %v1565, 1.1920929e-07
    %v1568 = vadd.f32 %v1566, 1.1920929e-07
    %v1569 = vrsqrt.pop %v1567
    %v1570 = vrsqrt.pop %v1568
    %v1571 = vmul.f32 %v1517, %v1569
    %v1572 = vmul.f32 %v1518, %v1570
    %v1573 = vlaneseq
    %v1574 = vshrl.u32 %v1573, 7
    %v1575 = vsub.s32 0, %v1574
    %v1576 = vrot.slane %v1556, %v1575
    %v1577 = vmul.f32 %v1571, %v1576
    %v1578 = vmul.f32 %v1572, %v1576
    %v1579 = vpack.c.bf16 %v1578, %v1577
    %v1580 = vlaneseq
    %v1581 = vshrl.u32 %v1580, 7
    %v1582 = vsub.s32 1, %v1581
    %v1583 = vrot.slane %v1556, %v1582
    %v1588 = vunpack.c.l.b16 %v1520
    %v1589 = vunpack.c.l.b16 %v1521
    %v1590 = vunpack.c.l.b16 %v1522
    %v1591 = vunpack.c.l.b16 %v1523
    %v1592 = vpack.c.b16 %v1589, %v1588
    %v1593 = vpack.c.b16 %v1591, %v1590
    %v1597 = vsel %vm102, %v1579, 0
    %1599 = vmatprep.subr.bf16.mxu0 0
    %1600 = vmatpush1.bf16.msra.mxu0 %v1592
    %1601 = vmatprep.subr.bf16.mxu0 0
    %1602 = vmatpush1.bf16.msra.mxu0 %v1593
    %1603 = vmatprep.subr.bf16.mxu0 0
    %1604 = vmatpush1.bf16.msra.mxu0 0
    %1605 = vmatprep.subr.bf16.mxu0 0
    %1606 = vmatpush1.bf16.msra.mxu0 0
    %1607 = vmatprep.subr.bf16.mxu0 0
    %1608 = vmatpush1.bf16.msra.mxu0 0
    %1609 = vmatprep.subr.bf16.mxu0 0
    %1610 = vmatpush1.bf16.msra.mxu0 0
    %1611 = vmatprep.subr.bf16.mxu0 0
    %1612 = vmatpush1.bf16.msra.mxu0 0
    %1613 = vmatprep.subr.bf16.mxu0 0
    %1614 = vmatpush1.bf16.msra.mxu0 0
    %1615 = vmatprep.subr.bf16.mxu0 0
    %1616 = vmatpush1.bf16.msra.mxu0 0
    %1617 = vmatprep.subr.bf16.mxu0 0
    %1618 = vmatpush1.bf16.msra.mxu0 0
    %1619 = vmatprep.subr.bf16.mxu0 0
    %1620 = vmatpush1.bf16.msra.mxu0 0
    %1621 = vmatprep.subr.bf16.mxu0 0
    %1622 = vmatpush1.bf16.msra.mxu0 0
    %1623 = vmatprep.subr.bf16.mxu0 0
    %1624 = vmatpush1.bf16.msra.mxu0 0
    %1625 = vmatprep.subr.bf16.mxu0 0
    %1626 = vmatpush1.bf16.msra.mxu0 0
    %1627 = vmatprep.subr.bf16.mxu0 0
    %1628 = vmatpush1.bf16.msra.mxu0 0
    %1629 = vmatprep.subr.bf16.mxu0 0
    %1630 = vmatpush1.bf16.msra.mxu0 0
    %1631 = vmatprep.mubr.bf16.mxu0 0
    %1632 = vmatmul.mubr.bf16.gmra.mrb[0].mxu0 %v1597
    %v1633 = vpop.f32.mrb[0].mxu0
    %v1634 = vadd.f32 %v1583, %v1633
    %v1635 = vpop.f32.mrb[0].mxu0
    %v1636 = vpop.f32.mrb[0].mxu0
    %v1637 = vadd.f32 %v1583, %v1636
    %v1638 = vpop.f32.mrb[0].mxu0
    %1639 = vdwg.mxu0
    %1640 = vrot.lane.b32.xlu0 %v1592, 96
    %v1641 = vpop.permute.xlu0 %1640
    %1642 = vrot.lane.b32.xlu0 %v1593, 96
    %v1643 = vpop.permute.xlu0 %1642
    %1647 = vrot.lane.b32.xlu0 %v1583, 96
    %v1648 = vpop.permute.xlu0 %1647
    %1650 = vmatprep.subr.bf16.mxu0 0
    %1651 = vmatpush1.bf16.msra.mxu0 %v1641
    %1652 = vmatprep.subr.bf16.mxu0 0
    %1653 = vmatpush1.bf16.msra.mxu0 %v1643
    %1654 = vmatprep.subr.bf16.mxu0 0
    %1655 = vmatpush1.bf16.msra.mxu0 0
    %1656 = vmatprep.subr.bf16.mxu0 0
    %1657 = vmatpush1.bf16.msra.mxu0 0
    %1658 = vmatprep.subr.bf16.mxu0 0
    %1659 = vmatpush1.bf16.msra.mxu0 0
    %1660 = vmatprep.subr.bf16.mxu0 0
    %1661 = vmatpush1.bf16.msra.mxu0 0
    %1662 = vmatprep.subr.bf16.mxu0 0
    %1663 = vmatpush1.bf16.msra.mxu0 0
    %1664 = vmatprep.subr.bf16.mxu0 0
    %1665 = vmatpush1.bf16.msra.mxu0 0
    %1666 = vmatprep.subr.bf16.mxu0 0
    %1667 = vmatpush1.bf16.msra.mxu0 0
    %1668 = vmatprep.subr.bf16.mxu0 0
    %1669 = vmatpush1.bf16.msra.mxu0 0
    %1670 = vmatprep.subr.bf16.mxu0 0
    %1671 = vmatpush1.bf16.msra.mxu0 0
    %1672 = vmatprep.subr.bf16.mxu0 0
    %1673 = vmatpush1.bf16.msra.mxu0 0
    %1674 = vmatprep.subr.bf16.mxu0 0
    %1675 = vmatpush1.bf16.msra.mxu0 0
    %1676 = vmatprep.subr.bf16.mxu0 0
    %1677 = vmatpush1.bf16.msra.mxu0 0
    %1678 = vmatprep.subr.bf16.mxu0 0
    %1679 = vmatpush1.bf16.msra.mxu0 0
    %1680 = vmatprep.subr.bf16.mxu0 0
    %1681 = vmatpush1.bf16.msra.mxu0 0
    %1682 = vmatprep.mubr.bf16.mxu0 0
    %1683 = vmatmul.mubr.bf16.gmra.mrb[0].mxu0 %v206
    %v1684 = vpop.f32.mrb[0].mxu0
    %v1685 = vadd.f32 %v1648, %v1684
    %v1686 = vpop.f32.mrb[0].mxu0
    %v1687 = vpop.f32.mrb[0].mxu0
    %v1688 = vadd.f32 %v1648, %v1687
    %v1689 = vpop.f32.mrb[0].mxu0
    %1690 = vmatprep.mubr.bf16.mxu0 0
    %1691 = vmatmul.mubr.bf16.gmra.mrb[0].mxu0 %v209
    %v1692 = vpop.f32.mrb[0].mxu0
    %v1693 = vadd.f32 %v1648, %v1692
    %v1694 = vpop.f32.mrb[0].mxu0
    %v1695 = vpop.f32.mrb[0].mxu0
    %v1696 = vadd.f32 %v1648, %v1695
    %v1697 = vpop.f32.mrb[0].mxu0
    %1698 = vdwg.mxu0
    %v1699 = vpack.c.bf16 %v1688, %v1685
    %v1700 = vpack.c.bf16 %v1696, %v1693
    %v1701 = vpack.c.bf16 %v1637, %v1634
    %v1702 = vmul.bf16 %v1701, %v279
    %v1703 = vmul.bf16 %v1701, %v280
    %v1704 = vmul.bf16 %v1701, %v281
    %v1705 = vmul.bf16 %v1701, %v282
    %v1707 = vsel %vm102, %v1702, 0
    %v1710 = vsel %vm102, %v1703, 0
    %v1713 = vsel %vm102, %v1704, 0
    %v1716 = vsel %vm102, %v1705, 0
    %v1719 = vsel %vm102, %v1699, 0
    %v1722 = vsel %vm102, %v1700, 0
    %1724 = vmatprep.subr.bf16.mxu0 0
    %1725 = vmatpush1.bf16.xpose.msra.mxu0 %v1719
    %1726 = vmatprep.subr.bf16.mxu0 0
    %1727 = vmatpush1.bf16.xpose.msra.mxu0 %v1722
    %1728 = vmatprep.subr.bf16.mxu0 0
    %1729 = vmatpush1.bf16.xpose.msra.mxu0 0
    %1730 = vmatprep.subr.bf16.mxu0 0
    %1731 = vmatpush1.bf16.xpose.msra.mxu0 0
    %1732 = vmatprep.subr.bf16.mxu0 0
    %1733 = vmatpush1.bf16.xpose.msra.mxu0 0
    %1734 = vmatprep.subr.bf16.mxu0 0
    %1735 = vmatpush1.bf16.xpose.msra.mxu0 0
    %1736 = vmatprep.subr.bf16.mxu0 0
    %1737 = vmatpush1.bf16.xpose.msra.mxu0 0
    %1738 = vmatprep.subr.bf16.mxu0 0
    %1739 = vmatpush1.bf16.xpose.msra.mxu0 0
    %1740 = vmatprep.subr.bf16.mxu0 0
    %1741 = vmatpush1.bf16.xpose.msra.mxu0 0
    %1742 = vmatprep.subr.bf16.mxu0 0
    %1743 = vmatpush1.bf16.xpose.msra.mxu0 0
    %1744 = vmatprep.subr.bf16.mxu0 0
    %1745 = vmatpush1.bf16.xpose.msra.mxu0 0
    %1746 = vmatprep.subr.bf16.mxu0 0
    %1747 = vmatpush1.bf16.xpose.msra.mxu0 0
    %1748 = vmatprep.subr.bf16.mxu0 0
    %1749 = vmatpush1.bf16.xpose.msra.mxu0 0
    %1750 = vmatprep.subr.bf16.mxu0 0
    %1751 = vmatpush1.bf16.xpose.msra.mxu0 0
    %1752 = vmatprep.subr.bf16.mxu0 0
    %1753 = vmatpush1.bf16.xpose.msra.mxu0 0
    %1754 = vmatprep.subr.bf16.mxu0 0
    %1755 = vmatpush1.bf16.xpose.msra.mxu0 0
    %1756 = vmatprep.mubr.bf16.mxu0 0
    %1757 = vmatmul.mubr.bf16.gmra.mrb[0].mxu0 %v1707
    %v1758 = vpop.f32.mrb[0].mxu0
    %v1759 = vadd.f32 0.0, %v1758
    %v1760 = vpop.f32.mrb[0].mxu0
    %v1761 = vpop.f32.mrb[0].mxu0
    %v1762 = vadd.f32 0.0, %v1761
    %v1763 = vpop.f32.mrb[0].mxu0
    %1764 = vmatprep.mubr.bf16.mxu0 0
    %1765 = vmatmul.mubr.bf16.gmra.mrb[0].mxu0 %v1710
    %v1766 = vpop.f32.mrb[0].mxu0
    %v1767 = vadd.f32 0.0, %v1766
    %v1768 = vpop.f32.mrb[0].mxu0
    %v1769 = vpop.f32.mrb[0].mxu0
    %v1770 = vadd.f32 0.0, %v1769
    %v1771 = vpop.f32.mrb[0].mxu0
    %1772 = vmatprep.mubr.bf16.mxu0 0
    %1773 = vmatmul.mubr.bf16.gmra.mrb[0].mxu0 %v1713
    %v1774 = vpop.f32.mrb[0].mxu0
    %v1775 = vadd.f32 0.0, %v1774
    %v1776 = vpop.f32.mrb[0].mxu0
    %v1777 = vpop.f32.mrb[0].mxu0
    %v1778 = vadd.f32 0.0, %v1777
    %v1779 = vpop.f32.mrb[0].mxu0
    %1780 = vmatprep.mubr.bf16.mxu0 0
    %1781 = vmatmul.mubr.bf16.gmra.mrb[0].mxu0 %v1716
    %v1782 = vpop.f32.mrb[0].mxu0
    %v1783 = vadd.f32 0.0, %v1782
    %v1784 = vpop.f32.mrb[0].mxu0
    %v1785 = vpop.f32.mrb[0].mxu0
    %v1786 = vadd.f32 0.0, %v1785
    %v1787 = vpop.f32.mrb[0].mxu0
    %1788 = vdwg.mxu0
    %v1789 = vmul.f32 %v1759, 0.35355338
    %v1790 = vmul.f32 %v1762, 0.35355338
    %v1791 = vmul.f32 %v1767, 0.35355338
    %v1792 = vmul.f32 %v1770, 0.35355338
    %v1793 = vmul.f32 %v1775, 0.35355338
    %v1794 = vmul.f32 %v1778, 0.35355338
    %v1795 = vmul.f32 %v1783, 0.35355338
    %v1796 = vmul.f32 %v1786, 0.35355338
    %v1797 = vadd.f32 %v1789, %v51
    %v1798 = vadd.f32 %v1790, %v52
    %v1799 = vadd.f32 %v1791, %v53
    %v1800 = vadd.f32 %v1792, %v54
    %v1801 = vadd.f32 %v1793, %v55
    %v1802 = vadd.f32 %v1794, %v56
    %v1803 = vadd.f32 %v1795, %v57
    %v1804 = vadd.f32 %v1796, %v58
    %v1805 = vsel %vm102, %v1797, -inf
    %1806 = vmax.xlane.f32.xlu0 %v1805
    %v1807 = vpop.xlane.xlu0 %1806
    %v1808 = vsel %vm102, %v1798, -inf
    %1809 = vmax.xlane.f32.xlu0 %v1808
    %v1810 = vpop.xlane.xlu0 %1809
    %v1811 = vsel %vm102, %v1799, -inf
    %1812 = vmax.xlane.f32.xlu0 %v1811
    %v1813 = vpop.xlane.xlu0 %1812
    %v1814 = vsel %vm102, %v1800, -inf
    %1815 = vmax.xlane.f32.xlu0 %v1814
    %v1816 = vpop.xlane.xlu0 %1815
    %v1817 = vsel %vm102, %v1801, -inf
    %1818 = vmax.xlane.f32.xlu0 %v1817
    %v1819 = vpop.xlane.xlu0 %1818
    %v1820 = vsel %vm102, %v1802, -inf
    %1821 = vmax.xlane.f32.xlu0 %v1820
    %v1822 = vpop.xlane.xlu0 %1821
    %v1823 = vsel %vm102, %v1803, -inf
    %1824 = vmax.xlane.f32.xlu0 %v1823
    %v1825 = vpop.xlane.xlu0 %1824
    %v1826 = vsel %vm102, %v1804, -inf
    %1827 = vmax.xlane.f32.xlu0 %v1826
    %v1828 = vpop.xlane.xlu0 %1827
    %v1829 = vsub.f32 %v1797, %v1807
    %v1830 = vsub.f32 %v1798, %v1810
    %v1831 = vsub.f32 %v1799, %v1813
    %v1832 = vsub.f32 %v1800, %v1816
    %v1833 = vsub.f32 %v1801, %v1819
    %v1834 = vsub.f32 %v1802, %v1822
    %v1835 = vsub.f32 %v1803, %v1825
    %v1836 = vsub.f32 %v1804, %v1828
    %v1837 = vmul.f32 %v1829, 1.442695
    %v1838 = vpow.pop %v1837
    %v1839 = vmul.f32 %v1830, 1.442695
    %v1840 = vpow.pop %v1839
    %v1841 = vmul.f32 %v1831, 1.442695
    %v1842 = vpow.pop %v1841
    %v1843 = vmul.f32 %v1832, 1.442695
    %v1844 = vpow.pop %v1843
    %v1845 = vmul.f32 %v1833, 1.442695
    %v1846 = vpow.pop %v1845
    %v1847 = vmul.f32 %v1834, 1.442695
    %v1848 = vpow.pop %v1847
    %v1849 = vmul.f32 %v1835, 1.442695
    %v1850 = vpow.pop %v1849
    %v1851 = vmul.f32 %v1836, 1.442695
    %v1852 = vpow.pop %v1851
    %v1853 = vsel %vm102, %v1838, 0.0
    %1854 = vadd.xlane.f32.xlu0 %v1853
    %v1855 = vpop.xlane.xlu0 %1854
    %v1856 = vsel %vm102, %v1840, 0.0
    %1857 = vadd.xlane.f32.xlu0 %v1856
    %v1858 = vpop.xlane.xlu0 %1857
    %v1859 = vsel %vm102, %v1842, 0.0
    %1860 = vadd.xlane.f32.xlu0 %v1859
    %v1861 = vpop.xlane.xlu0 %1860
    %v1862 = vsel %vm102, %v1844, 0.0
    %1863 = vadd.xlane.f32.xlu0 %v1862
    %v1864 = vpop.xlane.xlu0 %1863
    %v1865 = vsel %vm102, %v1846, 0.0
    %1866 = vadd.xlane.f32.xlu0 %v1865
    %v1867 = vpop.xlane.xlu0 %1866
    %v1868 = vsel %vm102, %v1848, 0.0
    %1869 = vadd.xlane.f32.xlu0 %v1868
    %v1870 = vpop.xlane.xlu0 %1869
    %v1871 = vsel %vm102, %v1850, 0.0
    %1872 = vadd.xlane.f32.xlu0 %v1871
    %v1873 = vpop.xlane.xlu0 %1872
    %v1874 = vsel %vm102, %v1852, 0.0
    %1875 = vadd.xlane.f32.xlu0 %v1874
    %v1876 = vpop.xlane.xlu0 %1875
    %v1877 = vrcp.pop %v1855
    %v1878 = vrcp.pop %v1858
    %v1879 = vrcp.pop %v1861
    %v1880 = vrcp.pop %v1864
    %v1881 = vrcp.pop %v1867
    %v1882 = vrcp.pop %v1870
    %v1883 = vrcp.pop %v1873
    %v1884 = vrcp.pop %v1876
    %v1885 = vmul.f32 %v1838, %v1877
    %v1886 = vmul.f32 %v1840, %v1878
    %v1887 = vmul.f32 %v1842, %v1879
    %v1888 = vmul.f32 %v1844, %v1880
    %v1889 = vmul.f32 %v1846, %v1881
    %v1890 = vmul.f32 %v1848, %v1882
    %v1891 = vmul.f32 %v1850, %v1883
    %v1892 = vmul.f32 %v1852, %v1884
    %v1893 = vpack.c.bf16 %v1886, %v1885
    %v1894 = vpack.c.bf16 %v1888, %v1887
    %v1895 = vpack.c.bf16 %v1890, %v1889
    %v1896 = vpack.c.bf16 %v1892, %v1891
    %1899 = vrot.lane.b32.xlu0 %v1699, 96
    %v1900 = vpop.permute.xlu0 %1899
    %1901 = vrot.lane.b32.xlu0 %v1700, 96
    %v1902 = vpop.permute.xlu0 %1901
    %v1906 = vsel %vm102, %v1893, 0
    %v1909 = vsel %vm102, %v1894, 0
    %v1912 = vsel %vm102, %v1895, 0
    %v1915 = vsel %vm102, %v1896, 0
    %1917 = vmatprep.subr.bf16.mxu0 0
    %1918 = vmatpush1.bf16.msra.mxu0 %v1900
    %1919 = vmatprep.subr.bf16.mxu0 0
    %1920 = vmatpush1.bf16.msra.mxu0 %v1902
    %1921 = vmatprep.subr.bf16.mxu0 0
    %1922 = vmatpush1.bf16.msra.mxu0 0
    %1923 = vmatprep.subr.bf16.mxu0 0
    %1924 = vmatpush1.bf16.msra.mxu0 0
    %1925 = vmatprep.subr.bf16.mxu0 0
    %1926 = vmatpush1.bf16.msra.mxu0 0
    %1927 = vmatprep.subr.bf16.mxu0 0
    %1928 = vmatpush1.bf16.msra.mxu0 0
    %1929 = vmatprep.subr.bf16.mxu0 0
    %1930 = vmatpush1.bf16.msra.mxu0 0
    %1931 = vmatprep.subr.bf16.mxu0 0
    %1932 = vmatpush1.bf16.msra.mxu0 0
    %1933 = vmatprep.subr.bf16.mxu0 0
    %1934 = vmatpush1.bf16.msra.mxu0 0
    %1935 = vmatprep.subr.bf16.mxu0 0
    %1936 = vmatpush1.bf16.msra.mxu0 0
    %1937 = vmatprep.subr.bf16.mxu0 0
    %1938 = vmatpush1.bf16.msra.mxu0 0
    %1939 = vmatprep.subr.bf16.mxu0 0
    %1940 = vmatpush1.bf16.msra.mxu0 0
    %1941 = vmatprep.subr.bf16.mxu0 0
    %1942 = vmatpush1.bf16.msra.mxu0 0
    %1943 = vmatprep.subr.bf16.mxu0 0
    %1944 = vmatpush1.bf16.msra.mxu0 0
    %1945 = vmatprep.subr.bf16.mxu0 0
    %1946 = vmatpush1.bf16.msra.mxu0 0
    %1947 = vmatprep.subr.bf16.mxu0 0
    %1948 = vmatpush1.bf16.msra.mxu0 0
    %1949 = vmatprep.mubr.bf16.mxu0 0
    %1950 = vmatmul.mubr.bf16.gmra.mrb[0].mxu0 %v1906
    %v1951 = vpop.f32.mrb[0].mxu0
    %v1952 = vadd.f32 0.0, %v1951
    %v1953 = vpop.f32.mrb[0].mxu0
    %v1954 = vpop.f32.mrb[0].mxu0
    %v1955 = vadd.f32 0.0, %v1954
    %v1956 = vpop.f32.mrb[0].mxu0
    %1957 = vmatprep.mubr.bf16.mxu0 0
    %1958 = vmatmul.mubr.bf16.gmra.mrb[0].mxu0 %v1909
    %v1959 = vpop.f32.mrb[0].mxu0
    %v1960 = vadd.f32 0.0, %v1959
    %v1961 = vpop.f32.mrb[0].mxu0
    %v1962 = vpop.f32.mrb[0].mxu0
    %v1963 = vadd.f32 0.0, %v1962
    %v1964 = vpop.f32.mrb[0].mxu0
    %1965 = vmatprep.mubr.bf16.mxu0 0
    %1966 = vmatmul.mubr.bf16.gmra.mrb[0].mxu0 %v1912
    %v1967 = vpop.f32.mrb[0].mxu0
    %v1968 = vadd.f32 0.0, %v1967
    %v1969 = vpop.f32.mrb[0].mxu0
    %v1970 = vpop.f32.mrb[0].mxu0
    %v1971 = vadd.f32 0.0, %v1970
    %v1972 = vpop.f32.mrb[0].mxu0
    %1973 = vmatprep.mubr.bf16.mxu0 0
    %1974 = vmatmul.mubr.bf16.gmra.mrb[0].mxu0 %v1915
    %v1975 = vpop.f32.mrb[0].mxu0
    %v1976 = vadd.f32 0.0, %v1975
    %v1977 = vpop.f32.mrb[0].mxu0
    %v1978 = vpop.f32.mrb[0].mxu0
    %v1979 = vadd.f32 0.0, %v1978
    %v1980 = vpop.f32.mrb[0].mxu0
    %1981 = vdwg.mxu0
    %v1982 = vpack.c.bf16 %v1955, %v1952
    %v1983 = vpack.c.bf16 %v1963, %v1960
    %v1984 = vpack.c.bf16 %v1971, %v1968
    %v1985 = vpack.c.bf16 %v1979, %v1976
    %1987 = vrot.lane.b32.xlu0 %v1983, 32
    %v1988 = vpop.permute.xlu0 %1987
    %1990 = vrot.lane.b32.xlu0 %v1984, 64
    %v1991 = vpop.permute.xlu0 %1990
    %1993 = vrot.lane.b32.xlu0 %v1985, 96
    %v1994 = vpop.permute.xlu0 %1993
    %v1997 = vsel %vm102, %v1982, %v1988
    %v1999 = vsel %vm583, %v1997, %v1991
    %v2001 = vsel %vm586, %v1999, %v1994
    %v2003 = vlaneseq
    %v2004 = vshrl.u32 %v2003, 7
    %v2005 = vsub.s32 2, %v2004
    %v2006 = vrot.slane %v1556, %v2005
    %v2023 = vunpack.c.l.b16 %v1525
    %v2024 = vunpack.c.l.b16 %v1526
    %v2025 = vunpack.c.l.b16 %v1527
    %v2026 = vunpack.c.l.b16 %v1528
    %v2027 = vunpack.c.l.b16 %v1529
    %v2028 = vunpack.c.l.b16 %v1530
    %v2029 = vunpack.c.l.b16 %v1531
    %v2030 = vunpack.c.l.b16 %v1532
    %v2031 = vunpack.c.l.b16 %v1533
    %v2032 = vunpack.c.l.b16 %v1534
    %v2033 = vunpack.c.l.b16 %v1535
    %v2034 = vunpack.c.l.b16 %v1536
    %v2035 = vunpack.c.l.b16 %v1537
    %v2036 = vunpack.c.l.b16 %v1538
    %v2037 = vunpack.c.l.b16 %v1539
    %v2038 = vunpack.c.l.b16 %v1540
    %v2039 = vpack.c.b16 %v2024, %v2023
    %v2040 = vpack.c.b16 %v2026, %v2025
    %v2041 = vpack.c.b16 %v2028, %v2027
    %v2042 = vpack.c.b16 %v2030, %v2029
    %v2043 = vpack.c.b16 %v2032, %v2031
    %v2044 = vpack.c.b16 %v2034, %v2033
    %v2045 = vpack.c.b16 %v2036, %v2035
    %v2046 = vpack.c.b16 %v2038, %v2037
    %2055 = vmatprep.subr.bf16.mxu0 0
    %2056 = vmatpush1.bf16.msra.mxu0 %v2039
    %2057 = vmatprep.subr.bf16.mxu0 0
    %2058 = vmatpush1.bf16.msra.mxu0 %v2040
    %2059 = vmatprep.subr.bf16.mxu0 0
    %2060 = vmatpush1.bf16.msra.mxu0 %v2041
    %2061 = vmatprep.subr.bf16.mxu0 0
    %2062 = vmatpush1.bf16.msra.mxu0 %v2042
    %2063 = vmatprep.subr.bf16.mxu0 0
    %2064 = vmatpush1.bf16.msra.mxu0 %v2043
    %2065 = vmatprep.subr.bf16.mxu0 0
    %2066 = vmatpush1.bf16.msra.mxu0 %v2044
    %2067 = vmatprep.subr.bf16.mxu0 0
    %2068 = vmatpush1.bf16.msra.mxu0 %v2045
    %2069 = vmatprep.subr.bf16.mxu0 0
    %2070 = vmatpush1.bf16.msra.mxu0 %v2046
    %2071 = vmatprep.subr.bf16.mxu0 0
    %2072 = vmatpush1.bf16.msra.mxu0 0
    %2073 = vmatprep.subr.bf16.mxu0 0
    %2074 = vmatpush1.bf16.msra.mxu0 0
    %2075 = vmatprep.subr.bf16.mxu0 0
    %2076 = vmatpush1.bf16.msra.mxu0 0
    %2077 = vmatprep.subr.bf16.mxu0 0
    %2078 = vmatpush1.bf16.msra.mxu0 0
    %2079 = vmatprep.subr.bf16.mxu0 0
    %2080 = vmatpush1.bf16.msra.mxu0 0
    %2081 = vmatprep.subr.bf16.mxu0 0
    %2082 = vmatpush1.bf16.msra.mxu0 0
    %2083 = vmatprep.subr.bf16.mxu0 0
    %2084 = vmatpush1.bf16.msra.mxu0 0
    %2085 = vmatprep.subr.bf16.mxu0 0
    %2086 = vmatpush1.bf16.msra.mxu0 0
    %2087 = vmatprep.mubr.bf16.mxu0 0
    %2088 = vmatmul.mubr.bf16.gmra.mrb[0].mxu0 %v2001
    %v2089 = vpop.f32.mrb[0].mxu0
    %v2090 = vadd.f32 %v2006, %v2089
    %v2091 = vpop.f32.mrb[0].mxu0
    %v2092 = vpop.f32.mrb[0].mxu0
    %v2093 = vadd.f32 %v2006, %v2092
    %v2094 = vpop.f32.mrb[0].mxu0
    %2095 = vdwg.mxu0
    %v2096 = vadd.f32 %v2090, %v1577
    %v2097 = vadd.f32 %v2093, %v1578
    %v2098 = vmul.f32 %v2096, %v2096
    %v2099 = vmul.f32 %v2097, %v2097
    %v2100 = vsel %vm102, %v2098, 0.0
    %2101 = vadd.xlane.f32.xlu0 %v2100
    %v2102 = vpop.xlane.xlu0 %2101
    %v2103 = vsel %vm102, %v2099, 0.0
    %2104 = vadd.xlane.f32.xlu0 %v2103
    %v2105 = vpop.xlane.xlu0 %2104
    %v2106 = vmul.f32 %v2102, %v109
    %v2107 = vmul.f32 %v2105, %v109
    %v2108 = vadd.f32 %v2106, 1.1920929e-07
    %v2109 = vadd.f32 %v2107, 1.1920929e-07
    %v2110 = vrsqrt.pop %v2108
    %v2111 = vrsqrt.pop %v2109
    %v2112 = vmul.f32 %v2096, %v2110
    %v2113 = vmul.f32 %v2097, %v2111
    %v2114 = vlaneseq
    %v2115 = vshrl.u32 %v2114, 7
    %v2116 = vsub.s32 3, %v2115
    %v2117 = vrot.slane %v1556, %v2116
    %v2118 = vmul.f32 %v2112, %v2117
    %v2119 = vmul.f32 %v2113, %v2117
    %v2120 = vpack.c.bf16 %v2119, %v2118
    %v2121 = vlaneseq
    %v2122 = vshrl.u32 %v2121, 7
    %v2123 = vsub.s32 4, %v2122
    %v2124 = vrot.slane %v1556, %v2123
    %v2129 = vunpack.c.l.b16 %v1542
    %v2130 = vunpack.c.l.b16 %v1543
    %v2131 = vunpack.c.l.b16 %v1544
    %v2132 = vunpack.c.l.b16 %v1545
    %v2133 = vpack.c.b16 %v2130, %v2129
    %v2134 = vpack.c.b16 %v2132, %v2131
    %v2138 = vsel %vm102, %v2120, 0
    %2140 = vmatprep.subr.bf16.mxu0 0
    %2141 = vmatpush1.bf16.msra.mxu0 %v2133
    %2142 = vmatprep.subr.bf16.mxu0 0
    %2143 = vmatpush1.bf16.msra.mxu0 %v2134
    %2144 = vmatprep.subr.bf16.mxu0 0
    %2145 = vmatpush1.bf16.msra.mxu0 0
    %2146 = vmatprep.subr.bf16.mxu0 0
    %2147 = vmatpush1.bf16.msra.mxu0 0
    %2148 = vmatprep.subr.bf16.mxu0 0
    %2149 = vmatpush1.bf16.msra.mxu0 0
    %2150 = vmatprep.subr.bf16.mxu0 0
    %2151 = vmatpush1.bf16.msra.mxu0 0
    %2152 = vmatprep.subr.bf16.mxu0 0
    %2153 = vmatpush1.bf16.msra.mxu0 0
    %2154 = vmatprep.subr.bf16.mxu0 0
    %2155 = vmatpush1.bf16.msra.mxu0 0
    %2156 = vmatprep.subr.bf16.mxu0 0
    %2157 = vmatpush1.bf16.msra.mxu0 0
    %2158 = vmatprep.subr.bf16.mxu0 0
    %2159 = vmatpush1.bf16.msra.mxu0 0
    %2160 = vmatprep.subr.bf16.mxu0 0
    %2161 = vmatpush1.bf16.msra.mxu0 0
    %2162 = vmatprep.subr.bf16.mxu0 0
    %2163 = vmatpush1.bf16.msra.mxu0 0
    %2164 = vmatprep.subr.bf16.mxu0 0
    %2165 = vmatpush1.bf16.msra.mxu0 0
    %2166 = vmatprep.subr.bf16.mxu0 0
    %2167 = vmatpush1.bf16.msra.mxu0 0
    %2168 = vmatprep.subr.bf16.mxu0 0
    %2169 = vmatpush1.bf16.msra.mxu0 0
    %2170 = vmatprep.subr.bf16.mxu0 0
    %2171 = vmatpush1.bf16.msra.mxu0 0
    %2172 = vmatprep.mubr.bf16.mxu0 0
    %2173 = vmatmul.mubr.bf16.gmra.mrb[0].mxu0 %v2138
    %v2174 = vpop.f32.mrb[0].mxu0
    %v2175 = vadd.f32 %v2124, %v2174
    %v2176 = vpop.f32.mrb[0].mxu0
    %v2177 = vpop.f32.mrb[0].mxu0
    %v2178 = vadd.f32 %v2124, %v2177
    %v2179 = vpop.f32.mrb[0].mxu0
    %2180 = vdwg.mxu0
    %v2181 = vmax.f32 %v2175, 0.0
    %v2182 = vmax.f32 %v2178, 0.0
    %v2183 = vpack.c.bf16 %v2182, %v2181
    %v2184 = vlaneseq
    %v2185 = vshrl.u32 %v2184, 7
    %v2186 = vsub.s32 5, %v2185
    %v2187 = vrot.slane %v1556, %v2186
    %v2196 = vunpack.c.l.b16 %v1547
    %v2197 = vunpack.c.l.b16 %v1548
    %v2198 = vunpack.c.l.b16 %v1549
    %v2199 = vunpack.c.l.b16 %v1550
    %v2200 = vunpack.c.l.b16 %v1551
    %v2201 = vunpack.c.l.b16 %v1552
    %v2202 = vunpack.c.l.b16 %v1553
    %v2203 = vunpack.c.l.b16 %v1554
    %v2204 = vpack.c.b16 %v2197, %v2196
    %v2205 = vpack.c.b16 %v2199, %v2198
    %v2206 = vpack.c.b16 %v2201, %v2200
    %v2207 = vpack.c.b16 %v2203, %v2202
    %v2213 = vsel %vm583, %v2183, 0
    %2215 = vmatprep.subr.bf16.mxu0 0
    %2216 = vmatpush1.bf16.msra.mxu0 %v2204
    %2217 = vmatprep.subr.bf16.mxu0 0
    %2218 = vmatpush1.bf16.msra.mxu0 %v2205
    %2219 = vmatprep.subr.bf16.mxu0 0
    %2220 = vmatpush1.bf16.msra.mxu0 %v2206
    %2221 = vmatprep.subr.bf16.mxu0 0
    %2222 = vmatpush1.bf16.msra.mxu0 %v2207
    %2223 = vmatprep.subr.bf16.mxu0 0
    %2224 = vmatpush1.bf16.msra.mxu0 0
    %2225 = vmatprep.subr.bf16.mxu0 0
    %2226 = vmatpush1.bf16.msra.mxu0 0
    %2227 = vmatprep.subr.bf16.mxu0 0
    %2228 = vmatpush1.bf16.msra.mxu0 0
    %2229 = vmatprep.subr.bf16.mxu0 0
    %2230 = vmatpush1.bf16.msra.mxu0 0
    %2231 = vmatprep.subr.bf16.mxu0 0
    %2232 = vmatpush1.bf16.msra.mxu0 0
    %2233 = vmatprep.subr.bf16.mxu0 0
    %2234 = vmatpush1.bf16.msra.mxu0 0
    %2235 = vmatprep.subr.bf16.mxu0 0
    %2236 = vmatpush1.bf16.msra.mxu0 0
    %2237 = vmatprep.subr.bf16.mxu0 0
    %2238 = vmatpush1.bf16.msra.mxu0 0
    %2239 = vmatprep.subr.bf16.mxu0 0
    %2240 = vmatpush1.bf16.msra.mxu0 0
    %2241 = vmatprep.subr.bf16.mxu0 0
    %2242 = vmatpush1.bf16.msra.mxu0 0
    %2243 = vmatprep.subr.bf16.mxu0 0
    %2244 = vmatpush1.bf16.msra.mxu0 0
    %2245 = vmatprep.subr.bf16.mxu0 0
    %2246 = vmatpush1.bf16.msra.mxu0 0
    %2247 = vmatprep.mubr.bf16.mxu0 0
    %2248 = vmatmul.mubr.bf16.gmra.mrb[0].mxu0 %v2213
    %v2249 = vpop.f32.mrb[0].mxu0
    %v2250 = vadd.f32 %v2187, %v2249
    %v2251 = vpop.f32.mrb[0].mxu0
    %v2252 = vpop.f32.mrb[0].mxu0
    %v2253 = vadd.f32 %v2187, %v2252
    %v2254 = vpop.f32.mrb[0].mxu0
    %2255 = vdwg.mxu0
    %v2256 = vadd.f32 %v2250, %v2118
    %v2257 = vadd.f32 %v2253, %v2119
    %s2258 = scalar_lea.vmem %s5, 48
    %v2259 = vld [vmem:[%s2258] sm:$0xf]
    %v2260 = vld [vmem:[%s2258 + $0x4] sm:$0xf]
    %v2261 = vld [vmem:[%s2258 + $0x8] sm:$0xf]
    %v2262 = vld [vmem:[%s2258 + $0xc] sm:$0xf]
    %s2263 = scalar_lea.vmem %s6, 192
    %v2264 = vld [vmem:[%s2263] sm:$0xf]
    %v2265 = vld [vmem:[%s2263 + $0x4] sm:$0xf]
    %v2266 = vld [vmem:[%s2263 + $0x8] sm:$0xf]
    %v2267 = vld [vmem:[%s2263 + $0xc] sm:$0xf]
    %v2268 = vld [vmem:[%s2263 + $0x10] sm:$0xf]
    %v2269 = vld [vmem:[%s2263 + $0x14] sm:$0xf]
    %v2270 = vld [vmem:[%s2263 + $0x18] sm:$0xf]
    %v2271 = vld [vmem:[%s2263 + $0x1c] sm:$0xf]
    %v2272 = vld [vmem:[%s2263 + $0x20] sm:$0xf]
    %v2273 = vld [vmem:[%s2263 + $0x24] sm:$0xf]
    %v2274 = vld [vmem:[%s2263 + $0x28] sm:$0xf]
    %v2275 = vld [vmem:[%s2263 + $0x2c] sm:$0xf]
    %v2276 = vld [vmem:[%s2263 + $0x30] sm:$0xf]
    %v2277 = vld [vmem:[%s2263 + $0x34] sm:$0xf]
    %v2278 = vld [vmem:[%s2263 + $0x38] sm:$0xf]
    %v2279 = vld [vmem:[%s2263 + $0x3c] sm:$0xf]
    %s2280 = scalar_lea.vmem %s7, 48
    %v2281 = vld [vmem:[%s2280] sm:$0xf]
    %v2282 = vld [vmem:[%s2280 + $0x4] sm:$0xf]
    %v2283 = vld [vmem:[%s2280 + $0x8] sm:$0xf]
    %v2284 = vld [vmem:[%s2280 + $0xc] sm:$0xf]
    %s2285 = scalar_lea.vmem %s8, 96
    %v2286 = vld [vmem:[%s2285] sm:$0xf]
    %v2287 = vld [vmem:[%s2285 + $0x4] sm:$0xf]
    %v2288 = vld [vmem:[%s2285 + $0x8] sm:$0xf]
    %v2289 = vld [vmem:[%s2285 + $0xc] sm:$0xf]
    %v2290 = vld [vmem:[%s2285 + $0x10] sm:$0xf]
    %v2291 = vld [vmem:[%s2285 + $0x14] sm:$0xf]
    %v2292 = vld [vmem:[%s2285 + $0x18] sm:$0xf]
    %v2293 = vld [vmem:[%s2285 + $0x1c] sm:$0xf]
    %s2294 = scalar_lea.vmem %s9, 24
    %v2295 = vld [vmem:[%s2294] sm:$0xff]
    %v2296 = vmul.f32 %v2256, %v2256
    %v2297 = vmul.f32 %v2257, %v2257
    %v2298 = vsel %vm102, %v2296, 0.0
    %2299 = vadd.xlane.f32.xlu0 %v2298
    %v2300 = vpop.xlane.xlu0 %2299
    %v2301 = vsel %vm102, %v2297, 0.0
    %2302 = vadd.xlane.f32.xlu0 %v2301
    %v2303 = vpop.xlane.xlu0 %2302
    %v2304 = vmul.f32 %v2300, %v109
    %v2305 = vmul.f32 %v2303, %v109
    %v2306 = vadd.f32 %v2304, 1.1920929e-07
    %v2307 = vadd.f32 %v2305, 1.1920929e-07
    %v2308 = vrsqrt.pop %v2306
    %v2309 = vrsqrt.pop %v2307
    %v2310 = vmul.f32 %v2256, %v2308
    %v2311 = vmul.f32 %v2257, %v2309
    %v2312 = vlaneseq
    %v2313 = vshrl.u32 %v2312, 7
    %v2314 = vsub.s32 0, %v2313
    %v2315 = vrot.slane %v2295, %v2314
    %v2316 = vmul.f32 %v2310, %v2315
    %v2317 = vmul.f32 %v2311, %v2315
    %v2318 = vpack.c.bf16 %v2317, %v2316
    %v2319 = vlaneseq
    %v2320 = vshrl.u32 %v2319, 7
    %v2321 = vsub.s32 1, %v2320
    %v2322 = vrot.slane %v2295, %v2321
    %v2327 = vunpack.c.l.b16 %v2259
    %v2328 = vunpack.c.l.b16 %v2260
    %v2329 = vunpack.c.l.b16 %v2261
    %v2330 = vunpack.c.l.b16 %v2262
    %v2331 = vpack.c.b16 %v2328, %v2327
    %v2332 = vpack.c.b16 %v2330, %v2329
    %v2336 = vsel %vm102, %v2318, 0
    %2338 = vmatprep.subr.bf16.mxu0 0
    %2339 = vmatpush1.bf16.msra.mxu0 %v2331
    %2340 = vmatprep.subr.bf16.mxu0 0
    %2341 = vmatpush1.bf16.msra.mxu0 %v2332
    %2342 = vmatprep.subr.bf16.mxu0 0
    %2343 = vmatpush1.bf16.msra.mxu0 0
    %2344 = vmatprep.subr.bf16.mxu0 0
    %2345 = vmatpush1.bf16.msra.mxu0 0
    %2346 = vmatprep.subr.bf16.mxu0 0
    %2347 = vmatpush1.bf16.msra.mxu0 0
    %2348 = vmatprep.subr.bf16.mxu0 0
    %2349 = vmatpush1.bf16.msra.mxu0 0
    %2350 = vmatprep.subr.bf16.mxu0 0
    %2351 = vmatpush1.bf16.msra.mxu0 0
    %2352 = vmatprep.subr.bf16.mxu0 0
    %2353 = vmatpush1.bf16.msra.mxu0 0
    %2354 = vmatprep.subr.bf16.mxu0 0
    %2355 = vmatpush1.bf16.msra.mxu0 0
    %2356 = vmatprep.subr.bf16.mxu0 0
    %2357 = vmatpush1.bf16.msra.mxu0 0
    %2358 = vmatprep.subr.bf16.mxu0 0
    %2359 = vmatpush1.bf16.msra.mxu0 0
    %2360 = vmatprep.subr.bf16.mxu0 0
    %2361 = vmatpush1.bf16.msra.mxu0 0
    %2362 = vmatprep.subr.bf16.mxu0 0
    %2363 = vmatpush1.bf16.msra.mxu0 0
    %2364 = vmatprep.subr.bf16.mxu0 0
    %2365 = vmatpush1.bf16.msra.mxu0 0
    %2366 = vmatprep.subr.bf16.mxu0 0
    %2367 = vmatpush1.bf16.msra.mxu0 0
    %2368 = vmatprep.subr.bf16.mxu0 0
    %2369 = vmatpush1.bf16.msra.mxu0 0
    %2370 = vmatprep.mubr.bf16.mxu0 0
    %2371 = vmatmul.mubr.bf16.gmra.mrb[0].mxu0 %v2336
    %v2372 = vpop.f32.mrb[0].mxu0
    %v2373 = vadd.f32 %v2322, %v2372
    %v2374 = vpop.f32.mrb[0].mxu0
    %v2375 = vpop.f32.mrb[0].mxu0
    %v2376 = vadd.f32 %v2322, %v2375
    %v2377 = vpop.f32.mrb[0].mxu0
    %2378 = vdwg.mxu0
    %v2379 = vpack.c.bf16 %v2376, %v2373
    %v2380 = vmul.bf16 %v2379, %v279
    %v2381 = vmul.bf16 %v2379, %v280
    %v2382 = vmul.bf16 %v2379, %v281
    %v2383 = vmul.bf16 %v2379, %v282
    %2385 = vrot.lane.b32.xlu0 %v2379, 96
    %v2386 = vpop.permute.xlu0 %2385
    %v2388 = vsel %vm102, %v2380, 0
    %v2391 = vsel %vm102, %v2381, 0
    %v2394 = vsel %vm102, %v2382, 0
    %v2397 = vsel %vm102, %v2383, 0
    %v2400 = vsel %vm102, %v2386, 0
    %2402 = vmatprep.subr.bf16.mxu0 0
    %2403 = vmatpush1.bf16.xpose.msra.mxu0 %v2400
    %2404 = vmatprep.subr.bf16.mxu0 0
    %2405 = vmatpush1.bf16.xpose.msra.mxu0 0
    %2406 = vmatprep.subr.bf16.mxu0 0
    %2407 = vmatpush1.bf16.xpose.msra.mxu0 0
    %2408 = vmatprep.subr.bf16.mxu0 0
    %2409 = vmatpush1.bf16.xpose.msra.mxu0 0
    %2410 = vmatprep.subr.bf16.mxu0 0
    %2411 = vmatpush1.bf16.xpose.msra.mxu0 0
    %2412 = vmatprep.subr.bf16.mxu0 0
    %2413 = vmatpush1.bf16.xpose.msra.mxu0 0
    %2414 = vmatprep.subr.bf16.mxu0 0
    %2415 = vmatpush1.bf16.xpose.msra.mxu0 0
    %2416 = vmatprep.subr.bf16.mxu0 0
    %2417 = vmatpush1.bf16.xpose.msra.mxu0 0
    %2418 = vmatprep.subr.bf16.mxu0 0
    %2419 = vmatpush1.bf16.xpose.msra.mxu0 0
    %2420 = vmatprep.subr.bf16.mxu0 0
    %2421 = vmatpush1.bf16.xpose.msra.mxu0 0
    %2422 = vmatprep.subr.bf16.mxu0 0
    %2423 = vmatpush1.bf16.xpose.msra.mxu0 0
    %2424 = vmatprep.subr.bf16.mxu0 0
    %2425 = vmatpush1.bf16.xpose.msra.mxu0 0
    %2426 = vmatprep.subr.bf16.mxu0 0
    %2427 = vmatpush1.bf16.xpose.msra.mxu0 0
    %2428 = vmatprep.subr.bf16.mxu0 0
    %2429 = vmatpush1.bf16.xpose.msra.mxu0 0
    %2430 = vmatprep.subr.bf16.mxu0 0
    %2431 = vmatpush1.bf16.xpose.msra.mxu0 0
    %2432 = vmatprep.subr.bf16.mxu0 0
    %2433 = vmatpush1.bf16.xpose.msra.mxu0 0
    %2434 = vmatprep.mubr.bf16.mxu0 0
    %2435 = vmatmul.mubr.bf16.gmra.mrb[0].mxu0 %v2388
    %v2436 = vpop.f32.mrb[0].mxu0
    %v2437 = vadd.f32 0.0, %v2436
    %v2438 = vpop.f32.mrb[0].mxu0
    %v2439 = vpop.f32.mrb[0].mxu0
    %v2440 = vadd.f32 0.0, %v2439
    %v2441 = vpop.f32.mrb[0].mxu0
    %2442 = vmatprep.mubr.bf16.mxu0 0
    %2443 = vmatmul.mubr.bf16.gmra.mrb[0].mxu0 %v2391
    %v2444 = vpop.f32.mrb[0].mxu0
    %v2445 = vadd.f32 0.0, %v2444
    %v2446 = vpop.f32.mrb[0].mxu0
    %v2447 = vpop.f32.mrb[0].mxu0
    %v2448 = vadd.f32 0.0, %v2447
    %v2449 = vpop.f32.mrb[0].mxu0
    %2450 = vmatprep.mubr.bf16.mxu0 0
    %2451 = vmatmul.mubr.bf16.gmra.mrb[0].mxu0 %v2394
    %v2452 = vpop.f32.mrb[0].mxu0
    %v2453 = vadd.f32 0.0, %v2452
    %v2454 = vpop.f32.mrb[0].mxu0
    %v2455 = vpop.f32.mrb[0].mxu0
    %v2456 = vadd.f32 0.0, %v2455
    %v2457 = vpop.f32.mrb[0].mxu0
    %2458 = vmatprep.mubr.bf16.mxu0 0
    %2459 = vmatmul.mubr.bf16.gmra.mrb[0].mxu0 %v2397
    %v2460 = vpop.f32.mrb[0].mxu0
    %v2461 = vadd.f32 0.0, %v2460
    %v2462 = vpop.f32.mrb[0].mxu0
    %v2463 = vpop.f32.mrb[0].mxu0
    %v2464 = vadd.f32 0.0, %v2463
    %v2465 = vpop.f32.mrb[0].mxu0
    %2466 = vdwg.mxu0
    %v2467 = vmul.f32 %v2437, 0.35355338
    %v2468 = vmul.f32 %v2440, 0.35355338
    %v2469 = vmul.f32 %v2445, 0.35355338
    %v2470 = vmul.f32 %v2448, 0.35355338
    %v2471 = vmul.f32 %v2453, 0.35355338
    %v2472 = vmul.f32 %v2456, 0.35355338
    %v2473 = vmul.f32 %v2461, 0.35355338
    %v2474 = vmul.f32 %v2464, 0.35355338
    %v2475 = vadd.f32 %v2467, %v59
    %v2476 = vadd.f32 %v2468, %v60
    %v2477 = vadd.f32 %v2469, %v61
    %v2478 = vadd.f32 %v2470, %v62
    %v2479 = vadd.f32 %v2471, %v63
    %v2480 = vadd.f32 %v2472, %v64
    %v2481 = vadd.f32 %v2473, %v65
    %v2482 = vadd.f32 %v2474, %v66
    %v2483 = vsel %vm1070, %v2475, -inf
    %2484 = vmax.xlane.f32.xlu0 %v2483
    %v2485 = vpop.xlane.xlu0 %2484
    %v2486 = vsel %vm1070, %v2476, -inf
    %2487 = vmax.xlane.f32.xlu0 %v2486
    %v2488 = vpop.xlane.xlu0 %2487
    %v2489 = vsel %vm1070, %v2477, -inf
    %2490 = vmax.xlane.f32.xlu0 %v2489
    %v2491 = vpop.xlane.xlu0 %2490
    %v2492 = vsel %vm1070, %v2478, -inf
    %2493 = vmax.xlane.f32.xlu0 %v2492
    %v2494 = vpop.xlane.xlu0 %2493
    %v2495 = vsel %vm1070, %v2479, -inf
    %2496 = vmax.xlane.f32.xlu0 %v2495
    %v2497 = vpop.xlane.xlu0 %2496
    %v2498 = vsel %vm1070, %v2480, -inf
    %2499 = vmax.xlane.f32.xlu0 %v2498
    %v2500 = vpop.xlane.xlu0 %2499
    %v2501 = vsel %vm1070, %v2481, -inf
    %2502 = vmax.xlane.f32.xlu0 %v2501
    %v2503 = vpop.xlane.xlu0 %2502
    %v2504 = vsel %vm1070, %v2482, -inf
    %2505 = vmax.xlane.f32.xlu0 %v2504
    %v2506 = vpop.xlane.xlu0 %2505
    %v2507 = vsub.f32 %v2475, %v2485
    %v2508 = vsub.f32 %v2476, %v2488
    %v2509 = vsub.f32 %v2477, %v2491
    %v2510 = vsub.f32 %v2478, %v2494
    %v2511 = vsub.f32 %v2479, %v2497
    %v2512 = vsub.f32 %v2480, %v2500
    %v2513 = vsub.f32 %v2481, %v2503
    %v2514 = vsub.f32 %v2482, %v2506
    %v2515 = vmul.f32 %v2507, 1.442695
    %v2516 = vpow.pop %v2515
    %v2517 = vmul.f32 %v2508, 1.442695
    %v2518 = vpow.pop %v2517
    %v2519 = vmul.f32 %v2509, 1.442695
    %v2520 = vpow.pop %v2519
    %v2521 = vmul.f32 %v2510, 1.442695
    %v2522 = vpow.pop %v2521
    %v2523 = vmul.f32 %v2511, 1.442695
    %v2524 = vpow.pop %v2523
    %v2525 = vmul.f32 %v2512, 1.442695
    %v2526 = vpow.pop %v2525
    %v2527 = vmul.f32 %v2513, 1.442695
    %v2528 = vpow.pop %v2527
    %v2529 = vmul.f32 %v2514, 1.442695
    %v2530 = vpow.pop %v2529
    %v2531 = vsel %vm1070, %v2516, 0.0
    %2532 = vadd.xlane.f32.xlu0 %v2531
    %v2533 = vpop.xlane.xlu0 %2532
    %v2534 = vsel %vm1070, %v2518, 0.0
    %2535 = vadd.xlane.f32.xlu0 %v2534
    %v2536 = vpop.xlane.xlu0 %2535
    %v2537 = vsel %vm1070, %v2520, 0.0
    %2538 = vadd.xlane.f32.xlu0 %v2537
    %v2539 = vpop.xlane.xlu0 %2538
    %v2540 = vsel %vm1070, %v2522, 0.0
    %2541 = vadd.xlane.f32.xlu0 %v2540
    %v2542 = vpop.xlane.xlu0 %2541
    %v2543 = vsel %vm1070, %v2524, 0.0
    %2544 = vadd.xlane.f32.xlu0 %v2543
    %v2545 = vpop.xlane.xlu0 %2544
    %v2546 = vsel %vm1070, %v2526, 0.0
    %2547 = vadd.xlane.f32.xlu0 %v2546
    %v2548 = vpop.xlane.xlu0 %2547
    %v2549 = vsel %vm1070, %v2528, 0.0
    %2550 = vadd.xlane.f32.xlu0 %v2549
    %v2551 = vpop.xlane.xlu0 %2550
    %v2552 = vsel %vm1070, %v2530, 0.0
    %2553 = vadd.xlane.f32.xlu0 %v2552
    %v2554 = vpop.xlane.xlu0 %2553
    %v2555 = vrcp.pop %v2533
    %v2556 = vrcp.pop %v2536
    %v2557 = vrcp.pop %v2539
    %v2558 = vrcp.pop %v2542
    %v2559 = vrcp.pop %v2545
    %v2560 = vrcp.pop %v2548
    %v2561 = vrcp.pop %v2551
    %v2562 = vrcp.pop %v2554
    %v2563 = vmul.f32 %v2516, %v2555
    %v2564 = vmul.f32 %v2518, %v2556
    %v2565 = vmul.f32 %v2520, %v2557
    %v2566 = vmul.f32 %v2522, %v2558
    %v2567 = vmul.f32 %v2524, %v2559
    %v2568 = vmul.f32 %v2526, %v2560
    %v2569 = vmul.f32 %v2528, %v2561
    %v2570 = vmul.f32 %v2530, %v2562
    %v2571 = vpack.c.bf16 %v2564, %v2563
    %v2572 = vpack.c.bf16 %v2566, %v2565
    %v2573 = vpack.c.bf16 %v2568, %v2567
    %v2574 = vpack.c.bf16 %v2570, %v2569
    %2575 = vrot.lane.b32.xlu0 %v2379, 64
    %v2576 = vpop.permute.xlu0 %2575
    %v2579 = vsel %vm1070, %v2571, 0
    %v2582 = vsel %vm1070, %v2572, 0
    %v2585 = vsel %vm1070, %v2573, 0
    %v2588 = vsel %vm1070, %v2574, 0
    %2590 = vmatprep.subr.bf16.mxu0 0
    %2591 = vmatpush1.bf16.msra.mxu0 %v2576
    %2592 = vmatprep.subr.bf16.mxu0 0
    %2593 = vmatpush1.bf16.msra.mxu0 0
    %2594 = vmatprep.subr.bf16.mxu0 0
    %2595 = vmatpush1.bf16.msra.mxu0 0
    %2596 = vmatprep.subr.bf16.mxu0 0
    %2597 = vmatpush1.bf16.msra.mxu0 0
    %2598 = vmatprep.subr.bf16.mxu0 0
    %2599 = vmatpush1.bf16.msra.mxu0 0
    %2600 = vmatprep.subr.bf16.mxu0 0
    %2601 = vmatpush1.bf16.msra.mxu0 0
    %2602 = vmatprep.subr.bf16.mxu0 0
    %2603 = vmatpush1.bf16.msra.mxu0 0
    %2604 = vmatprep.subr.bf16.mxu0 0
    %2605 = vmatpush1.bf16.msra.mxu0 0
    %2606 = vmatprep.subr.bf16.mxu0 0
    %2607 = vmatpush1.bf16.msra.mxu0 0
    %2608 = vmatprep.subr.bf16.mxu0 0
    %2609 = vmatpush1.bf16.msra.mxu0 0
    %2610 = vmatprep.subr.bf16.mxu0 0
    %2611 = vmatpush1.bf16.msra.mxu0 0
    %2612 = vmatprep.subr.bf16.mxu0 0
    %2613 = vmatpush1.bf16.msra.mxu0 0
    %2614 = vmatprep.subr.bf16.mxu0 0
    %2615 = vmatpush1.bf16.msra.mxu0 0
    %2616 = vmatprep.subr.bf16.mxu0 0
    %2617 = vmatpush1.bf16.msra.mxu0 0
    %2618 = vmatprep.subr.bf16.mxu0 0
    %2619 = vmatpush1.bf16.msra.mxu0 0
    %2620 = vmatprep.subr.bf16.mxu0 0
    %2621 = vmatpush1.bf16.msra.mxu0 0
    %2622 = vmatprep.mubr.bf16.mxu0 0
    %2623 = vmatmul.mubr.bf16.gmra.mrb[0].mxu0 %v2579
    %v2624 = vpop.f32.mrb[0].mxu0
    %v2625 = vadd.f32 0.0, %v2624
    %v2626 = vpop.f32.mrb[0].mxu0
    %v2627 = vpop.f32.mrb[0].mxu0
    %v2628 = vadd.f32 0.0, %v2627
    %v2629 = vpop.f32.mrb[0].mxu0
    %2630 = vmatprep.mubr.bf16.mxu0 0
    %2631 = vmatmul.mubr.bf16.gmra.mrb[0].mxu0 %v2582
    %v2632 = vpop.f32.mrb[0].mxu0
    %v2633 = vadd.f32 0.0, %v2632
    %v2634 = vpop.f32.mrb[0].mxu0
    %v2635 = vpop.f32.mrb[0].mxu0
    %v2636 = vadd.f32 0.0, %v2635
    %v2637 = vpop.f32.mrb[0].mxu0
    %2638 = vmatprep.mubr.bf16.mxu0 0
    %2639 = vmatmul.mubr.bf16.gmra.mrb[0].mxu0 %v2585
    %v2640 = vpop.f32.mrb[0].mxu0
    %v2641 = vadd.f32 0.0, %v2640
    %v2642 = vpop.f32.mrb[0].mxu0
    %v2643 = vpop.f32.mrb[0].mxu0
    %v2644 = vadd.f32 0.0, %v2643
    %v2645 = vpop.f32.mrb[0].mxu0
    %2646 = vmatprep.mubr.bf16.mxu0 0
    %2647 = vmatmul.mubr.bf16.gmra.mrb[0].mxu0 %v2588
    %v2648 = vpop.f32.mrb[0].mxu0
    %v2649 = vadd.f32 0.0, %v2648
    %v2650 = vpop.f32.mrb[0].mxu0
    %v2651 = vpop.f32.mrb[0].mxu0
    %v2652 = vadd.f32 0.0, %v2651
    %v2653 = vpop.f32.mrb[0].mxu0
    %2654 = vdwg.mxu0
    %v2655 = vpack.c.bf16 %v2628, %v2625
    %v2656 = vpack.c.bf16 %v2636, %v2633
    %v2657 = vpack.c.bf16 %v2644, %v2641
    %v2658 = vpack.c.bf16 %v2652, %v2649
    %2660 = vrot.lane.b32.xlu0 %v2656, 32
    %v2661 = vpop.permute.xlu0 %2660
    %2663 = vrot.lane.b32.xlu0 %v2657, 64
    %v2664 = vpop.permute.xlu0 %2663
    %2666 = vrot.lane.b32.xlu0 %v2658, 96
    %v2667 = vpop.permute.xlu0 %2666
    %v2670 = vsel %vm102, %v2655, %v2661
    %v2672 = vsel %vm583, %v2670, %v2664
    %v2674 = vsel %vm586, %v2672, %v2667
    %v2676 = vlaneseq
    %v2677 = vshrl.u32 %v2676, 7
    %v2678 = vsub.s32 2, %v2677
    %v2679 = vrot.slane %v2295, %v2678
    %v2696 = vunpack.c.l.b16 %v2264
    %v2697 = vunpack.c.l.b16 %v2265
    %v2698 = vunpack.c.l.b16 %v2266
    %v2699 = vunpack.c.l.b16 %v2267
    %v2700 = vunpack.c.l.b16 %v2268
    %v2701 = vunpack.c.l.b16 %v2269
    %v2702 = vunpack.c.l.b16 %v2270
    %v2703 = vunpack.c.l.b16 %v2271
    %v2704 = vunpack.c.l.b16 %v2272
    %v2705 = vunpack.c.l.b16 %v2273
    %v2706 = vunpack.c.l.b16 %v2274
    %v2707 = vunpack.c.l.b16 %v2275
    %v2708 = vunpack.c.l.b16 %v2276
    %v2709 = vunpack.c.l.b16 %v2277
    %v2710 = vunpack.c.l.b16 %v2278
    %v2711 = vunpack.c.l.b16 %v2279
    %v2712 = vpack.c.b16 %v2697, %v2696
    %v2713 = vpack.c.b16 %v2699, %v2698
    %v2714 = vpack.c.b16 %v2701, %v2700
    %v2715 = vpack.c.b16 %v2703, %v2702
    %v2716 = vpack.c.b16 %v2705, %v2704
    %v2717 = vpack.c.b16 %v2707, %v2706
    %v2718 = vpack.c.b16 %v2709, %v2708
    %v2719 = vpack.c.b16 %v2711, %v2710
    %2728 = vmatprep.subr.bf16.mxu0 0
    %2729 = vmatpush1.bf16.msra.mxu0 %v2712
    %2730 = vmatprep.subr.bf16.mxu0 0
    %2731 = vmatpush1.bf16.msra.mxu0 %v2713
    %2732 = vmatprep.subr.bf16.mxu0 0
    %2733 = vmatpush1.bf16.msra.mxu0 %v2714
    %2734 = vmatprep.subr.bf16.mxu0 0
    %2735 = vmatpush1.bf16.msra.mxu0 %v2715
    %2736 = vmatprep.subr.bf16.mxu0 0
    %2737 = vmatpush1.bf16.msra.mxu0 %v2716
    %2738 = vmatprep.subr.bf16.mxu0 0
    %2739 = vmatpush1.bf16.msra.mxu0 %v2717
    %2740 = vmatprep.subr.bf16.mxu0 0
    %2741 = vmatpush1.bf16.msra.mxu0 %v2718
    %2742 = vmatprep.subr.bf16.mxu0 0
    %2743 = vmatpush1.bf16.msra.mxu0 %v2719
    %2744 = vmatprep.subr.bf16.mxu0 0
    %2745 = vmatpush1.bf16.msra.mxu0 0
    %2746 = vmatprep.subr.bf16.mxu0 0
    %2747 = vmatpush1.bf16.msra.mxu0 0
    %2748 = vmatprep.subr.bf16.mxu0 0
    %2749 = vmatpush1.bf16.msra.mxu0 0
    %2750 = vmatprep.subr.bf16.mxu0 0
    %2751 = vmatpush1.bf16.msra.mxu0 0
    %2752 = vmatprep.subr.bf16.mxu0 0
    %2753 = vmatpush1.bf16.msra.mxu0 0
    %2754 = vmatprep.subr.bf16.mxu0 0
    %2755 = vmatpush1.bf16.msra.mxu0 0
    %2756 = vmatprep.subr.bf16.mxu0 0
    %2757 = vmatpush1.bf16.msra.mxu0 0
    %2758 = vmatprep.subr.bf16.mxu0 0
    %2759 = vmatpush1.bf16.msra.mxu0 0
    %2760 = vmatprep.mubr.bf16.mxu0 0
    %2761 = vmatmul.mubr.bf16.gmra.mrb[0].mxu0 %v2674
    %v2762 = vpop.f32.mrb[0].mxu0
    %v2763 = vadd.f32 %v2679, %v2762
    %v2764 = vpop.f32.mrb[0].mxu0
    %v2765 = vpop.f32.mrb[0].mxu0
    %v2766 = vadd.f32 %v2679, %v2765
    %v2767 = vpop.f32.mrb[0].mxu0
    %2768 = vdwg.mxu0
    %v2769 = vadd.f32 %v2763, %v2316
    %v2770 = vadd.f32 %v2766, %v2317
    %v2771 = vmul.f32 %v2769, %v2769
    %v2772 = vmul.f32 %v2770, %v2770
    %v2773 = vsel %vm102, %v2771, 0.0
    %2774 = vadd.xlane.f32.xlu0 %v2773
    %v2775 = vpop.xlane.xlu0 %2774
    %v2776 = vsel %vm102, %v2772, 0.0
    %2777 = vadd.xlane.f32.xlu0 %v2776
    %v2778 = vpop.xlane.xlu0 %2777
    %v2779 = vmul.f32 %v2775, %v109
    %v2780 = vmul.f32 %v2778, %v109
    %v2781 = vadd.f32 %v2779, 1.1920929e-07
    %v2782 = vadd.f32 %v2780, 1.1920929e-07
    %v2783 = vrsqrt.pop %v2781
    %v2784 = vrsqrt.pop %v2782
    %v2785 = vmul.f32 %v2769, %v2783
    %v2786 = vmul.f32 %v2770, %v2784
    %v2787 = vlaneseq
    %v2788 = vshrl.u32 %v2787, 7
    %v2789 = vsub.s32 3, %v2788
    %v2790 = vrot.slane %v2295, %v2789
    %v2791 = vmul.f32 %v2785, %v2790
    %v2792 = vmul.f32 %v2786, %v2790
    %v2793 = vpack.c.bf16 %v2792, %v2791
    %v2794 = vlaneseq
    %v2795 = vshrl.u32 %v2794, 7
    %v2796 = vsub.s32 4, %v2795
    %v2797 = vrot.slane %v2295, %v2796
    %v2802 = vunpack.c.l.b16 %v2281
    %v2803 = vunpack.c.l.b16 %v2282
    %v2804 = vunpack.c.l.b16 %v2283
    %v2805 = vunpack.c.l.b16 %v2284
    %v2806 = vpack.c.b16 %v2803, %v2802
    %v2807 = vpack.c.b16 %v2805, %v2804
    %v2811 = vsel %vm102, %v2793, 0
    %2813 = vmatprep.subr.bf16.mxu0 0
    %2814 = vmatpush1.bf16.msra.mxu0 %v2806
    %2815 = vmatprep.subr.bf16.mxu0 0
    %2816 = vmatpush1.bf16.msra.mxu0 %v2807
    %2817 = vmatprep.subr.bf16.mxu0 0
    %2818 = vmatpush1.bf16.msra.mxu0 0
    %2819 = vmatprep.subr.bf16.mxu0 0
    %2820 = vmatpush1.bf16.msra.mxu0 0
    %2821 = vmatprep.subr.bf16.mxu0 0
    %2822 = vmatpush1.bf16.msra.mxu0 0
    %2823 = vmatprep.subr.bf16.mxu0 0
    %2824 = vmatpush1.bf16.msra.mxu0 0
    %2825 = vmatprep.subr.bf16.mxu0 0
    %2826 = vmatpush1.bf16.msra.mxu0 0
    %2827 = vmatprep.subr.bf16.mxu0 0
    %2828 = vmatpush1.bf16.msra.mxu0 0
    %2829 = vmatprep.subr.bf16.mxu0 0
    %2830 = vmatpush1.bf16.msra.mxu0 0
    %2831 = vmatprep.subr.bf16.mxu0 0
    %2832 = vmatpush1.bf16.msra.mxu0 0
    %2833 = vmatprep.subr.bf16.mxu0 0
    %2834 = vmatpush1.bf16.msra.mxu0 0
    %2835 = vmatprep.subr.bf16.mxu0 0
    %2836 = vmatpush1.bf16.msra.mxu0 0
    %2837 = vmatprep.subr.bf16.mxu0 0
    %2838 = vmatpush1.bf16.msra.mxu0 0
    %2839 = vmatprep.subr.bf16.mxu0 0
    %2840 = vmatpush1.bf16.msra.mxu0 0
    %2841 = vmatprep.subr.bf16.mxu0 0
    %2842 = vmatpush1.bf16.msra.mxu0 0
    %2843 = vmatprep.subr.bf16.mxu0 0
    %2844 = vmatpush1.bf16.msra.mxu0 0
    %2845 = vmatprep.mubr.bf16.mxu0 0
    %2846 = vmatmul.mubr.bf16.gmra.mrb[0].mxu0 %v2811
    %v2847 = vpop.f32.mrb[0].mxu0
    %v2848 = vadd.f32 %v2797, %v2847
    %v2849 = vpop.f32.mrb[0].mxu0
    %v2850 = vpop.f32.mrb[0].mxu0
    %v2851 = vadd.f32 %v2797, %v2850
    %v2852 = vpop.f32.mrb[0].mxu0
    %2853 = vdwg.mxu0
    %v2854 = vmax.f32 %v2848, 0.0
    %v2855 = vmax.f32 %v2851, 0.0
    %v2856 = vpack.c.bf16 %v2855, %v2854
    %v2857 = vlaneseq
    %v2858 = vshrl.u32 %v2857, 7
    %v2859 = vsub.s32 5, %v2858
    %v2860 = vrot.slane %v2295, %v2859
    %v2869 = vunpack.c.l.b16 %v2286
    %v2870 = vunpack.c.l.b16 %v2287
    %v2871 = vunpack.c.l.b16 %v2288
    %v2872 = vunpack.c.l.b16 %v2289
    %v2873 = vunpack.c.l.b16 %v2290
    %v2874 = vunpack.c.l.b16 %v2291
    %v2875 = vunpack.c.l.b16 %v2292
    %v2876 = vunpack.c.l.b16 %v2293
    %v2877 = vpack.c.b16 %v2870, %v2869
    %v2878 = vpack.c.b16 %v2872, %v2871
    %v2879 = vpack.c.b16 %v2874, %v2873
    %v2880 = vpack.c.b16 %v2876, %v2875
    %v2886 = vsel %vm583, %v2856, 0
    %2888 = vmatprep.subr.bf16.mxu0 0
    %2889 = vmatpush1.bf16.msra.mxu0 %v2877
    %2890 = vmatprep.subr.bf16.mxu0 0
    %2891 = vmatpush1.bf16.msra.mxu0 %v2878
    %2892 = vmatprep.subr.bf16.mxu0 0
    %2893 = vmatpush1.bf16.msra.mxu0 %v2879
    %2894 = vmatprep.subr.bf16.mxu0 0
    %2895 = vmatpush1.bf16.msra.mxu0 %v2880
    %2896 = vmatprep.subr.bf16.mxu0 0
    %2897 = vmatpush1.bf16.msra.mxu0 0
    %2898 = vmatprep.subr.bf16.mxu0 0
    %2899 = vmatpush1.bf16.msra.mxu0 0
    %2900 = vmatprep.subr.bf16.mxu0 0
    %2901 = vmatpush1.bf16.msra.mxu0 0
    %2902 = vmatprep.subr.bf16.mxu0 0
    %2903 = vmatpush1.bf16.msra.mxu0 0
    %2904 = vmatprep.subr.bf16.mxu0 0
    %2905 = vmatpush1.bf16.msra.mxu0 0
    %2906 = vmatprep.subr.bf16.mxu0 0
    %2907 = vmatpush1.bf16.msra.mxu0 0
    %2908 = vmatprep.subr.bf16.mxu0 0
    %2909 = vmatpush1.bf16.msra.mxu0 0
    %2910 = vmatprep.subr.bf16.mxu0 0
    %2911 = vmatpush1.bf16.msra.mxu0 0
    %2912 = vmatprep.subr.bf16.mxu0 0
    %2913 = vmatpush1.bf16.msra.mxu0 0
    %2914 = vmatprep.subr.bf16.mxu0 0
    %2915 = vmatpush1.bf16.msra.mxu0 0
    %2916 = vmatprep.subr.bf16.mxu0 0
    %2917 = vmatpush1.bf16.msra.mxu0 0
    %2918 = vmatprep.subr.bf16.mxu0 0
    %2919 = vmatpush1.bf16.msra.mxu0 0
    %2920 = vmatprep.mubr.bf16.mxu0 0
    %2921 = vmatmul.mubr.bf16.gmra.mrb[0].mxu0 %v2886
    %v2922 = vpop.f32.mrb[0].mxu0
    %v2923 = vadd.f32 %v2860, %v2922
    %v2924 = vpop.f32.mrb[0].mxu0
    %v2925 = vpop.f32.mrb[0].mxu0
    %v2926 = vadd.f32 %v2860, %v2925
    %v2927 = vpop.f32.mrb[0].mxu0
    %2928 = vdwg.mxu0
    %v2929 = vadd.f32 %v2923, %v2791
    %v2930 = vadd.f32 %v2926, %v2792
    %2931 = vst.msk [vmem:[#allocation2] sm:$0xff] %vm102, %v2929
    %2932 = vst.msk [vmem:[#allocation2 + $0x8] sm:$0xff] %vm102, %v2930
    // Predicated region
    $region42: #{tpu_custom_call.1} parent=1 // pred_check
      _
    $region43: #{tpu_custom_call.1} parent=1 // pred_check_branch
      %2934 = sbr.rel (0) target = $region45
    $region44: #{tpu_custom_call.1} parent=1 // pred_region
      %s2936 = ssub.s32 256, 256
      %2937 = vsyncadd [#allocation3], %s2936
      %s2938 = sshll.u32 [#allocation2], 4
      %s2939 = int_to_ptr.vmem [resolvable:$true] %s2938
      %2944 = dma.vmem_to_hbm [thread:$0]  %s2939, 256, %s10, [#allocation3], 128, 128, 8
    $region45: #{tpu_custom_call.1} parent=1 // pred_fallthru
      _
    // Predicated region
    $region46: #{tpu_custom_call.1} parent=1 // pred_check
      _
    $region47: #{tpu_custom_call.1} parent=1 // pred_check_branch
      %2946 = sbr.rel (0) target = $region49
    $region48: #{tpu_custom_call.1} parent=1 // pred_region
      %2947 = dma.done [#allocation3], 256
    $region49: #{tpu_custom_call.1} parent=1 // pred_fallthru
      _
    %2948 = vsyncpa [#allocation3], 1

</llo_original>
